<compile_context>
chip_gen: v6e
topology: v6e:2x2x1
jax: 0.10.0
libtpu: 0.0.40
codegen_flags: <defaults>
</compile_context>

<pallas_src>
import functools

import jax
import jax.numpy as jnp
from jax import lax
from jax.experimental import pallas as pl
from jax.experimental.pallas import tpu as pltpu

EPS = 1e-5
# f32 keeps the tight 1e-3 check at toy channel widths; use jnp.bfloat16 on
# v5e/v6e at real channel widths (dots always accumulate in f32).
MXU_DTYPE = jnp.float32

_CPARAMS = pltpu.CompilerParams(dimension_semantics=("arbitrary",))


def _vspec(shape):
    return pl.BlockSpec(shape, lambda i: (0,) * len(shape))


# ---------------------------------------------------------------------------
# Fused kernel: the entire residual block in one pallas_call.
#   inputs : x (Cin,M), g1,b1,(Cin,1), w1t (Cmid,Cin), g2,b2 (Cmid,1),
#            w2k (9,Cmid,Cmid), masks (9,1,M), g3,b3 (Cmid,1), w3t (Cout,Cmid),
#            [w4t (Cout,Cin) if projection], [selT (M,Mo) if stride != 1]
#   output : out (Cout, Mo)
#   scratch: padbuf (Cmid, M + 2*halo) f32  (zero-padded flattened activation)
# ---------------------------------------------------------------------------
def _fused_residual_block_kernel(has_proj, stride, W, halo,
                                 x_ref, g1_ref, b1_ref, w1t_ref,
                                 g2_ref, b2_ref, w2k_ref, masks_ref,
                                 g3_ref, b3_ref, w3t_ref, *rest):
    rest = list(rest)
    padbuf_ref = rest.pop()                       # VMEM scratch (last)
    o_ref = rest.pop()                            # output (Cout, Mo)
    selT_ref = rest.pop() if stride != 1 else None
    w4t_ref = rest.pop() if has_proj else None

    x = x_ref[...]                                # (Cin, M) f32
    M = x.shape[1]

    def bn_relu(v, g_ref, b_ref):
        # One-pass batch stats (biased variance) reusing the loaded vregs.
        inv = 1.0 / v.shape[1]
        s1 = jnp.sum(v, axis=1, keepdims=True)
        s2 = jnp.sum(v * v, axis=1, keepdims=True)
        mean = s1 * inv
        var = s2 * inv - mean * mean
        return jnp.maximum(
            (v - mean) * lax.rsqrt(var + EPS) * g_ref[...] + b_ref[...], 0.0)

    def mdot(a, b):
        return jnp.dot(a.astype(MXU_DTYPE), b.astype(MXU_DTYPE),
                       preferred_element_type=jnp.float32)

    # bn1 -> relu -> conv1 (1x1)
    h1 = mdot(w1t_ref[...], bn_relu(x, g1_ref, b1_ref))          # (Cmid, M)

    # bn2 -> relu
    a2 = bn_relu(h1, g2_ref, b2_ref)                              # (Cmid, M)

    # conv2 (3x3, pad 1): zero-padded VMEM scratch + 9 shifted dots.  No HBM
    # im2col; the halo padding lives entirely on-chip.
    padbuf_ref[...] = jnp.zeros_like(padbuf_ref)
    padbuf_ref[:, halo:halo + M] = a2
    h3 = jnp.zeros_like(a2)
    for kh in range(3):
        for kw in range(3):
            t = kh * 3 + kw
            d = (kh - 1) * W + (kw - 1)
            tap = padbuf_ref[:, halo + d:halo + d + M] * masks_ref[t]
            h3 = h3 + mdot(w2k_ref[t], tap)                       # (Cmid, M)

    # stride > 1: pick the strided output positions (and shortcut input) with
    # a one-hot selection matmul so everything stays in one fused kernel.
    if stride != 1:
        selT = selT_ref[...]                                      # (M, Mo)
        h3 = mdot(h3, selT)
        x_res = mdot(x, selT)
    else:
        x_res = x

    # bn3 -> relu -> conv3 (1x1) -> + residual
    out = mdot(w3t_ref[...], bn_relu(h3, g3_ref, b3_ref))         # (Cout, Mo)
    if has_proj:
        out = out + mdot(w4t_ref[...], x_res)
    else:
        out = out + x_res
    o_ref[...] = out


# ---------------------------------------------------------------------------
# Wrapper: layout plumbing (NCHW <-> lane-dense (C, M)) + one pallas_call.
# ---------------------------------------------------------------------------
@functools.partial(jax.jit, static_argnames=("stride",))
def residual_block_forward(x_nchw, params, stride=1):
    N, Cin, H, W = x_nchw.shape
    Cmid = params["w1"].shape[1]
    Cout = params["w3"].shape[1]
    s = stride
    Ho = (H - 1) // s + 1
    Wo = (W - 1) // s + 1
    M = N * H * W
    Mo = N * Ho * Wo
    has_proj = (Cin != Cout) or (s != 1)

    # channels-first, spatial flattened n-major:  m = n*H*W + y*W + x
    x_cm = jnp.transpose(x_nchw, (1, 0, 2, 3)).reshape(Cin, M)

    # weights in (out, in) orientation for (C, M) lane-dense matmuls
    w1t = params["w1"].T                                           # (Cmid, Cin)
    w2k = jnp.transpose(params["w2"], (0, 1, 3, 2)).reshape(9, Cmid, Cmid)
    w3t = params["w3"].T                                           # (Cout, Cmid)
    g1 = params["g1"].reshape(Cin, 1)
    b1 = params["b1"].reshape(Cin, 1)
    g2 = params["g2"].reshape(Cmid, 1)
    b2 = params["b2"].reshape(Cmid, 1)
    g3 = params["g3"].reshape(Cmid, 1)
    b3 = params["b3"].reshape(Cmid, 1)

    # per-tap spatial validity masks for the in-kernel 3x3 conv
    mi = jnp.arange(M, dtype=jnp.int32)
    xc = mi % W
    yc = (mi // W) % H
    mask_list = []
    for kh in range(3):
        for kw in range(3):
            dh, dw = kh - 1, kw - 1
            mask_list.append((xc + dw >= 0) & (xc + dw < W)
                             & (yc + dh >= 0) & (yc + dh < H))
    masks = jnp.stack(mask_list).astype(jnp.float32).reshape(9, 1, M)

    inputs = [x_cm, g1, b1, w1t, g2, b2, w2k, masks, g3, b3, w3t]
    if has_proj:
        inputs.append(params["w4"].T)                              # (Cout, Cin)
    if s != 1:
        centers = (jnp.arange(N)[:, None, None] * (H * W)
                   + jnp.arange(Ho)[:, None] * (s * W)
                   + jnp.arange(Wo) * s).reshape(Mo)
        selT = (mi[:, None] == centers[None, :]).astype(jnp.float32)  # (M, Mo)
        inputs.append(selT)
    in_specs = [_vspec(a.shape) for a in inputs]

    halo = ((W + 1 + 127) // 128) * 128           # lane-aligned interior offset
    kernel = functools.partial(_fused_residual_block_kernel,
                               has_proj, s, W, halo)

    out_cm = pl.pallas_call(
        kernel,
        out_shape=jax.ShapeDtypeStruct((Cout, Mo), jnp.float32),
        grid=(1,),
        in_specs=in_specs,
        out_specs=_vspec((Cout, Mo)),
        scratch_shapes=[pltpu.VMEM((Cmid, M + 2 * halo), jnp.float32)],
        compiler_params=_CPARAMS,
    )(*inputs)

    out = out_cm.reshape(Cout, N, Ho, Wo)
    return jnp.transpose(out, (1, 0, 2, 3))                        # NCHW


# ---------------------------------------------------------------------------
# Pure-JAX reference (sanity check)
# ---------------------------------------------------------------------------
def reference_forward(x_nchw, params, stride=1):
    s = stride
    x = jnp.transpose(x_nchw, (0, 2, 3, 1))
    Cin = x.shape[-1]
    Cout = params["w3"].shape[1]

    def bn(v, g, b):
        m = jnp.mean(v, axis=(0, 1, 2), keepdims=True)
        var = jnp.mean((v - m) ** 2, axis=(0, 1, 2), keepdims=True)
        return (v - m) * lax.rsqrt(var + EPS) * g.reshape(1, 1, 1, -1) + \
            b.reshape(1, 1, 1, -1)

    out1 = jnp.maximum(bn(x, params["g1"], params["b1"]), 0.0)
    h1 = jnp.einsum("nhwc,cd->nhwd", out1, params["w1"])
    h2 = jnp.maximum(bn(h1, params["g2"], params["b2"]), 0.0)
    h3 = lax.conv_general_dilated(
        h2, params["w2"], window_strides=(s, s), padding=((1, 1), (1, 1)),
        dimension_numbers=("NHWC", "HWIO", "NHWC"))
    h4 = jnp.maximum(bn(h3, params["g3"], params["b3"]), 0.0)
    out = jnp.einsum("nhwc,cd->nhwd", h4, params["w3"])
    if Cin != Cout or s != 1:
        residual = jnp.einsum("nhwc,cd->nhwd", x[:, ::s, ::s, :], params["w4"])
    else:
        residual = x
    return jnp.transpose(out + residual, (0, 3, 1, 2))


def make_params(key, Cin, Cout):
    Cmid = Cout // 4
    ks = jax.random.split(key, 10)

    def nrm(k, shape, scale=1.0):
        return scale * jax.random.normal(k, shape, jnp.float32)

    return {
        "g1": 1.0 + nrm(ks[0], (1, Cin), 0.1),
        "b1": nrm(ks[1], (1, Cin), 0.1),
        "w1": nrm(ks[2], (Cin, Cmid)) / jnp.sqrt(1.0 * Cin),
        "g2": 1.0 + nrm(ks[3], (1, Cmid), 0.1),
        "b2": nrm(ks[4], (1, Cmid), 0.1),
        "w2": nrm(ks[5], (3, 3, Cmid, Cmid)) / jnp.sqrt(9.0 * Cmid),
        "g3": 1.0 + nrm(ks[6], (1, Cmid), 0.1),
        "b3": nrm(ks[7], (1, Cmid), 0.1),
        "w3": nrm(ks[8], (Cmid, Cout)) / jnp.sqrt(1.0 * Cmid),
        "w4": nrm(ks[9], (Cin, Cout)) / jnp.sqrt(1.0 * Cin),
    }


# ---------------------------------------------------------------------------
if __name__ == "__main__":
    key = jax.random.PRNGKey(0)
    N, H, W = 2, 16, 16
    configs = [
        (4, 8, 1),   # projection shortcut (channel change), stride 1
        (8, 8, 1),   # identity shortcut
        (4, 8, 2),   # strided block -> projection shortcut
    ]
    for idx, (Cin, Cout, stride) in enumerate(configs):
        kp, kx, key = jax.random.split(key, 3)
        x = jax.random.normal(kx, (N, Cin, H, W), jnp.float32)
        params = make_params(kp, Cin, Cout)

        out = residual_block_forward(x, params, stride=stride)
        jax.block_until_ready(out)

        Ho = (H - 1) // stride + 1
        Wo = (W - 1) // stride + 1
        assert out.shape == (N, Cout, Ho, Wo), (idx, out.shape)
        ref = reference_forward(x, params, stride=stride)
        err = float(jnp.max(jnp.abs(out - ref)))
        assert err < 1e-3, f"config {idx}: max abs error {err}"

    print("KERNEL_OK")
</pallas_src>

<mosaic_0001>
module attributes {stable_mosaic.version = 11 : i64} {
  func.func @_fused_residual_block_kernel(%arg0: i32, %arg1: memref<4x512xf32, #tpu.memory_space<vmem>>, %arg2: memref<4x1xf32, #tpu.memory_space<vmem>>, %arg3: memref<4x1xf32, #tpu.memory_space<vmem>>, %arg4: memref<2x4xf32, #tpu.memory_space<vmem>>, %arg5: memref<2x1xf32, #tpu.memory_space<vmem>>, %arg6: memref<2x1xf32, #tpu.memory_space<vmem>>, %arg7: memref<9x2x2xf32, #tpu.memory_space<vmem>>, %arg8: memref<9x1x512xf32, #tpu.memory_space<vmem>>, %arg9: memref<2x1xf32, #tpu.memory_space<vmem>>, %arg10: memref<2x1xf32, #tpu.memory_space<vmem>>, %arg11: memref<8x2xf32, #tpu.memory_space<vmem>>, %arg12: memref<8x4xf32, #tpu.memory_space<vmem>>, %arg13: memref<8x512xf32, #tpu.memory_space<vmem>>, %arg14: memref<2x768xf32, #tpu.memory_space<vmem>>) attributes {dimension_semantics = [#tpu.dimension_semantics<arbitrary>], iteration_bounds = array<i64: 1>, scalar_prefetch = 0 : i64, scratch_operands = 1 : i64, tpu.core_type = #tpu.core_type<tc>, window_params = [{pipeline_mode = #tpu.pipeline_mode<synchronous>, transform_indices = @transform_0, window_bounds = array<i64: 4, 512>}, {pipeline_mode = #tpu.pipeline_mode<synchronous>, transform_indices = @transform_1, window_bounds = array<i64: 4, 1>}, {pipeline_mode = #tpu.pipeline_mode<synchronous>, transform_indices = @transform_2, window_bounds = array<i64: 4, 1>}, {pipeline_mode = #tpu.pipeline_mode<synchronous>, transform_indices = @transform_3, window_bounds = array<i64: 2, 4>}, {pipeline_mode = #tpu.pipeline_mode<synchronous>, transform_indices = @transform_4, window_bounds = array<i64: 2, 1>}, {pipeline_mode = #tpu.pipeline_mode<synchronous>, transform_indices = @transform_5, window_bounds = array<i64: 2, 1>}, {pipeline_mode = #tpu.pipeline_mode<synchronous>, transform_indices = @transform_6, window_bounds = array<i64: 9, 2, 2>}, {pipeline_mode = #tpu.pipeline_mode<synchronous>, transform_indices = @transform_7, window_bounds = array<i64: 9, 1, 512>}, {pipeline_mode = #tpu.pipeline_mode<synchronous>, transform_indices = @transform_8, window_bounds = array<i64: 2, 1>}, {pipeline_mode = #tpu.pipeline_mode<synchronous>, transform_indices = @transform_9, window_bounds = array<i64: 2, 1>}, {pipeline_mode = #tpu.pipeline_mode<synchronous>, transform_indices = @transform_10, window_bounds = array<i64: 8, 2>}, {pipeline_mode = #tpu.pipeline_mode<synchronous>, transform_indices = @transform_11, window_bounds = array<i64: 8, 4>}, {pipeline_mode = #tpu.pipeline_mode<synchronous>, transform_indices = @transform_12, window_bounds = array<i64: 8, 512>}]} {
    %c0 = arith.constant 0 : index
    %c0_0 = arith.constant 0 : index
    %0 = vector.load %arg1[%c0, %c0_0] : memref<4x512xf32, #tpu.memory_space<vmem>>, vector<4x512xf32>
    %c0_1 = arith.constant 0 : index
    %c0_2 = arith.constant 0 : index
    %1 = vector.load %arg4[%c0_1, %c0_2] : memref<2x4xf32, #tpu.memory_space<vmem>>, vector<2x4xf32>
    %cst = arith.constant dense<0.000000e+00> : vector<4xf32>
    %2 = vector.multi_reduction <add>, %0, %cst [1] : vector<4x512xf32> to vector<4xf32>
    %3 = vector.shape_cast %2 : vector<4xf32> to vector<4x1xf32>
    %4 = arith.mulf %0, %0 : vector<4x512xf32>
    %cst_3 = arith.constant dense<0.000000e+00> : vector<4xf32>
    %5 = vector.multi_reduction <add>, %4, %cst_3 [1] : vector<4x512xf32> to vector<4xf32>
    %6 = vector.shape_cast %5 : vector<4xf32> to vector<4x1xf32>
    %cst_4 = arith.constant 0.001953125 : f32
    %7 = vector.broadcast %cst_4 : f32 to vector<4x1xf32>
    %8 = arith.mulf %3, %7 : vector<4x1xf32>
    %cst_5 = arith.constant 0.001953125 : f32
    %9 = vector.broadcast %cst_5 : f32 to vector<4x1xf32>
    %10 = arith.mulf %6, %9 : vector<4x1xf32>
    %11 = arith.mulf %8, %8 : vector<4x1xf32>
    %12 = arith.subf %10, %11 : vector<4x1xf32>
    %13 = vector.broadcast %8 : vector<4x1xf32> to vector<4x512xf32>
    %14 = arith.subf %0, %13 : vector<4x512xf32>
    %cst_6 = arith.constant 9.99999974E-6 : f32
    %15 = vector.broadcast %cst_6 : f32 to vector<4x1xf32>
    %16 = arith.addf %12, %15 : vector<4x1xf32>
    %17 = math.rsqrt %16 : vector<4x1xf32>
    %18 = vector.broadcast %17 : vector<4x1xf32> to vector<4x512xf32>
    %19 = arith.mulf %14, %18 : vector<4x512xf32>
    %c0_7 = arith.constant 0 : index
    %c0_8 = arith.constant 0 : index
    %20 = vector.load %arg2[%c0_7, %c0_8] : memref<4x1xf32, #tpu.memory_space<vmem>>, vector<4x1xf32>
    %21 = vector.broadcast %20 : vector<4x1xf32> to vector<4x512xf32>
    %22 = arith.mulf %19, %21 : vector<4x512xf32>
    %c0_9 = arith.constant 0 : index
    %c0_10 = arith.constant 0 : index
    %23 = vector.load %arg3[%c0_9, %c0_10] : memref<4x1xf32, #tpu.memory_space<vmem>>, vector<4x1xf32>
    %24 = vector.broadcast %23 : vector<4x1xf32> to vector<4x512xf32>
    %25 = arith.addf %22, %24 : vector<4x512xf32>
    %cst_11 = arith.constant 0.000000e+00 : f32
    %26 = vector.broadcast %cst_11 : f32 to vector<4x512xf32>
    %27 = arith.maximumf %25, %26 : vector<4x512xf32>
    %cst_12 = arith.constant dense<0.000000e+00> : vector<2x512xf32>
    %28 = tpu.matmul %1, %27, %cst_12 {dimension_numbers = #tpu.dot_dimension_numbers<[1], [0], [0], [1], [0, 0, 1, 1], [], []>} : vector<2x4xf32>, vector<4x512xf32>, vector<2x512xf32> -> vector<2x512xf32>
    %cst_13 = arith.constant dense<0.000000e+00> : vector<2xf32>
    %29 = vector.multi_reduction <add>, %28, %cst_13 [1] : vector<2x512xf32> to vector<2xf32>
    %30 = vector.shape_cast %29 : vector<2xf32> to vector<2x1xf32>
    %31 = arith.mulf %28, %28 : vector<2x512xf32>
    %cst_14 = arith.constant dense<0.000000e+00> : vector<2xf32>
    %32 = vector.multi_reduction <add>, %31, %cst_14 [1] : vector<2x512xf32> to vector<2xf32>
    %33 = vector.shape_cast %32 : vector<2xf32> to vector<2x1xf32>
    %cst_15 = arith.constant 0.001953125 : f32
    %34 = vector.broadcast %cst_15 : f32 to vector<2x1xf32>
    %35 = arith.mulf %30, %34 : vector<2x1xf32>
    %cst_16 = arith.constant 0.001953125 : f32
    %36 = vector.broadcast %cst_16 : f32 to vector<2x1xf32>
    %37 = arith.mulf %33, %36 : vector<2x1xf32>
    %38 = arith.mulf %35, %35 : vector<2x1xf32>
    %39 = arith.subf %37, %38 : vector<2x1xf32>
    %40 = vector.broadcast %35 : vector<2x1xf32> to vector<2x512xf32>
    %41 = arith.subf %28, %40 : vector<2x512xf32>
    %cst_17 = arith.constant 9.99999974E-6 : f32
    %42 = vector.broadcast %cst_17 : f32 to vector<2x1xf32>
    %43 = arith.addf %39, %42 : vector<2x1xf32>
    %44 = math.rsqrt %43 : vector<2x1xf32>
    %45 = vector.broadcast %44 : vector<2x1xf32> to vector<2x512xf32>
    %46 = arith.mulf %41, %45 : vector<2x512xf32>
    %c0_18 = arith.constant 0 : index
    %c0_19 = arith.constant 0 : index
    %47 = vector.load %arg5[%c0_18, %c0_19] : memref<2x1xf32, #tpu.memory_space<vmem>>, vector<2x1xf32>
    %48 = vector.broadcast %47 : vector<2x1xf32> to vector<2x512xf32>
    %49 = arith.mulf %46, %48 : vector<2x512xf32>
    %c0_20 = arith.constant 0 : index
    %c0_21 = arith.constant 0 : index
    %50 = vector.load %arg6[%c0_20, %c0_21] : memref<2x1xf32, #tpu.memory_space<vmem>>, vector<2x1xf32>
    %51 = vector.broadcast %50 : vector<2x1xf32> to vector<2x512xf32>
    %52 = arith.addf %49, %51 : vector<2x512xf32>
    %cst_22 = arith.constant 0.000000e+00 : f32
    %53 = vector.broadcast %cst_22 : f32 to vector<2x512xf32>
    %54 = arith.maximumf %52, %53 : vector<2x512xf32>
    %cst_23 = arith.constant 0.000000e+00 : f32
    %55 = vector.broadcast %cst_23 : f32 to vector<2x768xf32>
    %c0_24 = arith.constant 0 : index
    %c0_25 = arith.constant 0 : index
    %56 = vector.load %arg14[%c0_24, %c0_25] : memref<2x768xf32, #tpu.memory_space<vmem>>, vector<2x768xf32>
    tpu.vector_store %arg14[%c0_24, %c0_25], %55 {strides = array<i32>} : memref<2x768xf32, #tpu.memory_space<vmem>>, vector<2x768xf32>,
    %c0_26 = arith.constant 0 : index
    %c128 = arith.constant 128 : index
    %57 = vector.load %arg14[%c0_26, %c128] : memref<2x768xf32, #tpu.memory_space<vmem>>, vector<2x512xf32>
    tpu.vector_store %arg14[%c0_26, %c128], %54 {strides = array<i32>} : memref<2x768xf32, #tpu.memory_space<vmem>>, vector<2x512xf32>,
    %cst_27 = arith.constant 0.000000e+00 : f32
    %58 = vector.broadcast %cst_27 : f32 to vector<2x512xf32>
    %c0_28 = arith.constant 0 : index
    %c111 = arith.constant 111 : index
    %59 = vector.load %arg14[%c0_28, %c111] : memref<2x768xf32, #tpu.memory_space<vmem>>, vector<2x512xf32>
    %c0_29 = arith.constant 0 : index
    %c0_30 = arith.constant 0 : index
    %c0_31 = arith.constant 0 : index
    %60 = vector.load %arg8[%c0_29, %c0_30, %c0_31] : memref<9x1x512xf32, #tpu.memory_space<vmem>>, vector<1x1x512xf32>
    %61 = vector.shape_cast %60 : vector<1x1x512xf32> to vector<1x512xf32>
    %62 = vector.broadcast %61 : vector<1x512xf32> to vector<2x512xf32>
    %63 = arith.mulf %59, %62 : vector<2x512xf32>
    %c0_32 = arith.constant 0 : index
    %c0_33 = arith.constant 0 : index
    %c0_34 = arith.constant 0 : index
    %64 = vector.load %arg7[%c0_32, %c0_33, %c0_34] : memref<9x2x2xf32, #tpu.memory_space<vmem>>, vector<1x2x2xf32>
    %65 = vector.shape_cast %64 : vector<1x2x2xf32> to vector<2x2xf32>
    %cst_35 = arith.constant dense<0.000000e+00> : vector<2x512xf32>
    %66 = tpu.matmul %65, %63, %cst_35 {dimension_numbers = #tpu.dot_dimension_numbers<[1], [0], [0], [1], [0, 0, 1, 1], [], []>} : vector<2x2xf32>, vector<2x512xf32>, vector<2x512xf32> -> vector<2x512xf32>
    %67 = arith.addf %58, %66 : vector<2x512xf32>
    %c0_36 = arith.constant 0 : index
    %c112 = arith.constant 112 : index
    %68 = vector.load %arg14[%c0_36, %c112] : memref<2x768xf32, #tpu.memory_space<vmem>>, vector<2x512xf32>
    %c1 = arith.constant 1 : index
    %c0_37 = arith.constant 0 : index
    %c0_38 = arith.constant 0 : index
    %69 = vector.load %arg8[%c1, %c0_37, %c0_38] : memref<9x1x512xf32, #tpu.memory_space<vmem>>, vector<1x1x512xf32>
    %70 = vector.shape_cast %69 : vector<1x1x512xf32> to vector<1x512xf32>
    %71 = vector.broadcast %70 : vector<1x512xf32> to vector<2x512xf32>
    %72 = arith.mulf %68, %71 : vector<2x512xf32>
    %c1_39 = arith.constant 1 : index
    %c0_40 = arith.constant 0 : index
    %c0_41 = arith.constant 0 : index
    %73 = vector.load %arg7[%c1_39, %c0_40, %c0_41] : memref<9x2x2xf32, #tpu.memory_space<vmem>>, vector<1x2x2xf32>
    %74 = vector.shape_cast %73 : vector<1x2x2xf32> to vector<2x2xf32>
    %cst_42 = arith.constant dense<0.000000e+00> : vector<2x512xf32>
    %75 = tpu.matmul %74, %72, %cst_42 {dimension_numbers = #tpu.dot_dimension_numbers<[1], [0], [0], [1], [0, 0, 1, 1], [], []>} : vector<2x2xf32>, vector<2x512xf32>, vector<2x512xf32> -> vector<2x512xf32>
    %76 = arith.addf %67, %75 : vector<2x512xf32>
    %c0_43 = arith.constant 0 : index
    %c113 = arith.constant 113 : index
    %77 = vector.load %arg14[%c0_43, %c113] : memref<2x768xf32, #tpu.memory_space<vmem>>, vector<2x512xf32>
    %c2 = arith.constant 2 : index
    %c0_44 = arith.constant 0 : index
    %c0_45 = arith.constant 0 : index
    %78 = vector.load %arg8[%c2, %c0_44, %c0_45] : memref<9x1x512xf32, #tpu.memory_space<vmem>>, vector<1x1x512xf32>
    %79 = vector.shape_cast %78 : vector<1x1x512xf32> to vector<1x512xf32>
    %80 = vector.broadcast %79 : vector<1x512xf32> to vector<2x512xf32>
    %81 = arith.mulf %77, %80 : vector<2x512xf32>
    %c2_46 = arith.constant 2 : index
    %c0_47 = arith.constant 0 : index
    %c0_48 = arith.constant 0 : index
    %82 = vector.load %arg7[%c2_46, %c0_47, %c0_48] : memref<9x2x2xf32, #tpu.memory_space<vmem>>, vector<1x2x2xf32>
    %83 = vector.shape_cast %82 : vector<1x2x2xf32> to vector<2x2xf32>
    %cst_49 = arith.constant dense<0.000000e+00> : vector<2x512xf32>
    %84 = tpu.matmul %83, %81, %cst_49 {dimension_numbers = #tpu.dot_dimension_numbers<[1], [0], [0], [1], [0, 0, 1, 1], [], []>} : vector<2x2xf32>, vector<2x512xf32>, vector<2x512xf32> -> vector<2x512xf32>
    %85 = arith.addf %76, %84 : vector<2x512xf32>
    %c0_50 = arith.constant 0 : index
    %c127 = arith.constant 127 : index
    %86 = vector.load %arg14[%c0_50, %c127] : memref<2x768xf32, #tpu.memory_space<vmem>>, vector<2x512xf32>
    %c3 = arith.constant 3 : index
    %c0_51 = arith.constant 0 : index
    %c0_52 = arith.constant 0 : index
    %87 = vector.load %arg8[%c3, %c0_51, %c0_52] : memref<9x1x512xf32, #tpu.memory_space<vmem>>, vector<1x1x512xf32>
    %88 = vector.shape_cast %87 : vector<1x1x512xf32> to vector<1x512xf32>
    %89 = vector.broadcast %88 : vector<1x512xf32> to vector<2x512xf32>
    %90 = arith.mulf %86, %89 : vector<2x512xf32>
    %c3_53 = arith.constant 3 : index
    %c0_54 = arith.constant 0 : index
    %c0_55 = arith.constant 0 : index
    %91 = vector.load %arg7[%c3_53, %c0_54, %c0_55] : memref<9x2x2xf32, #tpu.memory_space<vmem>>, vector<1x2x2xf32>
    %92 = vector.shape_cast %91 : vector<1x2x2xf32> to vector<2x2xf32>
    %cst_56 = arith.constant dense<0.000000e+00> : vector<2x512xf32>
    %93 = tpu.matmul %92, %90, %cst_56 {dimension_numbers = #tpu.dot_dimension_numbers<[1], [0], [0], [1], [0, 0, 1, 1], [], []>} : vector<2x2xf32>, vector<2x512xf32>, vector<2x512xf32> -> vector<2x512xf32>
    %94 = arith.addf %85, %93 : vector<2x512xf32>
    %c0_57 = arith.constant 0 : index
    %c128_58 = arith.constant 128 : index
    %95 = vector.load %arg14[%c0_57, %c128_58] : memref<2x768xf32, #tpu.memory_space<vmem>>, vector<2x512xf32>
    %c4 = arith.constant 4 : index
    %c0_59 = arith.constant 0 : index
    %c0_60 = arith.constant 0 : index
    %96 = vector.load %arg8[%c4, %c0_59, %c0_60] : memref<9x1x512xf32, #tpu.memory_space<vmem>>, vector<1x1x512xf32>
    %97 = vector.shape_cast %96 : vector<1x1x512xf32> to vector<1x512xf32>
    %98 = vector.broadcast %97 : vector<1x512xf32> to vector<2x512xf32>
    %99 = arith.mulf %95, %98 : vector<2x512xf32>
    %c4_61 = arith.constant 4 : index
    %c0_62 = arith.constant 0 : index
    %c0_63 = arith.constant 0 : index
    %100 = vector.load %arg7[%c4_61, %c0_62, %c0_63] : memref<9x2x2xf32, #tpu.memory_space<vmem>>, vector<1x2x2xf32>
    %101 = vector.shape_cast %100 : vector<1x2x2xf32> to vector<2x2xf32>
    %cst_64 = arith.constant dense<0.000000e+00> : vector<2x512xf32>
    %102 = tpu.matmul %101, %99, %cst_64 {dimension_numbers = #tpu.dot_dimension_numbers<[1], [0], [0], [1], [0, 0, 1, 1], [], []>} : vector<2x2xf32>, vector<2x512xf32>, vector<2x512xf32> -> vector<2x512xf32>
    %103 = arith.addf %94, %102 : vector<2x512xf32>
    %c0_65 = arith.constant 0 : index
    %c129 = arith.constant 129 : index
    %104 = vector.load %arg14[%c0_65, %c129] : memref<2x768xf32, #tpu.memory_space<vmem>>, vector<2x512xf32>
    %c5 = arith.constant 5 : index
    %c0_66 = arith.constant 0 : index
    %c0_67 = arith.constant 0 : index
    %105 = vector.load %arg8[%c5, %c0_66, %c0_67] : memref<9x1x512xf32, #tpu.memory_space<vmem>>, vector<1x1x512xf32>
    %106 = vector.shape_cast %105 : vector<1x1x512xf32> to vector<1x512xf32>
    %107 = vector.broadcast %106 : vector<1x512xf32> to vector<2x512xf32>
    %108 = arith.mulf %104, %107 : vector<2x512xf32>
    %c5_68 = arith.constant 5 : index
    %c0_69 = arith.constant 0 : index
    %c0_70 = arith.constant 0 : index
    %109 = vector.load %arg7[%c5_68, %c0_69, %c0_70] : memref<9x2x2xf32, #tpu.memory_space<vmem>>, vector<1x2x2xf32>
    %110 = vector.shape_cast %109 : vector<1x2x2xf32> to vector<2x2xf32>
    %cst_71 = arith.constant dense<0.000000e+00> : vector<2x512xf32>
    %111 = tpu.matmul %110, %108, %cst_71 {dimension_numbers = #tpu.dot_dimension_numbers<[1], [0], [0], [1], [0, 0, 1, 1], [], []>} : vector<2x2xf32>, vector<2x512xf32>, vector<2x512xf32> -> vector<2x512xf32>
    %112 = arith.addf %103, %111 : vector<2x512xf32>
    %c0_72 = arith.constant 0 : index
    %c143 = arith.constant 143 : index
    %113 = vector.load %arg14[%c0_72, %c143] : memref<2x768xf32, #tpu.memory_space<vmem>>, vector<2x512xf32>
    %c6 = arith.constant 6 : index
    %c0_73 = arith.constant 0 : index
    %c0_74 = arith.constant 0 : index
    %114 = vector.load %arg8[%c6, %c0_73, %c0_74] : memref<9x1x512xf32, #tpu.memory_space<vmem>>, vector<1x1x512xf32>
    %115 = vector.shape_cast %114 : vector<1x1x512xf32> to vector<1x512xf32>
    %116 = vector.broadcast %115 : vector<1x512xf32> to vector<2x512xf32>
    %117 = arith.mulf %113, %116 : vector<2x512xf32>
    %c6_75 = arith.constant 6 : index
    %c0_76 = arith.constant 0 : index
    %c0_77 = arith.constant 0 : index
    %118 = vector.load %arg7[%c6_75, %c0_76, %c0_77] : memref<9x2x2xf32, #tpu.memory_space<vmem>>, vector<1x2x2xf32>
    %119 = vector.shape_cast %118 : vector<1x2x2xf32> to vector<2x2xf32>
    %cst_78 = arith.constant dense<0.000000e+00> : vector<2x512xf32>
    %120 = tpu.matmul %119, %117, %cst_78 {dimension_numbers = #tpu.dot_dimension_numbers<[1], [0], [0], [1], [0, 0, 1, 1], [], []>} : vector<2x2xf32>, vector<2x512xf32>, vector<2x512xf32> -> vector<2x512xf32>
    %121 = arith.addf %112, %120 : vector<2x512xf32>
    %c0_79 = arith.constant 0 : index
    %c144 = arith.constant 144 : index
    %122 = vector.load %arg14[%c0_79, %c144] : memref<2x768xf32, #tpu.memory_space<vmem>>, vector<2x512xf32>
    %c7 = arith.constant 7 : index
    %c0_80 = arith.constant 0 : index
    %c0_81 = arith.constant 0 : index
    %123 = vector.load %arg8[%c7, %c0_80, %c0_81] : memref<9x1x512xf32, #tpu.memory_space<vmem>>, vector<1x1x512xf32>
    %124 = vector.shape_cast %123 : vector<1x1x512xf32> to vector<1x512xf32>
    %125 = vector.broadcast %124 : vector<1x512xf32> to vector<2x512xf32>
    %126 = arith.mulf %122, %125 : vector<2x512xf32>
    %c7_82 = arith.constant 7 : index
    %c0_83 = arith.constant 0 : index
    %c0_84 = arith.constant 0 : index
    %127 = vector.load %arg7[%c7_82, %c0_83, %c0_84] : memref<9x2x2xf32, #tpu.memory_space<vmem>>, vector<1x2x2xf32>
    %128 = vector.shape_cast %127 : vector<1x2x2xf32> to vector<2x2xf32>
    %cst_85 = arith.constant dense<0.000000e+00> : vector<2x512xf32>
    %129 = tpu.matmul %128, %126, %cst_85 {dimension_numbers = #tpu.dot_dimension_numbers<[1], [0], [0], [1], [0, 0, 1, 1], [], []>} : vector<2x2xf32>, vector<2x512xf32>, vector<2x512xf32> -> vector<2x512xf32>
    %130 = arith.addf %121, %129 : vector<2x512xf32>
    %c0_86 = arith.constant 0 : index
    %c145 = arith.constant 145 : index
    %131 = vector.load %arg14[%c0_86, %c145] : memref<2x768xf32, #tpu.memory_space<vmem>>, vector<2x512xf32>
    %c8 = arith.constant 8 : index
    %c0_87 = arith.constant 0 : index
    %c0_88 = arith.constant 0 : index
    %132 = vector.load %arg8[%c8, %c0_87, %c0_88] : memref<9x1x512xf32, #tpu.memory_space<vmem>>, vector<1x1x512xf32>
    %133 = vector.shape_cast %132 : vector<1x1x512xf32> to vector<1x512xf32>
    %134 = vector.broadcast %133 : vector<1x512xf32> to vector<2x512xf32>
    %135 = arith.mulf %131, %134 : vector<2x512xf32>
    %c8_89 = arith.constant 8 : index
    %c0_90 = arith.constant 0 : index
    %c0_91 = arith.constant 0 : index
    %136 = vector.load %arg7[%c8_89, %c0_90, %c0_91] : memref<9x2x2xf32, #tpu.memory_space<vmem>>, vector<1x2x2xf32>
    %137 = vector.shape_cast %136 : vector<1x2x2xf32> to vector<2x2xf32>
    %cst_92 = arith.constant dense<0.000000e+00> : vector<2x512xf32>
    %138 = tpu.matmul %137, %135, %cst_92 {dimension_numbers = #tpu.dot_dimension_numbers<[1], [0], [0], [1], [0, 0, 1, 1], [], []>} : vector<2x2xf32>, vector<2x512xf32>, vector<2x512xf32> -> vector<2x512xf32>
    %139 = arith.addf %130, %138 : vector<2x512xf32>
    %c0_93 = arith.constant 0 : index
    %c0_94 = arith.constant 0 : index
    %140 = vector.load %arg11[%c0_93, %c0_94] : memref<8x2xf32, #tpu.memory_space<vmem>>, vector<8x2xf32>
    %cst_95 = arith.constant dense<0.000000e+00> : vector<2xf32>
    %141 = vector.multi_reduction <add>, %139, %cst_95 [1] : vector<2x512xf32> to vector<2xf32>
    %142 = vector.shape_cast %141 : vector<2xf32> to vector<2x1xf32>
    %143 = arith.mulf %139, %139 : vector<2x512xf32>
    %cst_96 = arith.constant dense<0.000000e+00> : vector<2xf32>
    %144 = vector.multi_reduction <add>, %143, %cst_96 [1] : vector<2x512xf32> to vector<2xf32>
    %145 = vector.shape_cast %144 : vector<2xf32> to vector<2x1xf32>
    %cst_97 = arith.constant 0.001953125 : f32
    %146 = vector.broadcast %cst_97 : f32 to vector<2x1xf32>
    %147 = arith.mulf %142, %146 : vector<2x1xf32>
    %cst_98 = arith.constant 0.001953125 : f32
    %148 = vector.broadcast %cst_98 : f32 to vector<2x1xf32>
    %149 = arith.mulf %145, %148 : vector<2x1xf32>
    %150 = arith.mulf %147, %147 : vector<2x1xf32>
    %151 = arith.subf %149, %150 : vector<2x1xf32>
    %152 = vector.broadcast %147 : vector<2x1xf32> to vector<2x512xf32>
    %153 = arith.subf %139, %152 : vector<2x512xf32>
    %cst_99 = arith.constant 9.99999974E-6 : f32
    %154 = vector.broadcast %cst_99 : f32 to vector<2x1xf32>
    %155 = arith.addf %151, %154 : vector<2x1xf32>
    %156 = math.rsqrt %155 : vector<2x1xf32>
    %157 = vector.broadcast %156 : vector<2x1xf32> to vector<2x512xf32>
    %158 = arith.mulf %153, %157 : vector<2x512xf32>
    %c0_100 = arith.constant 0 : index
    %c0_101 = arith.constant 0 : index
    %159 = vector.load %arg9[%c0_100, %c0_101] : memref<2x1xf32, #tpu.memory_space<vmem>>, vector<2x1xf32>
    %160 = vector.broadcast %159 : vector<2x1xf32> to vector<2x512xf32>
    %161 = arith.mulf %158, %160 : vector<2x512xf32>
    %c0_102 = arith.constant 0 : index
    %c0_103 = arith.constant 0 : index
    %162 = vector.load %arg10[%c0_102, %c0_103] : memref<2x1xf32, #tpu.memory_space<vmem>>, vector<2x1xf32>
    %163 = vector.broadcast %162 : vector<2x1xf32> to vector<2x512xf32>
    %164 = arith.addf %161, %163 : vector<2x512xf32>
    %cst_104 = arith.constant 0.000000e+00 : f32
    %165 = vector.broadcast %cst_104 : f32 to vector<2x512xf32>
    %166 = arith.maximumf %164, %165 : vector<2x512xf32>
    %cst_105 = arith.constant dense<0.000000e+00> : vector<8x512xf32>
    %167 = tpu.matmul %140, %166, %cst_105 {dimension_numbers = #tpu.dot_dimension_numbers<[1], [0], [0], [1], [0, 0, 1, 1], [], []>} : vector<8x2xf32>, vector<2x512xf32>, vector<8x512xf32> -> vector<8x512xf32>
    %c0_106 = arith.constant 0 : index
    %c0_107 = arith.constant 0 : index
    %168 = vector.load %arg12[%c0_106, %c0_107] : memref<8x4xf32, #tpu.memory_space<vmem>>, vector<8x4xf32>
    %cst_108 = arith.constant dense<0.000000e+00> : vector<8x512xf32>
    %169 = tpu.matmul %168, %0, %cst_108 {dimension_numbers = #tpu.dot_dimension_numbers<[1], [0], [0], [1], [0, 0, 1, 1], [], []>} : vector<8x4xf32>, vector<4x512xf32>, vector<8x512xf32> -> vector<8x512xf32>
    %170 = arith.addf %167, %169 : vector<8x512xf32>
    %c0_109 = arith.constant 0 : index
    %c0_110 = arith.constant 0 : index
    %171 = vector.load %arg13[%c0_109, %c0_110] : memref<8x512xf32, #tpu.memory_space<vmem>>, vector<8x512xf32>
    tpu.vector_store %arg13[%c0_109, %c0_110], %170 {strides = array<i32>} : memref<8x512xf32, #tpu.memory_space<vmem>>, vector<8x512xf32>,
    return
  }
  func.func @transform_0(%arg0: i32) -> (i32, i32) {
    %c0_i32 = arith.constant 0 : i32
    %c0_i32_0 = arith.constant 0 : i32
    %c0_i32_1 = arith.constant 0 : i32
    return %c0_i32, %c0_i32_0 : i32, i32
  }
  func.func @transform_1(%arg0: i32) -> (i32, i32) {
    %c0_i32 = arith.constant 0 : i32
    %c0_i32_0 = arith.constant 0 : i32
    %c0_i32_1 = arith.constant 0 : i32
    return %c0_i32, %c0_i32_0 : i32, i32
  }
  func.func @transform_2(%arg0: i32) -> (i32, i32) {
    %c0_i32 = arith.constant 0 : i32
    %c0_i32_0 = arith.constant 0 : i32
    %c0_i32_1 = arith.constant 0 : i32
    return %c0_i32, %c0_i32_0 : i32, i32
  }
  func.func @transform_3(%arg0: i32) -> (i32, i32) {
    %c0_i32 = arith.constant 0 : i32
    %c0_i32_0 = arith.constant 0 : i32
    %c0_i32_1 = arith.constant 0 : i32
    return %c0_i32, %c0_i32_0 : i32, i32
  }
  func.func @transform_4(%arg0: i32) -> (i32, i32) {
    %c0_i32 = arith.constant 0 : i32
    %c0_i32_0 = arith.constant 0 : i32
    %c0_i32_1 = arith.constant 0 : i32
    return %c0_i32, %c0_i32_0 : i32, i32
  }
  func.func @transform_5(%arg0: i32) -> (i32, i32) {
    %c0_i32 = arith.constant 0 : i32
    %c0_i32_0 = arith.constant 0 : i32
    %c0_i32_1 = arith.constant 0 : i32
    return %c0_i32, %c0_i32_0 : i32, i32
  }
  func.func @transform_6(%arg0: i32) -> (i32, i32, i32) {
    %c0_i32 = arith.constant 0 : i32
    %c0_i32_0 = arith.constant 0 : i32
    %c0_i32_1 = arith.constant 0 : i32
    %c0_i32_2 = arith.constant 0 : i32
    return %c0_i32, %c0_i32_0, %c0_i32_1 : i32, i32, i32
  }
  func.func @transform_7(%arg0: i32) -> (i32, i32, i32) {
    %c0_i32 = arith.constant 0 : i32
    %c0_i32_0 = arith.constant 0 : i32
    %c0_i32_1 = arith.constant 0 : i32
    %c0_i32_2 = arith.constant 0 : i32
    return %c0_i32, %c0_i32_0, %c0_i32_1 : i32, i32, i32
  }
  func.func @transform_8(%arg0: i32) -> (i32, i32) {
    %c0_i32 = arith.constant 0 : i32
    %c0_i32_0 = arith.constant 0 : i32
    %c0_i32_1 = arith.constant 0 : i32
    return %c0_i32, %c0_i32_0 : i32, i32
  }
  func.func @transform_9(%arg0: i32) -> (i32, i32) {
    %c0_i32 = arith.constant 0 : i32
    %c0_i32_0 = arith.constant 0 : i32
    %c0_i32_1 = arith.constant 0 : i32
    return %c0_i32, %c0_i32_0 : i32, i32
  }
  func.func @transform_10(%arg0: i32) -> (i32, i32) {
    %c0_i32 = arith.constant 0 : i32
    %c0_i32_0 = arith.constant 0 : i32
    %c0_i32_1 = arith.constant 0 : i32
    return %c0_i32, %c0_i32_0 : i32, i32
  }
  func.func @transform_11(%arg0: i32) -> (i32, i32) {
    %c0_i32 = arith.constant 0 : i32
    %c0_i32_0 = arith.constant 0 : i32
    %c0_i32_1 = arith.constant 0 : i32
    return %c0_i32, %c0_i32_0 : i32, i32
  }
  func.func @transform_12(%arg0: i32) -> (i32, i32) {
    %c0_i32 = arith.constant 0 : i32
    %c0_i32_0 = arith.constant 0 : i32
    %c0_i32_1 = arith.constant 0 : i32
    return %c0_i32, %c0_i32_0 : i32, i32
  }
}

</mosaic_0001>

<llo_original>
// kernel: residual_block_forward.1
$region0: #{residual_block_forward.1}
  #allocation0 [shape = 'u32[]', space=smem, size = 0x4, offset = 0x4, fixed_abs, tag = 'smem constant byte address 0x4 - core index']
  #allocation1 [shape = 'u32[144,128]{1,0:T(1,128)}', space=vmem, size = 0x12000, scoped, tag = 'internal scratch']
  #allocation2 [shape = 'f32[2,768]{1,0:T(2,128)}', space=vmem, size = 0x1800, scoped, tag = 'scratch operand']
  %s0 = inlined_call_operand.vmem [shape: f32[4,512], index: 0, kind: input, shape index: {}]
  %s1 = inlined_call_operand.vmem [shape: f32[4,1], index: 1, kind: input, shape index: {}]
  %s2 = inlined_call_operand.vmem [shape: f32[4,1], index: 2, kind: input, shape index: {}]
  %s3 = inlined_call_operand.vmem [shape: f32[2,4], index: 3, kind: input, shape index: {}]
  %s4 = inlined_call_operand.vmem [shape: f32[2,1], index: 4, kind: input, shape index: {}]
  %s5 = inlined_call_operand.vmem [shape: f32[2,1], index: 5, kind: input, shape index: {}]
  %s6 = inlined_call_operand.vmem [shape: f32[9,2,2], index: 6, kind: input, shape index: {}]
  %s7 = inlined_call_operand.vmem [shape: f32[9,1,512], index: 7, kind: input, shape index: {}]
  %s8 = inlined_call_operand.vmem [shape: f32[2,1], index: 8, kind: input, shape index: {}]
  %s9 = inlined_call_operand.vmem [shape: f32[2,1], index: 9, kind: input, shape index: {}]
  %s10 = inlined_call_operand.vmem [shape: f32[8,2], index: 10, kind: input, shape index: {}]
  %s11 = inlined_call_operand.vmem [shape: f32[8,4], index: 11, kind: input, shape index: {}]
  %s12 = inlined_call_operand.vmem [shape: f32[8,512], index: 12, kind: output, shape index: {}]
  %s13 = sld [smem:[#allocation0]]
  $region58: #{residual_block_forward.1} parent=0
    _
  %s15 = ssub.s32 1, %s13
  %s16 = scalar_select 0, %s15, %s13
  // Predicated region
  $region2: #{residual_block_forward.1} parent=0 // pred_check
    _
  $region3: #{residual_block_forward.1} parent=0 // pred_check_branch
    %18 = sbr.rel (0) target = $region5
  $region4: #{residual_block_forward.1} parent=0 // pred_region
    _
  $region5: #{residual_block_forward.1} parent=0 // pred_fallthru
    _
  // Predicated region
  $region6: #{residual_block_forward.1} parent=0 // pred_check
    _
  $region7: #{residual_block_forward.1} parent=0 // pred_check_branch
    %20 = sbr.rel (0) target = $region9
  $region8: #{residual_block_forward.1} parent=0 // pred_region
    _
  $region9: #{residual_block_forward.1} parent=0 // pred_fallthru
    _
  // Predicated region
  $region10: #{residual_block_forward.1} parent=0 // pred_check
    _
  $region11: #{residual_block_forward.1} parent=0 // pred_check_branch
    %22 = sbr.rel (0) target = $region13
  $region12: #{residual_block_forward.1} parent=0 // pred_region
    _
  $region13: #{residual_block_forward.1} parent=0 // pred_fallthru
    _
  // Predicated region
  $region14: #{residual_block_forward.1} parent=0 // pred_check
    _
  $region15: #{residual_block_forward.1} parent=0 // pred_check_branch
    %24 = sbr.rel (0) target = $region17
  $region16: #{residual_block_forward.1} parent=0 // pred_region
    _
  $region17: #{residual_block_forward.1} parent=0 // pred_fallthru
    _
  // Predicated region
  $region18: #{residual_block_forward.1} parent=0 // pred_check
    _
  $region19: #{residual_block_forward.1} parent=0 // pred_check_branch
    %26 = sbr.rel (0) target = $region21
  $region20: #{residual_block_forward.1} parent=0 // pred_region
    _
  $region21: #{residual_block_forward.1} parent=0 // pred_fallthru
    _
  // Predicated region
  $region22: #{residual_block_forward.1} parent=0 // pred_check
    _
  $region23: #{residual_block_forward.1} parent=0 // pred_check_branch
    %28 = sbr.rel (0) target = $region25
  $region24: #{residual_block_forward.1} parent=0 // pred_region
    _
  $region25: #{residual_block_forward.1} parent=0 // pred_fallthru
    _
  // Predicated region
  $region26: #{residual_block_forward.1} parent=0 // pred_check
    _
  $region27: #{residual_block_forward.1} parent=0 // pred_check_branch
    %30 = sbr.rel (0) target = $region29
  $region28: #{residual_block_forward.1} parent=0 // pred_region
    _
  $region29: #{residual_block_forward.1} parent=0 // pred_fallthru
    _
  // Predicated region
  $region30: #{residual_block_forward.1} parent=0 // pred_check
    _
  $region31: #{residual_block_forward.1} parent=0 // pred_check_branch
    %32 = sbr.rel (0) target = $region33
  $region32: #{residual_block_forward.1} parent=0 // pred_region
    _
  $region33: #{residual_block_forward.1} parent=0 // pred_fallthru
    _
  // Predicated region
  $region34: #{residual_block_forward.1} parent=0 // pred_check
    _
  $region35: #{residual_block_forward.1} parent=0 // pred_check_branch
    %34 = sbr.rel (0) target = $region37
  $region36: #{residual_block_forward.1} parent=0 // pred_region
    _
  $region37: #{residual_block_forward.1} parent=0 // pred_fallthru
    _
  // Predicated region
  $region38: #{residual_block_forward.1} parent=0 // pred_check
    _
  $region39: #{residual_block_forward.1} parent=0 // pred_check_branch
    %36 = sbr.rel (0) target = $region41
  $region40: #{residual_block_forward.1} parent=0 // pred_region
    _
  $region41: #{residual_block_forward.1} parent=0 // pred_fallthru
    _
  // Predicated region
  $region42: #{residual_block_forward.1} parent=0 // pred_check
    _
  $region43: #{residual_block_forward.1} parent=0 // pred_check_branch
    %38 = sbr.rel (0) target = $region45
  $region44: #{residual_block_forward.1} parent=0 // pred_region
    _
  $region45: #{residual_block_forward.1} parent=0 // pred_fallthru
    _
  // Predicated region
  $region46: #{residual_block_forward.1} parent=0 // pred_check
    _
  $region47: #{residual_block_forward.1} parent=0 // pred_check_branch
    %40 = sbr.rel (0) target = $region49
  $region48: #{residual_block_forward.1} parent=0 // pred_region
    _
  $region49: #{residual_block_forward.1} parent=0 // pred_fallthru
    _
  %v41 = vld [vmem:[%s0] sm:$0xff]
  %v42 = vld [vmem:[%s0 + $0x8] sm:$0xff]
  %v43 = vld [vmem:[%s3] sm:$0x3]
  %v46 = vcombine.high %v41, %v41
  %v47 = vcombine.high %v42, %v42
  %vm50 = vcmask 1043456
  %v51 = vsel %vm50, %v41, 0.0
  %v52 = vsel %vm50, %v46, 0.0
  %v53 = vadd.f32 %v51, %v52
  %v54 = vsel %vm50, %v42, 0.0
  %v55 = vadd.f32 %v53, %v54
  %v56 = vsel %vm50, %v47, 0.0
  %v57 = vadd.f32 %v55, %v56
  %58 = vadd.xlane.f32.xlu0 %v57
  %v59 = vpop.xlane.xlu0 %58
  %v60 = vmul.f32 %v41, %v41
  %v61 = vmul.f32 %v42, %v42
  %v64 = vcombine.high %v60, %v60
  %v65 = vcombine.high %v61, %v61
  %v68 = vsel %vm50, %v60, 0.0
  %v69 = vsel %vm50, %v64, 0.0
  %v70 = vadd.f32 %v68, %v69
  %v71 = vsel %vm50, %v61, 0.0
  %v72 = vadd.f32 %v70, %v71
  %v73 = vsel %vm50, %v65, 0.0
  %v74 = vadd.f32 %v72, %v73
  %75 = vadd.xlane.f32.xlu0 %v74
  %v76 = vpop.xlane.xlu0 %75
  %v77 = vmul.f32 %v59, 0.001953125
  %v78 = vmul.f32 %v76, 0.001953125
  %v79 = vmul.f32 %v77, %v77
  %v80 = vsub.f32 %v78, %v79
  %v83 = vunpack.c.l.s4 839922192
  %v84 = vunpack.c.0.s8 %v83
  %v85 = vlaneseq
  %v86 = vshrl.u32 %v85, 7
  %v87 = vsub.s32 %v84, %v86
  %v88 = vrot.slane %v77, %v87
  %v90 = vsub.f32 %v41, %v88
  %v91 = vsub.f32 %v42, %v88
  %v92 = vadd.f32 %v80, 1e-05
  %v93 = vrsqrt.pop %v92
  %v96 = vunpack.c.l.s4 839922192
  %v97 = vunpack.c.0.s8 %v96
  %v98 = vlaneseq
  %v99 = vshrl.u32 %v98, 7
  %v100 = vsub.s32 %v97, %v99
  %v101 = vrot.slane %v93, %v100
  %v103 = vmul.f32 %v90, %v101
  %v104 = vmul.f32 %v91, %v101
  %v105 = vld [vmem:[%s1] sm:$0xf]
  %107 = vset.pattern.permute.xlu0 0
  %108 = vperm.xlu0 %107, %v105
  %v109 = vpop.permute.xlu0 %108
  %v111 = vunpack.c.l.s4 839922192
  %v112 = vunpack.c.0.s8 %v111
  %v113 = vlaneseq
  %v114 = vshrl.u32 %v113, 7
  %v115 = vsub.s32 %v112, %v114
  %v116 = vrot.slane %v109, %v115
  %v118 = vmul.f32 %v103, %v116
  %v119 = vmul.f32 %v104, %v116
  %v120 = vld [vmem:[%s2] sm:$0xf]
  %122 = vset.pattern.permute.xlu0 0
  %123 = vperm.xlu0 %122, %v120
  %v124 = vpop.permute.xlu0 %123
  %v126 = vunpack.c.l.s4 839922192
  %v127 = vunpack.c.0.s8 %v126
  %v128 = vlaneseq
  %v129 = vshrl.u32 %v128, 7
  %v130 = vsub.s32 %v127, %v129
  %v131 = vrot.slane %v124, %v130
  %v133 = vadd.f32 %v118, %v131
  %v134 = vadd.f32 %v119, %v131
  %v135 = vmax.f32 %v133, 0.0
  %v136 = vmax.f32 %v134, 0.0
  %v139 = vcombine.high %v135, %v135
  %v140 = vcombine.high %v136, %v136
  %vm141 = vcmask 31744
  %v143 = vsel %vm141, %v43, 0
  %v145 = vsel %vm50, %v135, 0
  %v147 = vsel %vm50, %v139, 0
  %v149 = vsel %vm50, %v136, 0
  %v151 = vsel %vm50, %v140, 0
  %153 = vmatprep.subr.mxu0 0.0
  %154 = vmatpush1.msra.mxu0 0.0
  %155 = vmatprep.subr.mxu0 0.0
  %156 = vmatpush1.msra.mxu0 0.0
  %157 = vmatprep.subr.mxu0 0.0
  %158 = vmatpush1.msra.mxu0 0.0
  %159 = vmatprep.subr.mxu0 0.0
  %160 = vmatpush1.msra.mxu0 0.0
  %161 = vmatprep.subr.mxu0 0.0
  %162 = vmatpush1.msra.mxu0 0.0
  %163 = vmatprep.subr.mxu0 0.0
  %164 = vmatpush1.msra.mxu0 0.0
  %165 = vmatprep.subr.mxu0 0.0
  %166 = vmatpush1.msra.mxu0 0.0
  %167 = vmatprep.subr.mxu0 0.0
  %168 = vmatpush1.msra.mxu0 0.0
  %169 = vmatprep.subr.mxu0 0.0
  %170 = vmatpush1.msra.mxu0 0.0
  %171 = vmatprep.subr.mxu0 0.0
  %172 = vmatpush1.msra.mxu0 0.0
  %173 = vmatprep.subr.mxu0 0.0
  %174 = vmatpush1.msra.mxu0 0.0
  %175 = vmatprep.subr.mxu0 0.0
  %176 = vmatpush1.msra.mxu0 0.0
  %177 = vmatprep.subr.mxu0 0.0
  %178 = vmatpush1.msra.mxu0 0.0
  %179 = vmatprep.subr.mxu0 0.0
  %180 = vmatpush1.msra.mxu0 0.0
  %181 = vmatprep.subr.mxu0 0.0
  %182 = vmatpush1.msra.mxu0 0.0
  %183 = vmatprep.subr.mxu0 %v147
  %184 = vmatpush1.msra.mxu0 %v145
  %185 = vmatprep.subr.mxu0 0.0
  %186 = vmatpush2.msra.mxu0 0.0
  %187 = vmatprep.subr.mxu0 0.0
  %188 = vmatpush2.msra.mxu0 0.0
  %189 = vmatprep.subr.mxu0 0.0
  %190 = vmatpush2.msra.mxu0 0.0
  %191 = vmatprep.subr.mxu0 0.0
  %192 = vmatpush2.msra.mxu0 0.0
  %193 = vmatprep.subr.mxu0 0.0
  %194 = vmatpush2.msra.mxu0 0.0
  %195 = vmatprep.subr.mxu0 0.0
  %196 = vmatpush2.msra.mxu0 0.0
  %197 = vmatprep.subr.mxu0 0.0
  %198 = vmatpush2.msra.mxu0 0.0
  %199 = vmatprep.subr.mxu0 0.0
  %200 = vmatpush2.msra.mxu0 0.0
  %201 = vmatprep.subr.mxu0 0.0
  %202 = vmatpush2.msra.mxu0 0.0
  %203 = vmatprep.subr.mxu0 0.0
  %204 = vmatpush2.msra.mxu0 0.0
  %205 = vmatprep.subr.mxu0 0.0
  %206 = vmatpush2.msra.mxu0 0.0
  %207 = vmatprep.subr.mxu0 0.0
  %208 = vmatpush2.msra.mxu0 0.0
  %209 = vmatprep.subr.mxu0 0.0
  %210 = vmatpush2.msra.mxu0 0.0
  %211 = vmatprep.subr.mxu0 0.0
  %212 = vmatpush2.msra.mxu0 0.0
  %213 = vmatprep.subr.mxu0 0.0
  %214 = vmatpush2.msra.mxu0 0.0
  %215 = vmatprep.subr.mxu0 0.0
  %216 = vmatpush2.msra.mxu0 0.0
  %217 = vmatprep.mubr.f32.mxu0 0.0
  %218 = vmatmul.mubr.f32.gmra.mxu0 %v143
  %v219 = vpop.f32.mrf.mxu0
  %v220 = vadd.f32 0.0, %v219
  %v221 = vpop.f32.mrf.mxu0
  %v222 = vadd.f32 0.0, %v221
  %223 = vdwg.mxu0
  %224 = vmatprep.subr.mxu0 0.0
  %225 = vmatpush1.msra.mxu0 0.0
  %226 = vmatprep.subr.mxu0 0.0
  %227 = vmatpush1.msra.mxu0 0.0
  %228 = vmatprep.subr.mxu0 0.0
  %229 = vmatpush1.msra.mxu0 0.0
  %230 = vmatprep.subr.mxu0 0.0
  %231 = vmatpush1.msra.mxu0 0.0
  %232 = vmatprep.subr.mxu0 0.0
  %233 = vmatpush1.msra.mxu0 0.0
  %234 = vmatprep.subr.mxu0 0.0
  %235 = vmatpush1.msra.mxu0 0.0
  %236 = vmatprep.subr.mxu0 0.0
  %237 = vmatpush1.msra.mxu0 0.0
  %238 = vmatprep.subr.mxu0 0.0
  %239 = vmatpush1.msra.mxu0 0.0
  %240 = vmatprep.subr.mxu0 0.0
  %241 = vmatpush1.msra.mxu0 0.0
  %242 = vmatprep.subr.mxu0 0.0
  %243 = vmatpush1.msra.mxu0 0.0
  %244 = vmatprep.subr.mxu0 0.0
  %245 = vmatpush1.msra.mxu0 0.0
  %246 = vmatprep.subr.mxu0 0.0
  %247 = vmatpush1.msra.mxu0 0.0
  %248 = vmatprep.subr.mxu0 0.0
  %249 = vmatpush1.msra.mxu0 0.0
  %250 = vmatprep.subr.mxu0 0.0
  %251 = vmatpush1.msra.mxu0 0.0
  %252 = vmatprep.subr.mxu0 0.0
  %253 = vmatpush1.msra.mxu0 0.0
  %254 = vmatprep.subr.mxu0 %v151
  %255 = vmatpush1.msra.mxu0 %v149
  %256 = vmatprep.subr.mxu0 0.0
  %257 = vmatpush2.msra.mxu0 0.0
  %258 = vmatprep.subr.mxu0 0.0
  %259 = vmatpush2.msra.mxu0 0.0
  %260 = vmatprep.subr.mxu0 0.0
  %261 = vmatpush2.msra.mxu0 0.0
  %262 = vmatprep.subr.mxu0 0.0
  %263 = vmatpush2.msra.mxu0 0.0
  %264 = vmatprep.subr.mxu0 0.0
  %265 = vmatpush2.msra.mxu0 0.0
  %266 = vmatprep.subr.mxu0 0.0
  %267 = vmatpush2.msra.mxu0 0.0
  %268 = vmatprep.subr.mxu0 0.0
  %269 = vmatpush2.msra.mxu0 0.0
  %270 = vmatprep.subr.mxu0 0.0
  %271 = vmatpush2.msra.mxu0 0.0
  %272 = vmatprep.subr.mxu0 0.0
  %273 = vmatpush2.msra.mxu0 0.0
  %274 = vmatprep.subr.mxu0 0.0
  %275 = vmatpush2.msra.mxu0 0.0
  %276 = vmatprep.subr.mxu0 0.0
  %277 = vmatpush2.msra.mxu0 0.0
  %278 = vmatprep.subr.mxu0 0.0
  %279 = vmatpush2.msra.mxu0 0.0
  %280 = vmatprep.subr.mxu0 0.0
  %281 = vmatpush2.msra.mxu0 0.0
  %282 = vmatprep.subr.mxu0 0.0
  %283 = vmatpush2.msra.mxu0 0.0
  %284 = vmatprep.subr.mxu0 0.0
  %285 = vmatpush2.msra.mxu0 0.0
  %286 = vmatprep.subr.mxu0 0.0
  %287 = vmatpush2.msra.mxu0 0.0
  %288 = vmatprep.mubr.f32.mxu0 0.0
  %289 = vmatmul.mubr.f32.gmra.mxu0 %v143
  %v290 = vpop.f32.mrf.mxu0
  %v291 = vadd.f32 0.0, %v290
  %v292 = vpop.f32.mrf.mxu0
  %v293 = vadd.f32 0.0, %v292
  %294 = vdwg.mxu0
  %vm295 = vcmask 1041408
  %v296 = vsel %vm295, %v220, 0.0
  %v297 = vsel %vm295, %v222, 0.0
  %v298 = vadd.f32 %v296, %v297
  %v299 = vsel %vm295, %v291, 0.0
  %v300 = vadd.f32 %v298, %v299
  %v301 = vsel %vm295, %v293, 0.0
  %v302 = vadd.f32 %v300, %v301
  %303 = vadd.xlane.f32.xlu0 %v302
  %v304 = vpop.xlane.xlu0 %303
  %v305 = vmul.f32 %v220, %v220
  %v306 = vmul.f32 %v222, %v222
  %v307 = vmul.f32 %v291, %v291
  %v308 = vmul.f32 %v293, %v293
  %v309 = vsel %vm295, %v305, 0.0
  %v310 = vsel %vm295, %v306, 0.0
  %v311 = vadd.f32 %v309, %v310
  %v312 = vsel %vm295, %v307, 0.0
  %v313 = vadd.f32 %v311, %v312
  %v314 = vsel %vm295, %v308, 0.0
  %v315 = vadd.f32 %v313, %v314
  %316 = vadd.xlane.f32.xlu0 %v315
  %v317 = vpop.xlane.xlu0 %316
  %v318 = vmul.f32 %v304, 0.001953125
  %v319 = vmul.f32 %v317, 0.001953125
  %v320 = vmul.f32 %v318, %v318
  %v321 = vsub.f32 %v319, %v320
  %v322 = vsub.f32 %v220, %v318
  %v323 = vsub.f32 %v222, %v318
  %v324 = vsub.f32 %v291, %v318
  %v325 = vsub.f32 %v293, %v318
  %v326 = vadd.f32 %v321, 1e-05
  %v327 = vrsqrt.pop %v326
  %v328 = vmul.f32 %v322, %v327
  %v329 = vmul.f32 %v323, %v327
  %v330 = vmul.f32 %v324, %v327
  %v331 = vmul.f32 %v325, %v327
  %v332 = vld [vmem:[%s4] sm:$0x3]
  %334 = vset.pattern.permute.xlu0 0
  %335 = vperm.xlu0 %334, %v332
  %v336 = vpop.permute.xlu0 %335
  %v338 = vmul.f32 %v328, %v336
  %v339 = vmul.f32 %v329, %v336
  %v340 = vmul.f32 %v330, %v336
  %v341 = vmul.f32 %v331, %v336
  %v342 = vld [vmem:[%s5] sm:$0x3]
  %344 = vset.pattern.permute.xlu0 0
  %345 = vperm.xlu0 %344, %v342
  %v346 = vpop.permute.xlu0 %345
  %v348 = vadd.f32 %v338, %v346
  %v349 = vadd.f32 %v339, %v346
  %v350 = vadd.f32 %v340, %v346
  %v351 = vadd.f32 %v341, %v346
  %v352 = vmax.f32 %v348, 0.0
  %v353 = vmax.f32 %v349, 0.0
  %v354 = vmax.f32 %v350, 0.0
  %v355 = vmax.f32 %v351, 0.0
  %356 = vst [vmem:[#allocation2] sm:$0xff] 0.0
  %357 = vst [vmem:[#allocation2 + $0x8] sm:$0xf] 0.0
  %v362 = vcombine.low %v352, %v353
  %v363 = vcombine.low %v354, %v355
  %v365 = vunpack.c.l.s4 1983009808
  %v366 = vunpack.c.0.s8 %v365
  %v367 = vlaneseq
  %v368 = vshrl.u32 %v367, 7
  %v369 = vsub.s32 %v366, %v368
  %v370 = vrot.slane %v362, %v369
  %v372 = vunpack.c.l.s4 1983009808
  %v373 = vunpack.c.0.s8 %v372
  %v374 = vlaneseq
  %v375 = vshrl.u32 %v374, 7
  %v376 = vsub.s32 %v373, %v375
  %v377 = vrot.slane %v363, %v376
  %v378 = vcombine.low %v370, %v377
  %380 = vst [vmem:[#allocation2 + $0x2] sm:$0xff] %v378
  %v381 = vld [vmem:[#allocation2] sm:$0xff]
  %v382 = vld [vmem:[#allocation2 + $0x8] sm:$0x3]
  %v383 = vld [vmem:[%s7] sm:$0xf]
  %v385 = vlaneseq
  %v386 = vshrl.u32 %v385, 7
  %v387 = vsub.s32 0, %v386
  %v388 = vrot.slane %v383, %v387
  %v389 = vlaneseq
  %v390 = vshrl.u32 %v389, 7
  %v391 = vsub.s32 1, %v390
  %v392 = vrot.slane %v383, %v391
  %v393 = vlaneseq
  %v394 = vshrl.u32 %v393, 7
  %v395 = vsub.s32 2, %v394
  %v396 = vrot.slane %v383, %v395
  %v397 = vlaneseq
  %v398 = vshrl.u32 %v397, 7
  %v399 = vsub.s32 3, %v398
  %v400 = vrot.slane %v383, %v399
  %v401 = vcombine.low %v388, %v392
  %v402 = vcombine.low %v396, %v400
  %v404 = vunpack.c.l.s4 1983009808
  %v405 = vunpack.c.0.s8 %v404
  %v406 = vlaneseq
  %v407 = vshrl.u32 %v406, 7
  %v408 = vsub.s32 %v405, %v407
  %v409 = vrot.slane %v401, %v408
  %v411 = vunpack.c.l.s4 1983009808
  %v412 = vunpack.c.0.s8 %v411
  %v413 = vlaneseq
  %v414 = vshrl.u32 %v413, 7
  %v415 = vsub.s32 %v412, %v414
  %v416 = vrot.slane %v402, %v415
  %v417 = vcombine.low %v409, %v416
  %418 = vrot.lane.b32.xlu0 %v417, 111
  %v419 = vpop.permute.xlu0 %418
  %v420 = vrot.slane %v419, 6
  %vm421 = vcmask 908288
  %v422 = vsel %vm421, %v420, %v419
  %v425 = vmul.f32 %v381, %v422
  %v426 = vmul.f32 %v382, %v420
  %v427 = vld [vmem:[%s6] sm:$0x3]
  %s428 = scalar_lea.vmem %s7, 4
  %v429 = vld [vmem:[%s428] sm:$0xf]
  %v431 = vlaneseq
  %v432 = vshrl.u32 %v431, 7
  %v433 = vsub.s32 0, %v432
  %v434 = vrot.slane %v429, %v433
  %v435 = vlaneseq
  %v436 = vshrl.u32 %v435, 7
  %v437 = vsub.s32 1, %v436
  %v438 = vrot.slane %v429, %v437
  %v439 = vlaneseq
  %v440 = vshrl.u32 %v439, 7
  %v441 = vsub.s32 2, %v440
  %v442 = vrot.slane %v429, %v441
  %v443 = vlaneseq
  %v444 = vshrl.u32 %v443, 7
  %v445 = vsub.s32 3, %v444
  %v446 = vrot.slane %v429, %v445
  %v447 = vcombine.low %v434, %v438
  %v448 = vcombine.low %v442, %v446
  %v450 = vunpack.c.l.s4 1983009808
  %v451 = vunpack.c.0.s8 %v450
  %v452 = vlaneseq
  %v453 = vshrl.u32 %v452, 7
  %v454 = vsub.s32 %v451, %v453
  %v455 = vrot.slane %v447, %v454
  %v457 = vunpack.c.l.s4 1983009808
  %v458 = vunpack.c.0.s8 %v457
  %v459 = vlaneseq
  %v460 = vshrl.u32 %v459, 7
  %v461 = vsub.s32 %v458, %v460
  %v462 = vrot.slane %v448, %v461
  %v463 = vcombine.low %v455, %v462
  %464 = vrot.lane.b32.xlu0 %v463, 112
  %v465 = vpop.permute.xlu0 %464
  %v466 = vrot.slane %v465, 6
  %vm467 = vcmask 916480
  %v468 = vsel %vm467, %v466, %v465
  %v471 = vmul.f32 %v381, %v468
  %v472 = vmul.f32 %v382, %v466
  %s473 = scalar_lea.vmem %s6, 2
  %v474 = vld [vmem:[%s473] sm:$0x3]
  %v477 = vcombine.high %v471, %v471
  %v479 = vunpack.c.l.s4 1983009808
  %v480 = vunpack.c.0.s8 %v479
  %v481 = vlaneseq
  %v482 = vshrl.u32 %v481, 7
  %v483 = vsub.s32 %v480, %v482
  %v484 = vrot.slane %v471, %v483
  %v486 = vunpack.c.l.s4 1983009808
  %v487 = vunpack.c.0.s8 %v486
  %v488 = vlaneseq
  %v489 = vshrl.u32 %v488, 7
  %v490 = vsub.s32 %v487, %v489
  %v491 = vrot.slane %v477, %v490
  %v492 = vcombine.high %v484, %v484
  %v493 = vcombine.high %v491, %v491
  %v495 = vunpack.c.l.s4 1983009808
  %v496 = vunpack.c.0.s8 %v495
  %v497 = vlaneseq
  %v498 = vshrl.u32 %v497, 7
  %v499 = vsub.s32 %v496, %v498
  %v500 = vrot.slane %v472, %v499
  %501 = vrot.lane.b32.xlu0 %v484, 16
  %v502 = vpop.permute.xlu0 %501
  %503 = vrot.lane.b32.xlu0 %v492, 16
  %v504 = vpop.permute.xlu0 %503
  %505 = vrot.lane.b32.xlu0 %v491, 16
  %v506 = vpop.permute.xlu0 %505
  %507 = vrot.lane.b32.xlu0 %v493, 16
  %v508 = vpop.permute.xlu0 %507
  %509 = vrot.lane.b32.xlu0 %v500, 16
  %v510 = vpop.permute.xlu0 %509
  %vm511 = vcmask 130048
  %v512 = vsel %vm511, %v502, %v504
  %v513 = vsel %vm511, %v504, %v506
  %v514 = vsel %vm511, %v506, %v508
  %v515 = vsel %vm511, %v508, %v510
  %vm516 = vcmask 15360
  %v518 = vsel %vm516, %v474, 0
  %v520 = vsel %vm295, %v512, 0
  %v522 = vsel %vm295, %v513, 0
  %v524 = vsel %vm295, %v514, 0
  %v526 = vsel %vm295, %v515, 0
  %528 = vmatprep.subr.mxu0 0.0
  %529 = vmatpush1.msra.mxu0 0.0
  %530 = vmatprep.subr.mxu0 0.0
  %531 = vmatpush1.msra.mxu0 0.0
  %532 = vmatprep.subr.mxu0 0.0
  %533 = vmatpush1.msra.mxu0 0.0
  %534 = vmatprep.subr.mxu0 0.0
  %535 = vmatpush1.msra.mxu0 0.0
  %536 = vmatprep.subr.mxu0 0.0
  %537 = vmatpush1.msra.mxu0 0.0
  %538 = vmatprep.subr.mxu0 0.0
  %539 = vmatpush1.msra.mxu0 0.0
  %540 = vmatprep.subr.mxu0 0.0
  %541 = vmatpush1.msra.mxu0 0.0
  %542 = vmatprep.subr.mxu0 0.0
  %543 = vmatpush1.msra.mxu0 0.0
  %544 = vmatprep.subr.mxu0 0.0
  %545 = vmatpush1.msra.mxu0 0.0
  %546 = vmatprep.subr.mxu0 0.0
  %547 = vmatpush1.msra.mxu0 0.0
  %548 = vmatprep.subr.mxu0 0.0
  %549 = vmatpush1.msra.mxu0 0.0
  %550 = vmatprep.subr.mxu0 0.0
  %551 = vmatpush1.msra.mxu0 0.0
  %552 = vmatprep.subr.mxu0 0.0
  %553 = vmatpush1.msra.mxu0 0.0
  %554 = vmatprep.subr.mxu0 0.0
  %555 = vmatpush1.msra.mxu0 0.0
  %556 = vmatprep.subr.mxu0 0.0
  %557 = vmatpush1.msra.mxu0 0.0
  %558 = vmatprep.subr.mxu0 %v522
  %559 = vmatpush1.msra.mxu0 %v520
  %560 = vmatprep.subr.mxu0 0.0
  %561 = vmatpush2.msra.mxu0 0.0
  %562 = vmatprep.subr.mxu0 0.0
  %563 = vmatpush2.msra.mxu0 0.0
  %564 = vmatprep.subr.mxu0 0.0
  %565 = vmatpush2.msra.mxu0 0.0
  %566 = vmatprep.subr.mxu0 0.0
  %567 = vmatpush2.msra.mxu0 0.0
  %568 = vmatprep.subr.mxu0 0.0
  %569 = vmatpush2.msra.mxu0 0.0
  %570 = vmatprep.subr.mxu0 0.0
  %571 = vmatpush2.msra.mxu0 0.0
  %572 = vmatprep.subr.mxu0 0.0
  %573 = vmatpush2.msra.mxu0 0.0
  %574 = vmatprep.subr.mxu0 0.0
  %575 = vmatpush2.msra.mxu0 0.0
  %576 = vmatprep.subr.mxu0 0.0
  %577 = vmatpush2.msra.mxu0 0.0
  %578 = vmatprep.subr.mxu0 0.0
  %579 = vmatpush2.msra.mxu0 0.0
  %580 = vmatprep.subr.mxu0 0.0
  %581 = vmatpush2.msra.mxu0 0.0
  %582 = vmatprep.subr.mxu0 0.0
  %583 = vmatpush2.msra.mxu0 0.0
  %584 = vmatprep.subr.mxu0 0.0
  %585 = vmatpush2.msra.mxu0 0.0
  %586 = vmatprep.subr.mxu0 0.0
  %587 = vmatpush2.msra.mxu0 0.0
  %588 = vmatprep.subr.mxu0 0.0
  %589 = vmatpush2.msra.mxu0 0.0
  %590 = vmatprep.subr.mxu0 0.0
  %591 = vmatpush2.msra.mxu0 0.0
  %592 = vmatprep.mubr.f32.mxu0 0.0
  %593 = vmatmul.mubr.f32.gmra.mxu0 %v518
  %v594 = vpop.f32.mrf.mxu0
  %v595 = vadd.f32 0.0, %v594
  %v596 = vpop.f32.mrf.mxu0
  %v597 = vadd.f32 0.0, %v596
  %598 = vdwg.mxu0
  %599 = vmatprep.subr.mxu0 0.0
  %600 = vmatpush1.msra.mxu0 0.0
  %601 = vmatprep.subr.mxu0 0.0
  %602 = vmatpush1.msra.mxu0 0.0
  %603 = vmatprep.subr.mxu0 0.0
  %604 = vmatpush1.msra.mxu0 0.0
  %605 = vmatprep.subr.mxu0 0.0
  %606 = vmatpush1.msra.mxu0 0.0
  %607 = vmatprep.subr.mxu0 0.0
  %608 = vmatpush1.msra.mxu0 0.0
  %609 = vmatprep.subr.mxu0 0.0
  %610 = vmatpush1.msra.mxu0 0.0
  %611 = vmatprep.subr.mxu0 0.0
  %612 = vmatpush1.msra.mxu0 0.0
  %613 = vmatprep.subr.mxu0 0.0
  %614 = vmatpush1.msra.mxu0 0.0
  %615 = vmatprep.subr.mxu0 0.0
  %616 = vmatpush1.msra.mxu0 0.0
  %617 = vmatprep.subr.mxu0 0.0
  %618 = vmatpush1.msra.mxu0 0.0
  %619 = vmatprep.subr.mxu0 0.0
  %620 = vmatpush1.msra.mxu0 0.0
  %621 = vmatprep.subr.mxu0 0.0
  %622 = vmatpush1.msra.mxu0 0.0
  %623 = vmatprep.subr.mxu0 0.0
  %624 = vmatpush1.msra.mxu0 0.0
  %625 = vmatprep.subr.mxu0 0.0
  %626 = vmatpush1.msra.mxu0 0.0
  %627 = vmatprep.subr.mxu0 0.0
  %628 = vmatpush1.msra.mxu0 0.0
  %629 = vmatprep.subr.mxu0 %v526
  %630 = vmatpush1.msra.mxu0 %v524
  %631 = vmatprep.subr.mxu0 0.0
  %632 = vmatpush2.msra.mxu0 0.0
  %633 = vmatprep.subr.mxu0 0.0
  %634 = vmatpush2.msra.mxu0 0.0
  %635 = vmatprep.subr.mxu0 0.0
  %636 = vmatpush2.msra.mxu0 0.0
  %637 = vmatprep.subr.mxu0 0.0
  %638 = vmatpush2.msra.mxu0 0.0
  %639 = vmatprep.subr.mxu0 0.0
  %640 = vmatpush2.msra.mxu0 0.0
  %641 = vmatprep.subr.mxu0 0.0
  %642 = vmatpush2.msra.mxu0 0.0
  %643 = vmatprep.subr.mxu0 0.0
  %644 = vmatpush2.msra.mxu0 0.0
  %645 = vmatprep.subr.mxu0 0.0
  %646 = vmatpush2.msra.mxu0 0.0
  %647 = vmatprep.subr.mxu0 0.0
  %648 = vmatpush2.msra.mxu0 0.0
  %649 = vmatprep.subr.mxu0 0.0
  %650 = vmatpush2.msra.mxu0 0.0
  %651 = vmatprep.subr.mxu0 0.0
  %652 = vmatpush2.msra.mxu0 0.0
  %653 = vmatprep.subr.mxu0 0.0
  %654 = vmatpush2.msra.mxu0 0.0
  %655 = vmatprep.subr.mxu0 0.0
  %656 = vmatpush2.msra.mxu0 0.0
  %657 = vmatprep.subr.mxu0 0.0
  %658 = vmatpush2.msra.mxu0 0.0
  %659 = vmatprep.subr.mxu0 0.0
  %660 = vmatpush2.msra.mxu0 0.0
  %661 = vmatprep.subr.mxu0 0.0
  %662 = vmatpush2.msra.mxu0 0.0
  %663 = vmatprep.mubr.f32.mxu0 0.0
  %664 = vmatmul.mubr.f32.gmra.mxu0 %v518
  %v665 = vpop.f32.mrf.mxu0
  %v666 = vadd.f32 0.0, %v665
  %v667 = vpop.f32.mrf.mxu0
  %v668 = vadd.f32 0.0, %v667
  %669 = vdwg.mxu0
  %v672 = vcombine.high %v425, %v425
  %v674 = vunpack.c.l.s4 1983009808
  %v675 = vunpack.c.0.s8 %v674
  %v676 = vlaneseq
  %v677 = vshrl.u32 %v676, 7
  %v678 = vsub.s32 %v675, %v677
  %v679 = vrot.slane %v425, %v678
  %v681 = vunpack.c.l.s4 1983009808
  %v682 = vunpack.c.0.s8 %v681
  %v683 = vlaneseq
  %v684 = vshrl.u32 %v683, 7
  %v685 = vsub.s32 %v682, %v684
  %v686 = vrot.slane %v672, %v685
  %v687 = vcombine.high %v679, %v679
  %v688 = vcombine.high %v686, %v686
  %v690 = vunpack.c.l.s4 1983009808
  %v691 = vunpack.c.0.s8 %v690
  %v692 = vlaneseq
  %v693 = vshrl.u32 %v692, 7
  %v694 = vsub.s32 %v691, %v693
  %v695 = vrot.slane %v426, %v694
  %696 = vrot.lane.b32.xlu0 %v679, 17
  %v697 = vpop.permute.xlu0 %696
  %698 = vrot.lane.b32.xlu0 %v687, 17
  %v699 = vpop.permute.xlu0 %698
  %700 = vrot.lane.b32.xlu0 %v686, 17
  %v701 = vpop.permute.xlu0 %700
  %702 = vrot.lane.b32.xlu0 %v688, 17
  %v703 = vpop.permute.xlu0 %702
  %704 = vrot.lane.b32.xlu0 %v695, 17
  %v705 = vpop.permute.xlu0 %704
  %vm706 = vcmask 138240
  %v707 = vsel %vm706, %v697, %v699
  %v708 = vsel %vm706, %v699, %v701
  %v709 = vsel %vm706, %v701, %v703
  %v710 = vsel %vm706, %v703, %v705
  %v712 = vsel %vm516, %v427, 0
  %v714 = vsel %vm295, %v707, 0
  %v716 = vsel %vm295, %v708, 0
  %v718 = vsel %vm295, %v709, 0
  %v720 = vsel %vm295, %v710, 0
  %722 = vmatprep.subr.mxu0 0.0
  %723 = vmatpush1.msra.mxu0 0.0
  %724 = vmatprep.subr.mxu0 0.0
  %725 = vmatpush1.msra.mxu0 0.0
  %726 = vmatprep.subr.mxu0 0.0
  %727 = vmatpush1.msra.mxu0 0.0
  %728 = vmatprep.subr.mxu0 0.0
  %729 = vmatpush1.msra.mxu0 0.0
  %730 = vmatprep.subr.mxu0 0.0
  %731 = vmatpush1.msra.mxu0 0.0
  %732 = vmatprep.subr.mxu0 0.0
  %733 = vmatpush1.msra.mxu0 0.0
  %734 = vmatprep.subr.mxu0 0.0
  %735 = vmatpush1.msra.mxu0 0.0
  %736 = vmatprep.subr.mxu0 0.0
  %737 = vmatpush1.msra.mxu0 0.0
  %738 = vmatprep.subr.mxu0 0.0
  %739 = vmatpush1.msra.mxu0 0.0
  %740 = vmatprep.subr.mxu0 0.0
  %741 = vmatpush1.msra.mxu0 0.0
  %742 = vmatprep.subr.mxu0 0.0
  %743 = vmatpush1.msra.mxu0 0.0
  %744 = vmatprep.subr.mxu0 0.0
  %745 = vmatpush1.msra.mxu0 0.0
  %746 = vmatprep.subr.mxu0 0.0
  %747 = vmatpush1.msra.mxu0 0.0
  %748 = vmatprep.subr.mxu0 0.0
  %749 = vmatpush1.msra.mxu0 0.0
  %750 = vmatprep.subr.mxu0 0.0
  %751 = vmatpush1.msra.mxu0 0.0
  %752 = vmatprep.subr.mxu0 %v716
  %753 = vmatpush1.msra.mxu0 %v714
  %754 = vmatprep.subr.mxu0 0.0
  %755 = vmatpush2.msra.mxu0 0.0
  %756 = vmatprep.subr.mxu0 0.0
  %757 = vmatpush2.msra.mxu0 0.0
  %758 = vmatprep.subr.mxu0 0.0
  %759 = vmatpush2.msra.mxu0 0.0
  %760 = vmatprep.subr.mxu0 0.0
  %761 = vmatpush2.msra.mxu0 0.0
  %762 = vmatprep.subr.mxu0 0.0
  %763 = vmatpush2.msra.mxu0 0.0
  %764 = vmatprep.subr.mxu0 0.0
  %765 = vmatpush2.msra.mxu0 0.0
  %766 = vmatprep.subr.mxu0 0.0
  %767 = vmatpush2.msra.mxu0 0.0
  %768 = vmatprep.subr.mxu0 0.0
  %769 = vmatpush2.msra.mxu0 0.0
  %770 = vmatprep.subr.mxu0 0.0
  %771 = vmatpush2.msra.mxu0 0.0
  %772 = vmatprep.subr.mxu0 0.0
  %773 = vmatpush2.msra.mxu0 0.0
  %774 = vmatprep.subr.mxu0 0.0
  %775 = vmatpush2.msra.mxu0 0.0
  %776 = vmatprep.subr.mxu0 0.0
  %777 = vmatpush2.msra.mxu0 0.0
  %778 = vmatprep.subr.mxu0 0.0
  %779 = vmatpush2.msra.mxu0 0.0
  %780 = vmatprep.subr.mxu0 0.0
  %781 = vmatpush2.msra.mxu0 0.0
  %782 = vmatprep.subr.mxu0 0.0
  %783 = vmatpush2.msra.mxu0 0.0
  %784 = vmatprep.subr.mxu0 0.0
  %785 = vmatpush2.msra.mxu0 0.0
  %786 = vmatprep.mubr.f32.mxu0 0.0
  %787 = vmatmul.mubr.f32.gmra.mxu0 %v712
  %v788 = vpop.f32.mrf.mxu0
  %v789 = vadd.f32 %v595, %v788
  %v790 = vpop.f32.mrf.mxu0
  %v791 = vadd.f32 %v597, %v790
  %792 = vdwg.mxu0
  %793 = vmatprep.subr.mxu0 0.0
  %794 = vmatpush1.msra.mxu0 0.0
  %795 = vmatprep.subr.mxu0 0.0
  %796 = vmatpush1.msra.mxu0 0.0
  %797 = vmatprep.subr.mxu0 0.0
  %798 = vmatpush1.msra.mxu0 0.0
  %799 = vmatprep.subr.mxu0 0.0
  %800 = vmatpush1.msra.mxu0 0.0
  %801 = vmatprep.subr.mxu0 0.0
  %802 = vmatpush1.msra.mxu0 0.0
  %803 = vmatprep.subr.mxu0 0.0
  %804 = vmatpush1.msra.mxu0 0.0
  %805 = vmatprep.subr.mxu0 0.0
  %806 = vmatpush1.msra.mxu0 0.0
  %807 = vmatprep.subr.mxu0 0.0
  %808 = vmatpush1.msra.mxu0 0.0
  %809 = vmatprep.subr.mxu0 0.0
  %810 = vmatpush1.msra.mxu0 0.0
  %811 = vmatprep.subr.mxu0 0.0
  %812 = vmatpush1.msra.mxu0 0.0
  %813 = vmatprep.subr.mxu0 0.0
  %814 = vmatpush1.msra.mxu0 0.0
  %815 = vmatprep.subr.mxu0 0.0
  %816 = vmatpush1.msra.mxu0 0.0
  %817 = vmatprep.subr.mxu0 0.0
  %818 = vmatpush1.msra.mxu0 0.0
  %819 = vmatprep.subr.mxu0 0.0
  %820 = vmatpush1.msra.mxu0 0.0
  %821 = vmatprep.subr.mxu0 0.0
  %822 = vmatpush1.msra.mxu0 0.0
  %823 = vmatprep.subr.mxu0 %v720
  %824 = vmatpush1.msra.mxu0 %v718
  %825 = vmatprep.subr.mxu0 0.0
  %826 = vmatpush2.msra.mxu0 0.0
  %827 = vmatprep.subr.mxu0 0.0
  %828 = vmatpush2.msra.mxu0 0.0
  %829 = vmatprep.subr.mxu0 0.0
  %830 = vmatpush2.msra.mxu0 0.0
  %831 = vmatprep.subr.mxu0 0.0
  %832 = vmatpush2.msra.mxu0 0.0
  %833 = vmatprep.subr.mxu0 0.0
  %834 = vmatpush2.msra.mxu0 0.0
  %835 = vmatprep.subr.mxu0 0.0
  %836 = vmatpush2.msra.mxu0 0.0
  %837 = vmatprep.subr.mxu0 0.0
  %838 = vmatpush2.msra.mxu0 0.0
  %839 = vmatprep.subr.mxu0 0.0
  %840 = vmatpush2.msra.mxu0 0.0
  %841 = vmatprep.subr.mxu0 0.0
  %842 = vmatpush2.msra.mxu0 0.0
  %843 = vmatprep.subr.mxu0 0.0
  %844 = vmatpush2.msra.mxu0 0.0
  %845 = vmatprep.subr.mxu0 0.0
  %846 = vmatpush2.msra.mxu0 0.0
  %847 = vmatprep.subr.mxu0 0.0
  %848 = vmatpush2.msra.mxu0 0.0
  %849 = vmatprep.subr.mxu0 0.0
  %850 = vmatpush2.msra.mxu0 0.0
  %851 = vmatprep.subr.mxu0 0.0
  %852 = vmatpush2.msra.mxu0 0.0
  %853 = vmatprep.subr.mxu0 0.0
  %854 = vmatpush2.msra.mxu0 0.0
  %855 = vmatprep.subr.mxu0 0.0
  %856 = vmatpush2.msra.mxu0 0.0
  %857 = vmatprep.mubr.f32.mxu0 0.0
  %858 = vmatmul.mubr.f32.gmra.mxu0 %v712
  %v859 = vpop.f32.mrf.mxu0
  %v860 = vadd.f32 %v666, %v859
  %v861 = vpop.f32.mrf.mxu0
  %v862 = vadd.f32 %v668, %v861
  %863 = vdwg.mxu0
  %v864 = vld [vmem:[#allocation2] sm:$0xff]
  %v865 = vld [vmem:[#allocation2 + $0x8] sm:$0x3]
  %s866 = scalar_lea.vmem %s7, 8
  %v867 = vld [vmem:[%s866] sm:$0xf]
  %v869 = vlaneseq
  %v870 = vshrl.u32 %v869, 7
  %v871 = vsub.s32 0, %v870
  %v872 = vrot.slane %v867, %v871
  %v873 = vlaneseq
  %v874 = vshrl.u32 %v873, 7
  %v875 = vsub.s32 1, %v874
  %v876 = vrot.slane %v867, %v875
  %v877 = vlaneseq
  %v878 = vshrl.u32 %v877, 7
  %v879 = vsub.s32 2, %v878
  %v880 = vrot.slane %v867, %v879
  %v881 = vlaneseq
  %v882 = vshrl.u32 %v881, 7
  %v883 = vsub.s32 3, %v882
  %v884 = vrot.slane %v867, %v883
  %v885 = vcombine.low %v872, %v876
  %v886 = vcombine.low %v880, %v884
  %v888 = vunpack.c.l.s4 1983009808
  %v889 = vunpack.c.0.s8 %v888
  %v890 = vlaneseq
  %v891 = vshrl.u32 %v890, 7
  %v892 = vsub.s32 %v889, %v891
  %v893 = vrot.slane %v885, %v892
  %v895 = vunpack.c.l.s4 1983009808
  %v896 = vunpack.c.0.s8 %v895
  %v897 = vlaneseq
  %v898 = vshrl.u32 %v897, 7
  %v899 = vsub.s32 %v896, %v898
  %v900 = vrot.slane %v886, %v899
  %v901 = vcombine.low %v893, %v900
  %902 = vrot.lane.b32.xlu0 %v901, 113
  %v903 = vpop.permute.xlu0 %902
  %v904 = vrot.slane %v903, 6
  %vm905 = vcmask 924672
  %v906 = vsel %vm905, %v904, %v903
  %v909 = vmul.f32 %v864, %v906
  %v910 = vmul.f32 %v865, %v904
  %s911 = scalar_lea.vmem %s6, 4
  %v912 = vld [vmem:[%s911] sm:$0x3]
  %v915 = vcombine.high %v909, %v909
  %v917 = vunpack.c.l.s4 1983009808
  %v918 = vunpack.c.0.s8 %v917
  %v919 = vlaneseq
  %v920 = vshrl.u32 %v919, 7
  %v921 = vsub.s32 %v918, %v920
  %v922 = vrot.slane %v909, %v921
  %v924 = vunpack.c.l.s4 1983009808
  %v925 = vunpack.c.0.s8 %v924
  %v926 = vlaneseq
  %v927 = vshrl.u32 %v926, 7
  %v928 = vsub.s32 %v925, %v927
  %v929 = vrot.slane %v915, %v928
  %v930 = vcombine.high %v922, %v922
  %v931 = vcombine.high %v929, %v929
  %v933 = vunpack.c.l.s4 1983009808
  %v934 = vunpack.c.0.s8 %v933
  %v935 = vlaneseq
  %v936 = vshrl.u32 %v935, 7
  %v937 = vsub.s32 %v934, %v936
  %v938 = vrot.slane %v910, %v937
  %939 = vrot.lane.b32.xlu0 %v922, 15
  %v940 = vpop.permute.xlu0 %939
  %941 = vrot.lane.b32.xlu0 %v930, 15
  %v942 = vpop.permute.xlu0 %941
  %943 = vrot.lane.b32.xlu0 %v929, 15
  %v944 = vpop.permute.xlu0 %943
  %945 = vrot.lane.b32.xlu0 %v931, 15
  %v946 = vpop.permute.xlu0 %945
  %947 = vrot.lane.b32.xlu0 %v938, 15
  %v948 = vpop.permute.xlu0 %947
  %vm949 = vcmask 121856
  %v950 = vsel %vm949, %v940, %v942
  %v951 = vsel %vm949, %v942, %v944
  %v952 = vsel %vm949, %v944, %v946
  %v953 = vsel %vm949, %v946, %v948
  %v955 = vsel %vm516, %v912, 0
  %v957 = vsel %vm295, %v950, 0
  %v959 = vsel %vm295, %v951, 0
  %v961 = vsel %vm295, %v952, 0
  %v963 = vsel %vm295, %v953, 0
  %965 = vmatprep.subr.mxu0 0.0
  %966 = vmatpush1.msra.mxu0 0.0
  %967 = vmatprep.subr.mxu0 0.0
  %968 = vmatpush1.msra.mxu0 0.0
  %969 = vmatprep.subr.mxu0 0.0
  %970 = vmatpush1.msra.mxu0 0.0
  %971 = vmatprep.subr.mxu0 0.0
  %972 = vmatpush1.msra.mxu0 0.0
  %973 = vmatprep.subr.mxu0 0.0
  %974 = vmatpush1.msra.mxu0 0.0
  %975 = vmatprep.subr.mxu0 0.0
  %976 = vmatpush1.msra.mxu0 0.0
  %977 = vmatprep.subr.mxu0 0.0
  %978 = vmatpush1.msra.mxu0 0.0
  %979 = vmatprep.subr.mxu0 0.0
  %980 = vmatpush1.msra.mxu0 0.0
  %981 = vmatprep.subr.mxu0 0.0
  %982 = vmatpush1.msra.mxu0 0.0
  %983 = vmatprep.subr.mxu0 0.0
  %984 = vmatpush1.msra.mxu0 0.0
  %985 = vmatprep.subr.mxu0 0.0
  %986 = vmatpush1.msra.mxu0 0.0
  %987 = vmatprep.subr.mxu0 0.0
  %988 = vmatpush1.msra.mxu0 0.0
  %989 = vmatprep.subr.mxu0 0.0
  %990 = vmatpush1.msra.mxu0 0.0
  %991 = vmatprep.subr.mxu0 0.0
  %992 = vmatpush1.msra.mxu0 0.0
  %993 = vmatprep.subr.mxu0 0.0
  %994 = vmatpush1.msra.mxu0 0.0
  %995 = vmatprep.subr.mxu0 %v959
  %996 = vmatpush1.msra.mxu0 %v957
  %997 = vmatprep.subr.mxu0 0.0
  %998 = vmatpush2.msra.mxu0 0.0
  %999 = vmatprep.subr.mxu0 0.0
  %1000 = vmatpush2.msra.mxu0 0.0
  %1001 = vmatprep.subr.mxu0 0.0
  %1002 = vmatpush2.msra.mxu0 0.0
  %1003 = vmatprep.subr.mxu0 0.0
  %1004 = vmatpush2.msra.mxu0 0.0
  %1005 = vmatprep.subr.mxu0 0.0
  %1006 = vmatpush2.msra.mxu0 0.0
  %1007 = vmatprep.subr.mxu0 0.0
  %1008 = vmatpush2.msra.mxu0 0.0
  %1009 = vmatprep.subr.mxu0 0.0
  %1010 = vmatpush2.msra.mxu0 0.0
  %1011 = vmatprep.subr.mxu0 0.0
  %1012 = vmatpush2.msra.mxu0 0.0
  %1013 = vmatprep.subr.mxu0 0.0
  %1014 = vmatpush2.msra.mxu0 0.0
  %1015 = vmatprep.subr.mxu0 0.0
  %1016 = vmatpush2.msra.mxu0 0.0
  %1017 = vmatprep.subr.mxu0 0.0
  %1018 = vmatpush2.msra.mxu0 0.0
  %1019 = vmatprep.subr.mxu0 0.0
  %1020 = vmatpush2.msra.mxu0 0.0
  %1021 = vmatprep.subr.mxu0 0.0
  %1022 = vmatpush2.msra.mxu0 0.0
  %1023 = vmatprep.subr.mxu0 0.0
  %1024 = vmatpush2.msra.mxu0 0.0
  %1025 = vmatprep.subr.mxu0 0.0
  %1026 = vmatpush2.msra.mxu0 0.0
  %1027 = vmatprep.subr.mxu0 0.0
  %1028 = vmatpush2.msra.mxu0 0.0
  %1029 = vmatprep.mubr.f32.mxu0 0.0
  %1030 = vmatmul.mubr.f32.gmra.mxu0 %v955
  %v1031 = vpop.f32.mrf.mxu0
  %v1032 = vadd.f32 0.0, %v1031
  %v1033 = vpop.f32.mrf.mxu0
  %v1034 = vadd.f32 0.0, %v1033
  %1035 = vdwg.mxu0
  %1036 = vmatprep.subr.mxu0 0.0
  %1037 = vmatpush1.msra.mxu0 0.0
  %1038 = vmatprep.subr.mxu0 0.0
  %1039 = vmatpush1.msra.mxu0 0.0
  %1040 = vmatprep.subr.mxu0 0.0
  %1041 = vmatpush1.msra.mxu0 0.0
  %1042 = vmatprep.subr.mxu0 0.0
  %1043 = vmatpush1.msra.mxu0 0.0
  %1044 = vmatprep.subr.mxu0 0.0
  %1045 = vmatpush1.msra.mxu0 0.0
  %1046 = vmatprep.subr.mxu0 0.0
  %1047 = vmatpush1.msra.mxu0 0.0
  %1048 = vmatprep.subr.mxu0 0.0
  %1049 = vmatpush1.msra.mxu0 0.0
  %1050 = vmatprep.subr.mxu0 0.0
  %1051 = vmatpush1.msra.mxu0 0.0
  %1052 = vmatprep.subr.mxu0 0.0
  %1053 = vmatpush1.msra.mxu0 0.0
  %1054 = vmatprep.subr.mxu0 0.0
  %1055 = vmatpush1.msra.mxu0 0.0
  %1056 = vmatprep.subr.mxu0 0.0
  %1057 = vmatpush1.msra.mxu0 0.0
  %1058 = vmatprep.subr.mxu0 0.0
  %1059 = vmatpush1.msra.mxu0 0.0
  %1060 = vmatprep.subr.mxu0 0.0
  %1061 = vmatpush1.msra.mxu0 0.0
  %1062 = vmatprep.subr.mxu0 0.0
  %1063 = vmatpush1.msra.mxu0 0.0
  %1064 = vmatprep.subr.mxu0 0.0
  %1065 = vmatpush1.msra.mxu0 0.0
  %1066 = vmatprep.subr.mxu0 %v963
  %1067 = vmatpush1.msra.mxu0 %v961
  %1068 = vmatprep.subr.mxu0 0.0
  %1069 = vmatpush2.msra.mxu0 0.0
  %1070 = vmatprep.subr.mxu0 0.0
  %1071 = vmatpush2.msra.mxu0 0.0
  %1072 = vmatprep.subr.mxu0 0.0
  %1073 = vmatpush2.msra.mxu0 0.0
  %1074 = vmatprep.subr.mxu0 0.0
  %1075 = vmatpush2.msra.mxu0 0.0
  %1076 = vmatprep.subr.mxu0 0.0
  %1077 = vmatpush2.msra.mxu0 0.0
  %1078 = vmatprep.subr.mxu0 0.0
  %1079 = vmatpush2.msra.mxu0 0.0
  %1080 = vmatprep.subr.mxu0 0.0
  %1081 = vmatpush2.msra.mxu0 0.0
  %1082 = vmatprep.subr.mxu0 0.0
  %1083 = vmatpush2.msra.mxu0 0.0
  %1084 = vmatprep.subr.mxu0 0.0
  %1085 = vmatpush2.msra.mxu0 0.0
  %1086 = vmatprep.subr.mxu0 0.0
  %1087 = vmatpush2.msra.mxu0 0.0
  %1088 = vmatprep.subr.mxu0 0.0
  %1089 = vmatpush2.msra.mxu0 0.0
  %1090 = vmatprep.subr.mxu0 0.0
  %1091 = vmatpush2.msra.mxu0 0.0
  %1092 = vmatprep.subr.mxu0 0.0
  %1093 = vmatpush2.msra.mxu0 0.0
  %1094 = vmatprep.subr.mxu0 0.0
  %1095 = vmatpush2.msra.mxu0 0.0
  %1096 = vmatprep.subr.mxu0 0.0
  %1097 = vmatpush2.msra.mxu0 0.0
  %1098 = vmatprep.subr.mxu0 0.0
  %1099 = vmatpush2.msra.mxu0 0.0
  %1100 = vmatprep.mubr.f32.mxu0 0.0
  %1101 = vmatmul.mubr.f32.gmra.mxu0 %v955
  %v1102 = vpop.f32.mrf.mxu0
  %v1103 = vadd.f32 0.0, %v1102
  %v1104 = vpop.f32.mrf.mxu0
  %v1105 = vadd.f32 0.0, %v1104
  %1106 = vdwg.mxu0
  %v1107 = vadd.f32 %v789, %v1032
  %v1108 = vadd.f32 %v791, %v1034
  %v1109 = vadd.f32 %v860, %v1103
  %v1110 = vadd.f32 %v862, %v1105
  %v1111 = vld [vmem:[#allocation2] sm:$0xff]
  %v1112 = vld [vmem:[#allocation2 + $0x8] sm:$0x3]
  %s1113 = scalar_lea.vmem %s7, 12
  %v1114 = vld [vmem:[%s1113] sm:$0xf]
  %v1116 = vlaneseq
  %v1117 = vshrl.u32 %v1116, 7
  %v1118 = vsub.s32 0, %v1117
  %v1119 = vrot.slane %v1114, %v1118
  %v1120 = vlaneseq
  %v1121 = vshrl.u32 %v1120, 7
  %v1122 = vsub.s32 1, %v1121
  %v1123 = vrot.slane %v1114, %v1122
  %v1124 = vlaneseq
  %v1125 = vshrl.u32 %v1124, 7
  %v1126 = vsub.s32 2, %v1125
  %v1127 = vrot.slane %v1114, %v1126
  %v1128 = vlaneseq
  %v1129 = vshrl.u32 %v1128, 7
  %v1130 = vsub.s32 3, %v1129
  %v1131 = vrot.slane %v1114, %v1130
  %v1132 = vcombine.low %v1119, %v1123
  %v1133 = vcombine.low %v1127, %v1131
  %v1135 = vunpack.c.l.s4 1983009808
  %v1136 = vunpack.c.0.s8 %v1135
  %v1137 = vlaneseq
  %v1138 = vshrl.u32 %v1137, 7
  %v1139 = vsub.s32 %v1136, %v1138
  %v1140 = vrot.slane %v1132, %v1139
  %v1142 = vunpack.c.l.s4 1983009808
  %v1143 = vunpack.c.0.s8 %v1142
  %v1144 = vlaneseq
  %v1145 = vshrl.u32 %v1144, 7
  %v1146 = vsub.s32 %v1143, %v1145
  %v1147 = vrot.slane %v1133, %v1146
  %v1148 = vcombine.low %v1140, %v1147
  %1149 = vrot.lane.b32.xlu0 %v1148, 127
  %v1150 = vpop.permute.xlu0 %1149
  %v1151 = vrot.slane %v1150, 6
  %vm1152 = vcmask 1039360
  %v1153 = vsel %vm1152, %v1151, %v1150
  %v1156 = vmul.f32 %v1111, %v1153
  %v1157 = vmul.f32 %v1112, %v1151
  %s1158 = scalar_lea.vmem %s6, 6
  %v1159 = vld [vmem:[%s1158] sm:$0x3]
  %v1162 = vcombine.high %v1156, %v1156
  %v1164 = vunpack.c.l.s4 1983009808
  %v1165 = vunpack.c.0.s8 %v1164
  %v1166 = vlaneseq
  %v1167 = vshrl.u32 %v1166, 7
  %v1168 = vsub.s32 %v1165, %v1167
  %v1169 = vrot.slane %v1156, %v1168
  %v1171 = vunpack.c.l.s4 1983009808
  %v1172 = vunpack.c.0.s8 %v1171
  %v1173 = vlaneseq
  %v1174 = vshrl.u32 %v1173, 7
  %v1175 = vsub.s32 %v1172, %v1174
  %v1176 = vrot.slane %v1162, %v1175
  %v1177 = vcombine.high %v1169, %v1169
  %v1178 = vcombine.high %v1176, %v1176
  %v1180 = vunpack.c.l.s4 1983009808
  %v1181 = vunpack.c.0.s8 %v1180
  %v1182 = vlaneseq
  %v1183 = vshrl.u32 %v1182, 7
  %v1184 = vsub.s32 %v1181, %v1183
  %v1185 = vrot.slane %v1157, %v1184
  %1186 = vrot.lane.b32.xlu0 %v1169, 1
  %v1187 = vpop.permute.xlu0 %1186
  %1188 = vrot.lane.b32.xlu0 %v1177, 1
  %v1189 = vpop.permute.xlu0 %1188
  %1190 = vrot.lane.b32.xlu0 %v1176, 1
  %v1191 = vpop.permute.xlu0 %1190
  %1192 = vrot.lane.b32.xlu0 %v1178, 1
  %v1193 = vpop.permute.xlu0 %1192
  %1194 = vrot.lane.b32.xlu0 %v1185, 1
  %v1195 = vpop.permute.xlu0 %1194
  %vm1196 = vcmask 7168
  %v1197 = vsel %vm1196, %v1187, %v1189
  %v1198 = vsel %vm1196, %v1189, %v1191
  %v1199 = vsel %vm1196, %v1191, %v1193
  %v1200 = vsel %vm1196, %v1193, %v1195
  %v1202 = vsel %vm516, %v1159, 0
  %v1204 = vsel %vm295, %v1197, 0
  %v1206 = vsel %vm295, %v1198, 0
  %v1208 = vsel %vm295, %v1199, 0
  %v1210 = vsel %vm295, %v1200, 0
  %1212 = vmatprep.subr.mxu0 0.0
  %1213 = vmatpush1.msra.mxu0 0.0
  %1214 = vmatprep.subr.mxu0 0.0
  %1215 = vmatpush1.msra.mxu0 0.0
  %1216 = vmatprep.subr.mxu0 0.0
  %1217 = vmatpush1.msra.mxu0 0.0
  %1218 = vmatprep.subr.mxu0 0.0
  %1219 = vmatpush1.msra.mxu0 0.0
  %1220 = vmatprep.subr.mxu0 0.0
  %1221 = vmatpush1.msra.mxu0 0.0
  %1222 = vmatprep.subr.mxu0 0.0
  %1223 = vmatpush1.msra.mxu0 0.0
  %1224 = vmatprep.subr.mxu0 0.0
  %1225 = vmatpush1.msra.mxu0 0.0
  %1226 = vmatprep.subr.mxu0 0.0
  %1227 = vmatpush1.msra.mxu0 0.0
  %1228 = vmatprep.subr.mxu0 0.0
  %1229 = vmatpush1.msra.mxu0 0.0
  %1230 = vmatprep.subr.mxu0 0.0
  %1231 = vmatpush1.msra.mxu0 0.0
  %1232 = vmatprep.subr.mxu0 0.0
  %1233 = vmatpush1.msra.mxu0 0.0
  %1234 = vmatprep.subr.mxu0 0.0
  %1235 = vmatpush1.msra.mxu0 0.0
  %1236 = vmatprep.subr.mxu0 0.0
  %1237 = vmatpush1.msra.mxu0 0.0
  %1238 = vmatprep.subr.mxu0 0.0
  %1239 = vmatpush1.msra.mxu0 0.0
  %1240 = vmatprep.subr.mxu0 0.0
  %1241 = vmatpush1.msra.mxu0 0.0
  %1242 = vmatprep.subr.mxu0 %v1206
  %1243 = vmatpush1.msra.mxu0 %v1204
  %1244 = vmatprep.subr.mxu0 0.0
  %1245 = vmatpush2.msra.mxu0 0.0
  %1246 = vmatprep.subr.mxu0 0.0
  %1247 = vmatpush2.msra.mxu0 0.0
  %1248 = vmatprep.subr.mxu0 0.0
  %1249 = vmatpush2.msra.mxu0 0.0
  %1250 = vmatprep.subr.mxu0 0.0
  %1251 = vmatpush2.msra.mxu0 0.0
  %1252 = vmatprep.subr.mxu0 0.0
  %1253 = vmatpush2.msra.mxu0 0.0
  %1254 = vmatprep.subr.mxu0 0.0
  %1255 = vmatpush2.msra.mxu0 0.0
  %1256 = vmatprep.subr.mxu0 0.0
  %1257 = vmatpush2.msra.mxu0 0.0
  %1258 = vmatprep.subr.mxu0 0.0
  %1259 = vmatpush2.msra.mxu0 0.0
  %1260 = vmatprep.subr.mxu0 0.0
  %1261 = vmatpush2.msra.mxu0 0.0
  %1262 = vmatprep.subr.mxu0 0.0
  %1263 = vmatpush2.msra.mxu0 0.0
  %1264 = vmatprep.subr.mxu0 0.0
  %1265 = vmatpush2.msra.mxu0 0.0
  %1266 = vmatprep.subr.mxu0 0.0
  %1267 = vmatpush2.msra.mxu0 0.0
  %1268 = vmatprep.subr.mxu0 0.0
  %1269 = vmatpush2.msra.mxu0 0.0
  %1270 = vmatprep.subr.mxu0 0.0
  %1271 = vmatpush2.msra.mxu0 0.0
  %1272 = vmatprep.subr.mxu0 0.0
  %1273 = vmatpush2.msra.mxu0 0.0
  %1274 = vmatprep.subr.mxu0 0.0
  %1275 = vmatpush2.msra.mxu0 0.0
  %1276 = vmatprep.mubr.f32.mxu0 0.0
  %1277 = vmatmul.mubr.f32.gmra.mxu0 %v1202
  %v1278 = vpop.f32.mrf.mxu0
  %v1279 = vadd.f32 0.0, %v1278
  %v1280 = vpop.f32.mrf.mxu0
  %v1281 = vadd.f32 0.0, %v1280
  %1282 = vdwg.mxu0
  %1283 = vmatprep.subr.mxu0 0.0
  %1284 = vmatpush1.msra.mxu0 0.0
  %1285 = vmatprep.subr.mxu0 0.0
  %1286 = vmatpush1.msra.mxu0 0.0
  %1287 = vmatprep.subr.mxu0 0.0
  %1288 = vmatpush1.msra.mxu0 0.0
  %1289 = vmatprep.subr.mxu0 0.0
  %1290 = vmatpush1.msra.mxu0 0.0
  %1291 = vmatprep.subr.mxu0 0.0
  %1292 = vmatpush1.msra.mxu0 0.0
  %1293 = vmatprep.subr.mxu0 0.0
  %1294 = vmatpush1.msra.mxu0 0.0
  %1295 = vmatprep.subr.mxu0 0.0
  %1296 = vmatpush1.msra.mxu0 0.0
  %1297 = vmatprep.subr.mxu0 0.0
  %1298 = vmatpush1.msra.mxu0 0.0
  %1299 = vmatprep.subr.mxu0 0.0
  %1300 = vmatpush1.msra.mxu0 0.0
  %1301 = vmatprep.subr.mxu0 0.0
  %1302 = vmatpush1.msra.mxu0 0.0
  %1303 = vmatprep.subr.mxu0 0.0
  %1304 = vmatpush1.msra.mxu0 0.0
  %1305 = vmatprep.subr.mxu0 0.0
  %1306 = vmatpush1.msra.mxu0 0.0
  %1307 = vmatprep.subr.mxu0 0.0
  %1308 = vmatpush1.msra.mxu0 0.0
  %1309 = vmatprep.subr.mxu0 0.0
  %1310 = vmatpush1.msra.mxu0 0.0
  %1311 = vmatprep.subr.mxu0 0.0
  %1312 = vmatpush1.msra.mxu0 0.0
  %1313 = vmatprep.subr.mxu0 %v1210
  %1314 = vmatpush1.msra.mxu0 %v1208
  %1315 = vmatprep.subr.mxu0 0.0
  %1316 = vmatpush2.msra.mxu0 0.0
  %1317 = vmatprep.subr.mxu0 0.0
  %1318 = vmatpush2.msra.mxu0 0.0
  %1319 = vmatprep.subr.mxu0 0.0
  %1320 = vmatpush2.msra.mxu0 0.0
  %1321 = vmatprep.subr.mxu0 0.0
  %1322 = vmatpush2.msra.mxu0 0.0
  %1323 = vmatprep.subr.mxu0 0.0
  %1324 = vmatpush2.msra.mxu0 0.0
  %1325 = vmatprep.subr.mxu0 0.0
  %1326 = vmatpush2.msra.mxu0 0.0
  %1327 = vmatprep.subr.mxu0 0.0
  %1328 = vmatpush2.msra.mxu0 0.0
  %1329 = vmatprep.subr.mxu0 0.0
  %1330 = vmatpush2.msra.mxu0 0.0
  %1331 = vmatprep.subr.mxu0 0.0
  %1332 = vmatpush2.msra.mxu0 0.0
  %1333 = vmatprep.subr.mxu0 0.0
  %1334 = vmatpush2.msra.mxu0 0.0
  %1335 = vmatprep.subr.mxu0 0.0
  %1336 = vmatpush2.msra.mxu0 0.0
  %1337 = vmatprep.subr.mxu0 0.0
  %1338 = vmatpush2.msra.mxu0 0.0
  %1339 = vmatprep.subr.mxu0 0.0
  %1340 = vmatpush2.msra.mxu0 0.0
  %1341 = vmatprep.subr.mxu0 0.0
  %1342 = vmatpush2.msra.mxu0 0.0
  %1343 = vmatprep.subr.mxu0 0.0
  %1344 = vmatpush2.msra.mxu0 0.0
  %1345 = vmatprep.subr.mxu0 0.0
  %1346 = vmatpush2.msra.mxu0 0.0
  %1347 = vmatprep.mubr.f32.mxu0 0.0
  %1348 = vmatmul.mubr.f32.gmra.mxu0 %v1202
  %v1349 = vpop.f32.mrf.mxu0
  %v1350 = vadd.f32 0.0, %v1349
  %v1351 = vpop.f32.mrf.mxu0
  %v1352 = vadd.f32 0.0, %v1351
  %1353 = vdwg.mxu0
  %v1354 = vadd.f32 %v1107, %v1279
  %v1355 = vadd.f32 %v1108, %v1281
  %v1356 = vadd.f32 %v1109, %v1350
  %v1357 = vadd.f32 %v1110, %v1352
  %v1358 = vld [vmem:[#allocation2 + $0x2] sm:$0xff]
  %s1359 = scalar_lea.vmem %s7, 16
  %v1360 = vld [vmem:[%s1359] sm:$0xf]
  %v1362 = vlaneseq
  %v1363 = vshrl.u32 %v1362, 7
  %v1364 = vsub.s32 0, %v1363
  %v1365 = vrot.slane %v1360, %v1364
  %v1366 = vlaneseq
  %v1367 = vshrl.u32 %v1366, 7
  %v1368 = vsub.s32 1, %v1367
  %v1369 = vrot.slane %v1360, %v1368
  %v1370 = vlaneseq
  %v1371 = vshrl.u32 %v1370, 7
  %v1372 = vsub.s32 2, %v1371
  %v1373 = vrot.slane %v1360, %v1372
  %v1374 = vlaneseq
  %v1375 = vshrl.u32 %v1374, 7
  %v1376 = vsub.s32 3, %v1375
  %v1377 = vrot.slane %v1360, %v1376
  %v1378 = vcombine.low %v1365, %v1369
  %v1379 = vcombine.low %v1373, %v1377
  %v1381 = vunpack.c.l.s4 1983009808
  %v1382 = vunpack.c.0.s8 %v1381
  %v1383 = vlaneseq
  %v1384 = vshrl.u32 %v1383, 7
  %v1385 = vsub.s32 %v1382, %v1384
  %v1386 = vrot.slane %v1378, %v1385
  %v1388 = vunpack.c.l.s4 1983009808
  %v1389 = vunpack.c.0.s8 %v1388
  %v1390 = vlaneseq
  %v1391 = vshrl.u32 %v1390, 7
  %v1392 = vsub.s32 %v1389, %v1391
  %v1393 = vrot.slane %v1379, %v1392
  %v1394 = vcombine.low %v1386, %v1393
  %v1396 = vmul.f32 %v1358, %v1394
  %s1397 = scalar_lea.vmem %s6, 8
  %v1398 = vld [vmem:[%s1397] sm:$0x3]
  %v1400 = vcombine.high %v1396, %v1396
  %v1402 = vunpack.c.l.s4 1983009808
  %v1403 = vunpack.c.0.s8 %v1402
  %v1404 = vlaneseq
  %v1405 = vshrl.u32 %v1404, 7
  %v1406 = vsub.s32 %v1403, %v1405
  %v1407 = vrot.slane %v1396, %v1406
  %v1409 = vunpack.c.l.s4 1983009808
  %v1410 = vunpack.c.0.s8 %v1409
  %v1411 = vlaneseq
  %v1412 = vshrl.u32 %v1411, 7
  %v1413 = vsub.s32 %v1410, %v1412
  %v1414 = vrot.slane %v1400, %v1413
  %v1415 = vcombine.high %v1407, %v1407
  %v1416 = vcombine.high %v1414, %v1414
  %v1418 = vsel %vm516, %v1398, 0
  %v1420 = vsel %vm295, %v1407, 0
  %v1422 = vsel %vm295, %v1415, 0
  %v1424 = vsel %vm295, %v1414, 0
  %v1426 = vsel %vm295, %v1416, 0
  %1428 = vmatprep.subr.mxu0 0.0
  %1429 = vmatpush1.msra.mxu0 0.0
  %1430 = vmatprep.subr.mxu0 0.0
  %1431 = vmatpush1.msra.mxu0 0.0
  %1432 = vmatprep.subr.mxu0 0.0
  %1433 = vmatpush1.msra.mxu0 0.0
  %1434 = vmatprep.subr.mxu0 0.0
  %1435 = vmatpush1.msra.mxu0 0.0
  %1436 = vmatprep.subr.mxu0 0.0
  %1437 = vmatpush1.msra.mxu0 0.0
  %1438 = vmatprep.subr.mxu0 0.0
  %1439 = vmatpush1.msra.mxu0 0.0
  %1440 = vmatprep.subr.mxu0 0.0
  %1441 = vmatpush1.msra.mxu0 0.0
  %1442 = vmatprep.subr.mxu0 0.0
  %1443 = vmatpush1.msra.mxu0 0.0
  %1444 = vmatprep.subr.mxu0 0.0
  %1445 = vmatpush1.msra.mxu0 0.0
  %1446 = vmatprep.subr.mxu0 0.0
  %1447 = vmatpush1.msra.mxu0 0.0
  %1448 = vmatprep.subr.mxu0 0.0
  %1449 = vmatpush1.msra.mxu0 0.0
  %1450 = vmatprep.subr.mxu0 0.0
  %1451 = vmatpush1.msra.mxu0 0.0
  %1452 = vmatprep.subr.mxu0 0.0
  %1453 = vmatpush1.msra.mxu0 0.0
  %1454 = vmatprep.subr.mxu0 0.0
  %1455 = vmatpush1.msra.mxu0 0.0
  %1456 = vmatprep.subr.mxu0 0.0
  %1457 = vmatpush1.msra.mxu0 0.0
  %1458 = vmatprep.subr.mxu0 %v1422
  %1459 = vmatpush1.msra.mxu0 %v1420
  %1460 = vmatprep.subr.mxu0 0.0
  %1461 = vmatpush2.msra.mxu0 0.0
  %1462 = vmatprep.subr.mxu0 0.0
  %1463 = vmatpush2.msra.mxu0 0.0
  %1464 = vmatprep.subr.mxu0 0.0
  %1465 = vmatpush2.msra.mxu0 0.0
  %1466 = vmatprep.subr.mxu0 0.0
  %1467 = vmatpush2.msra.mxu0 0.0
  %1468 = vmatprep.subr.mxu0 0.0
  %1469 = vmatpush2.msra.mxu0 0.0
  %1470 = vmatprep.subr.mxu0 0.0
  %1471 = vmatpush2.msra.mxu0 0.0
  %1472 = vmatprep.subr.mxu0 0.0
  %1473 = vmatpush2.msra.mxu0 0.0
  %1474 = vmatprep.subr.mxu0 0.0
  %1475 = vmatpush2.msra.mxu0 0.0
  %1476 = vmatprep.subr.mxu0 0.0
  %1477 = vmatpush2.msra.mxu0 0.0
  %1478 = vmatprep.subr.mxu0 0.0
  %1479 = vmatpush2.msra.mxu0 0.0
  %1480 = vmatprep.subr.mxu0 0.0
  %1481 = vmatpush2.msra.mxu0 0.0
  %1482 = vmatprep.subr.mxu0 0.0
  %1483 = vmatpush2.msra.mxu0 0.0
  %1484 = vmatprep.subr.mxu0 0.0
  %1485 = vmatpush2.msra.mxu0 0.0
  %1486 = vmatprep.subr.mxu0 0.0
  %1487 = vmatpush2.msra.mxu0 0.0
  %1488 = vmatprep.subr.mxu0 0.0
  %1489 = vmatpush2.msra.mxu0 0.0
  %1490 = vmatprep.subr.mxu0 0.0
  %1491 = vmatpush2.msra.mxu0 0.0
  %1492 = vmatprep.mubr.f32.mxu0 0.0
  %1493 = vmatmul.mubr.f32.gmra.mxu0 %v1418
  %v1494 = vpop.f32.mrf.mxu0
  %v1495 = vadd.f32 0.0, %v1494
  %v1496 = vpop.f32.mrf.mxu0
  %v1497 = vadd.f32 0.0, %v1496
  %1498 = vdwg.mxu0
  %1499 = vmatprep.subr.mxu0 0.0
  %1500 = vmatpush1.msra.mxu0 0.0
  %1501 = vmatprep.subr.mxu0 0.0
  %1502 = vmatpush1.msra.mxu0 0.0
  %1503 = vmatprep.subr.mxu0 0.0
  %1504 = vmatpush1.msra.mxu0 0.0
  %1505 = vmatprep.subr.mxu0 0.0
  %1506 = vmatpush1.msra.mxu0 0.0
  %1507 = vmatprep.subr.mxu0 0.0
  %1508 = vmatpush1.msra.mxu0 0.0
  %1509 = vmatprep.subr.mxu0 0.0
  %1510 = vmatpush1.msra.mxu0 0.0
  %1511 = vmatprep.subr.mxu0 0.0
  %1512 = vmatpush1.msra.mxu0 0.0
  %1513 = vmatprep.subr.mxu0 0.0
  %1514 = vmatpush1.msra.mxu0 0.0
  %1515 = vmatprep.subr.mxu0 0.0
  %1516 = vmatpush1.msra.mxu0 0.0
  %1517 = vmatprep.subr.mxu0 0.0
  %1518 = vmatpush1.msra.mxu0 0.0
  %1519 = vmatprep.subr.mxu0 0.0
  %1520 = vmatpush1.msra.mxu0 0.0
  %1521 = vmatprep.subr.mxu0 0.0
  %1522 = vmatpush1.msra.mxu0 0.0
  %1523 = vmatprep.subr.mxu0 0.0
  %1524 = vmatpush1.msra.mxu0 0.0
  %1525 = vmatprep.subr.mxu0 0.0
  %1526 = vmatpush1.msra.mxu0 0.0
  %1527 = vmatprep.subr.mxu0 0.0
  %1528 = vmatpush1.msra.mxu0 0.0
  %1529 = vmatprep.subr.mxu0 %v1426
  %1530 = vmatpush1.msra.mxu0 %v1424
  %1531 = vmatprep.subr.mxu0 0.0
  %1532 = vmatpush2.msra.mxu0 0.0
  %1533 = vmatprep.subr.mxu0 0.0
  %1534 = vmatpush2.msra.mxu0 0.0
  %1535 = vmatprep.subr.mxu0 0.0
  %1536 = vmatpush2.msra.mxu0 0.0
  %1537 = vmatprep.subr.mxu0 0.0
  %1538 = vmatpush2.msra.mxu0 0.0
  %1539 = vmatprep.subr.mxu0 0.0
  %1540 = vmatpush2.msra.mxu0 0.0
  %1541 = vmatprep.subr.mxu0 0.0
  %1542 = vmatpush2.msra.mxu0 0.0
  %1543 = vmatprep.subr.mxu0 0.0
  %1544 = vmatpush2.msra.mxu0 0.0
  %1545 = vmatprep.subr.mxu0 0.0
  %1546 = vmatpush2.msra.mxu0 0.0
  %1547 = vmatprep.subr.mxu0 0.0
  %1548 = vmatpush2.msra.mxu0 0.0
  %1549 = vmatprep.subr.mxu0 0.0
  %1550 = vmatpush2.msra.mxu0 0.0
  %1551 = vmatprep.subr.mxu0 0.0
  %1552 = vmatpush2.msra.mxu0 0.0
  %1553 = vmatprep.subr.mxu0 0.0
  %1554 = vmatpush2.msra.mxu0 0.0
  %1555 = vmatprep.subr.mxu0 0.0
  %1556 = vmatpush2.msra.mxu0 0.0
  %1557 = vmatprep.subr.mxu0 0.0
  %1558 = vmatpush2.msra.mxu0 0.0
  %1559 = vmatprep.subr.mxu0 0.0
  %1560 = vmatpush2.msra.mxu0 0.0
  %1561 = vmatprep.subr.mxu0 0.0
  %1562 = vmatpush2.msra.mxu0 0.0
  %1563 = vmatprep.mubr.f32.mxu0 0.0
  %1564 = vmatmul.mubr.f32.gmra.mxu0 %v1418
  %v1565 = vpop.f32.mrf.mxu0
  %v1566 = vadd.f32 0.0, %v1565
  %v1567 = vpop.f32.mrf.mxu0
  %v1568 = vadd.f32 0.0, %v1567
  %1569 = vdwg.mxu0
  %v1570 = vadd.f32 %v1354, %v1495
  %v1571 = vadd.f32 %v1355, %v1497
  %v1572 = vadd.f32 %v1356, %v1566
  %v1573 = vadd.f32 %v1357, %v1568
  %v1574 = vld [vmem:[#allocation2 + $0x2] sm:$0xff]
  %v1575 = vld [vmem:[#allocation2 + $0xa] sm:$0x3]
  %s1576 = scalar_lea.vmem %s7, 20
  %v1577 = vld [vmem:[%s1576] sm:$0xf]
  %v1579 = vlaneseq
  %v1580 = vshrl.u32 %v1579, 7
  %v1581 = vsub.s32 0, %v1580
  %v1582 = vrot.slane %v1577, %v1581
  %v1583 = vlaneseq
  %v1584 = vshrl.u32 %v1583, 7
  %v1585 = vsub.s32 1, %v1584
  %v1586 = vrot.slane %v1577, %v1585
  %v1587 = vlaneseq
  %v1588 = vshrl.u32 %v1587, 7
  %v1589 = vsub.s32 2, %v1588
  %v1590 = vrot.slane %v1577, %v1589
  %v1591 = vlaneseq
  %v1592 = vshrl.u32 %v1591, 7
  %v1593 = vsub.s32 3, %v1592
  %v1594 = vrot.slane %v1577, %v1593
  %v1595 = vcombine.low %v1582, %v1586
  %v1596 = vcombine.low %v1590, %v1594
  %v1598 = vunpack.c.l.s4 1983009808
  %v1599 = vunpack.c.0.s8 %v1598
  %v1600 = vlaneseq
  %v1601 = vshrl.u32 %v1600, 7
  %v1602 = vsub.s32 %v1599, %v1601
  %v1603 = vrot.slane %v1595, %v1602
  %v1605 = vunpack.c.l.s4 1983009808
  %v1606 = vunpack.c.0.s8 %v1605
  %v1607 = vlaneseq
  %v1608 = vshrl.u32 %v1607, 7
  %v1609 = vsub.s32 %v1606, %v1608
  %v1610 = vrot.slane %v1596, %v1609
  %v1611 = vcombine.low %v1603, %v1610
  %1612 = vrot.lane.b32.xlu0 %v1611, 1
  %v1613 = vpop.permute.xlu0 %1612
  %v1614 = vrot.slane %v1613, 6
  %v1615 = vsel %vm1196, %v1614, %v1613
  %v1618 = vmul.f32 %v1574, %v1615
  %v1619 = vmul.f32 %v1575, %v1614
  %s1620 = scalar_lea.vmem %s6, 10
  %v1621 = vld [vmem:[%s1620] sm:$0x3]
  %v1624 = vcombine.high %v1618, %v1618
  %v1626 = vunpack.c.l.s4 1983009808
  %v1627 = vunpack.c.0.s8 %v1626
  %v1628 = vlaneseq
  %v1629 = vshrl.u32 %v1628, 7
  %v1630 = vsub.s32 %v1627, %v1629
  %v1631 = vrot.slane %v1618, %v1630
  %v1633 = vunpack.c.l.s4 1983009808
  %v1634 = vunpack.c.0.s8 %v1633
  %v1635 = vlaneseq
  %v1636 = vshrl.u32 %v1635, 7
  %v1637 = vsub.s32 %v1634, %v1636
  %v1638 = vrot.slane %v1624, %v1637
  %v1639 = vcombine.high %v1631, %v1631
  %v1640 = vcombine.high %v1638, %v1638
  %v1642 = vunpack.c.l.s4 1983009808
  %v1643 = vunpack.c.0.s8 %v1642
  %v1644 = vlaneseq
  %v1645 = vshrl.u32 %v1644, 7
  %v1646 = vsub.s32 %v1643, %v1645
  %v1647 = vrot.slane %v1619, %v1646
  %1648 = vrot.lane.b32.xlu0 %v1631, 127
  %v1649 = vpop.permute.xlu0 %1648
  %1650 = vrot.lane.b32.xlu0 %v1639, 127
  %v1651 = vpop.permute.xlu0 %1650
  %1652 = vrot.lane.b32.xlu0 %v1638, 127
  %v1653 = vpop.permute.xlu0 %1652
  %1654 = vrot.lane.b32.xlu0 %v1640, 127
  %v1655 = vpop.permute.xlu0 %1654
  %1656 = vrot.lane.b32.xlu0 %v1647, 127
  %v1657 = vpop.permute.xlu0 %1656
  %v1658 = vsel %vm1152, %v1649, %v1651
  %v1659 = vsel %vm1152, %v1651, %v1653
  %v1660 = vsel %vm1152, %v1653, %v1655
  %v1661 = vsel %vm1152, %v1655, %v1657
  %v1663 = vsel %vm516, %v1621, 0
  %v1665 = vsel %vm295, %v1658, 0
  %v1667 = vsel %vm295, %v1659, 0
  %v1669 = vsel %vm295, %v1660, 0
  %v1671 = vsel %vm295, %v1661, 0
  %1673 = vmatprep.subr.mxu0 0.0
  %1674 = vmatpush1.msra.mxu0 0.0
  %1675 = vmatprep.subr.mxu0 0.0
  %1676 = vmatpush1.msra.mxu0 0.0
  %1677 = vmatprep.subr.mxu0 0.0
  %1678 = vmatpush1.msra.mxu0 0.0
  %1679 = vmatprep.subr.mxu0 0.0
  %1680 = vmatpush1.msra.mxu0 0.0
  %1681 = vmatprep.subr.mxu0 0.0
  %1682 = vmatpush1.msra.mxu0 0.0
  %1683 = vmatprep.subr.mxu0 0.0
  %1684 = vmatpush1.msra.mxu0 0.0
  %1685 = vmatprep.subr.mxu0 0.0
  %1686 = vmatpush1.msra.mxu0 0.0
  %1687 = vmatprep.subr.mxu0 0.0
  %1688 = vmatpush1.msra.mxu0 0.0
  %1689 = vmatprep.subr.mxu0 0.0
  %1690 = vmatpush1.msra.mxu0 0.0
  %1691 = vmatprep.subr.mxu0 0.0
  %1692 = vmatpush1.msra.mxu0 0.0
  %1693 = vmatprep.subr.mxu0 0.0
  %1694 = vmatpush1.msra.mxu0 0.0
  %1695 = vmatprep.subr.mxu0 0.0
  %1696 = vmatpush1.msra.mxu0 0.0
  %1697 = vmatprep.subr.mxu0 0.0
  %1698 = vmatpush1.msra.mxu0 0.0
  %1699 = vmatprep.subr.mxu0 0.0
  %1700 = vmatpush1.msra.mxu0 0.0
  %1701 = vmatprep.subr.mxu0 0.0
  %1702 = vmatpush1.msra.mxu0 0.0
  %1703 = vmatprep.subr.mxu0 %v1667
  %1704 = vmatpush1.msra.mxu0 %v1665
  %1705 = vmatprep.subr.mxu0 0.0
  %1706 = vmatpush2.msra.mxu0 0.0
  %1707 = vmatprep.subr.mxu0 0.0
  %1708 = vmatpush2.msra.mxu0 0.0
  %1709 = vmatprep.subr.mxu0 0.0
  %1710 = vmatpush2.msra.mxu0 0.0
  %1711 = vmatprep.subr.mxu0 0.0
  %1712 = vmatpush2.msra.mxu0 0.0
  %1713 = vmatprep.subr.mxu0 0.0
  %1714 = vmatpush2.msra.mxu0 0.0
  %1715 = vmatprep.subr.mxu0 0.0
  %1716 = vmatpush2.msra.mxu0 0.0
  %1717 = vmatprep.subr.mxu0 0.0
  %1718 = vmatpush2.msra.mxu0 0.0
  %1719 = vmatprep.subr.mxu0 0.0
  %1720 = vmatpush2.msra.mxu0 0.0
  %1721 = vmatprep.subr.mxu0 0.0
  %1722 = vmatpush2.msra.mxu0 0.0
  %1723 = vmatprep.subr.mxu0 0.0
  %1724 = vmatpush2.msra.mxu0 0.0
  %1725 = vmatprep.subr.mxu0 0.0
  %1726 = vmatpush2.msra.mxu0 0.0
  %1727 = vmatprep.subr.mxu0 0.0
  %1728 = vmatpush2.msra.mxu0 0.0
  %1729 = vmatprep.subr.mxu0 0.0
  %1730 = vmatpush2.msra.mxu0 0.0
  %1731 = vmatprep.subr.mxu0 0.0
  %1732 = vmatpush2.msra.mxu0 0.0
  %1733 = vmatprep.subr.mxu0 0.0
  %1734 = vmatpush2.msra.mxu0 0.0
  %1735 = vmatprep.subr.mxu0 0.0
  %1736 = vmatpush2.msra.mxu0 0.0
  %1737 = vmatprep.mubr.f32.mxu0 0.0
  %1738 = vmatmul.mubr.f32.gmra.mxu0 %v1663
  %v1739 = vpop.f32.mrf.mxu0
  %v1740 = vadd.f32 0.0, %v1739
  %v1741 = vpop.f32.mrf.mxu0
  %v1742 = vadd.f32 0.0, %v1741
  %1743 = vdwg.mxu0
  %1744 = vmatprep.subr.mxu0 0.0
  %1745 = vmatpush1.msra.mxu0 0.0
  %1746 = vmatprep.subr.mxu0 0.0
  %1747 = vmatpush1.msra.mxu0 0.0
  %1748 = vmatprep.subr.mxu0 0.0
  %1749 = vmatpush1.msra.mxu0 0.0
  %1750 = vmatprep.subr.mxu0 0.0
  %1751 = vmatpush1.msra.mxu0 0.0
  %1752 = vmatprep.subr.mxu0 0.0
  %1753 = vmatpush1.msra.mxu0 0.0
  %1754 = vmatprep.subr.mxu0 0.0
  %1755 = vmatpush1.msra.mxu0 0.0
  %1756 = vmatprep.subr.mxu0 0.0
  %1757 = vmatpush1.msra.mxu0 0.0
  %1758 = vmatprep.subr.mxu0 0.0
  %1759 = vmatpush1.msra.mxu0 0.0
  %1760 = vmatprep.subr.mxu0 0.0
  %1761 = vmatpush1.msra.mxu0 0.0
  %1762 = vmatprep.subr.mxu0 0.0
  %1763 = vmatpush1.msra.mxu0 0.0
  %1764 = vmatprep.subr.mxu0 0.0
  %1765 = vmatpush1.msra.mxu0 0.0
  %1766 = vmatprep.subr.mxu0 0.0
  %1767 = vmatpush1.msra.mxu0 0.0
  %1768 = vmatprep.subr.mxu0 0.0
  %1769 = vmatpush1.msra.mxu0 0.0
  %1770 = vmatprep.subr.mxu0 0.0
  %1771 = vmatpush1.msra.mxu0 0.0
  %1772 = vmatprep.subr.mxu0 0.0
  %1773 = vmatpush1.msra.mxu0 0.0
  %1774 = vmatprep.subr.mxu0 %v1671
  %1775 = vmatpush1.msra.mxu0 %v1669
  %1776 = vmatprep.subr.mxu0 0.0
  %1777 = vmatpush2.msra.mxu0 0.0
  %1778 = vmatprep.subr.mxu0 0.0
  %1779 = vmatpush2.msra.mxu0 0.0
  %1780 = vmatprep.subr.mxu0 0.0
  %1781 = vmatpush2.msra.mxu0 0.0
  %1782 = vmatprep.subr.mxu0 0.0
  %1783 = vmatpush2.msra.mxu0 0.0
  %1784 = vmatprep.subr.mxu0 0.0
  %1785 = vmatpush2.msra.mxu0 0.0
  %1786 = vmatprep.subr.mxu0 0.0
  %1787 = vmatpush2.msra.mxu0 0.0
  %1788 = vmatprep.subr.mxu0 0.0
  %1789 = vmatpush2.msra.mxu0 0.0
  %1790 = vmatprep.subr.mxu0 0.0
  %1791 = vmatpush2.msra.mxu0 0.0
  %1792 = vmatprep.subr.mxu0 0.0
  %1793 = vmatpush2.msra.mxu0 0.0
  %1794 = vmatprep.subr.mxu0 0.0
  %1795 = vmatpush2.msra.mxu0 0.0
  %1796 = vmatprep.subr.mxu0 0.0
  %1797 = vmatpush2.msra.mxu0 0.0
  %1798 = vmatprep.subr.mxu0 0.0
  %1799 = vmatpush2.msra.mxu0 0.0
  %1800 = vmatprep.subr.mxu0 0.0
  %1801 = vmatpush2.msra.mxu0 0.0
  %1802 = vmatprep.subr.mxu0 0.0
  %1803 = vmatpush2.msra.mxu0 0.0
  %1804 = vmatprep.subr.mxu0 0.0
  %1805 = vmatpush2.msra.mxu0 0.0
  %1806 = vmatprep.subr.mxu0 0.0
  %1807 = vmatpush2.msra.mxu0 0.0
  %1808 = vmatprep.mubr.f32.mxu0 0.0
  %1809 = vmatmul.mubr.f32.gmra.mxu0 %v1663
  %v1810 = vpop.f32.mrf.mxu0
  %v1811 = vadd.f32 0.0, %v1810
  %v1812 = vpop.f32.mrf.mxu0
  %v1813 = vadd.f32 0.0, %v1812
  %1814 = vdwg.mxu0
  %v1815 = vadd.f32 %v1570, %v1740
  %v1816 = vadd.f32 %v1571, %v1742
  %v1817 = vadd.f32 %v1572, %v1811
  %v1818 = vadd.f32 %v1573, %v1813
  %v1819 = vld [vmem:[#allocation2 + $0x2] sm:$0xff]
  %v1820 = vld [vmem:[#allocation2 + $0xa] sm:$0x3]
  %s1821 = scalar_lea.vmem %s7, 24
  %v1822 = vld [vmem:[%s1821] sm:$0xf]
  %v1824 = vlaneseq
  %v1825 = vshrl.u32 %v1824, 7
  %v1826 = vsub.s32 0, %v1825
  %v1827 = vrot.slane %v1822, %v1826
  %v1828 = vlaneseq
  %v1829 = vshrl.u32 %v1828, 7
  %v1830 = vsub.s32 1, %v1829
  %v1831 = vrot.slane %v1822, %v1830
  %v1832 = vlaneseq
  %v1833 = vshrl.u32 %v1832, 7
  %v1834 = vsub.s32 2, %v1833
  %v1835 = vrot.slane %v1822, %v1834
  %v1836 = vlaneseq
  %v1837 = vshrl.u32 %v1836, 7
  %v1838 = vsub.s32 3, %v1837
  %v1839 = vrot.slane %v1822, %v1838
  %v1840 = vcombine.low %v1827, %v1831
  %v1841 = vcombine.low %v1835, %v1839
  %v1843 = vunpack.c.l.s4 1983009808
  %v1844 = vunpack.c.0.s8 %v1843
  %v1845 = vlaneseq
  %v1846 = vshrl.u32 %v1845, 7
  %v1847 = vsub.s32 %v1844, %v1846
  %v1848 = vrot.slane %v1840, %v1847
  %v1850 = vunpack.c.l.s4 1983009808
  %v1851 = vunpack.c.0.s8 %v1850
  %v1852 = vlaneseq
  %v1853 = vshrl.u32 %v1852, 7
  %v1854 = vsub.s32 %v1851, %v1853
  %v1855 = vrot.slane %v1841, %v1854
  %v1856 = vcombine.low %v1848, %v1855
  %1857 = vrot.lane.b32.xlu0 %v1856, 15
  %v1858 = vpop.permute.xlu0 %1857
  %v1859 = vrot.slane %v1858, 6
  %v1860 = vsel %vm949, %v1859, %v1858
  %v1863 = vmul.f32 %v1819, %v1860
  %v1864 = vmul.f32 %v1820, %v1859
  %s1865 = scalar_lea.vmem %s6, 12
  %v1866 = vld [vmem:[%s1865] sm:$0x3]
  %v1869 = vcombine.high %v1863, %v1863
  %v1871 = vunpack.c.l.s4 1983009808
  %v1872 = vunpack.c.0.s8 %v1871
  %v1873 = vlaneseq
  %v1874 = vshrl.u32 %v1873, 7
  %v1875 = vsub.s32 %v1872, %v1874
  %v1876 = vrot.slane %v1863, %v1875
  %v1878 = vunpack.c.l.s4 1983009808
  %v1879 = vunpack.c.0.s8 %v1878
  %v1880 = vlaneseq
  %v1881 = vshrl.u32 %v1880, 7
  %v1882 = vsub.s32 %v1879, %v1881
  %v1883 = vrot.slane %v1869, %v1882
  %v1884 = vcombine.high %v1876, %v1876
  %v1885 = vcombine.high %v1883, %v1883
  %v1887 = vunpack.c.l.s4 1983009808
  %v1888 = vunpack.c.0.s8 %v1887
  %v1889 = vlaneseq
  %v1890 = vshrl.u32 %v1889, 7
  %v1891 = vsub.s32 %v1888, %v1890
  %v1892 = vrot.slane %v1864, %v1891
  %1893 = vrot.lane.b32.xlu0 %v1876, 113
  %v1894 = vpop.permute.xlu0 %1893
  %1895 = vrot.lane.b32.xlu0 %v1884, 113
  %v1896 = vpop.permute.xlu0 %1895
  %1897 = vrot.lane.b32.xlu0 %v1883, 113
  %v1898 = vpop.permute.xlu0 %1897
  %1899 = vrot.lane.b32.xlu0 %v1885, 113
  %v1900 = vpop.permute.xlu0 %1899
  %1901 = vrot.lane.b32.xlu0 %v1892, 113
  %v1902 = vpop.permute.xlu0 %1901
  %v1903 = vsel %vm905, %v1894, %v1896
  %v1904 = vsel %vm905, %v1896, %v1898
  %v1905 = vsel %vm905, %v1898, %v1900
  %v1906 = vsel %vm905, %v1900, %v1902
  %v1908 = vsel %vm516, %v1866, 0
  %v1910 = vsel %vm295, %v1903, 0
  %v1912 = vsel %vm295, %v1904, 0
  %v1914 = vsel %vm295, %v1905, 0
  %v1916 = vsel %vm295, %v1906, 0
  %1918 = vmatprep.subr.mxu0 0.0
  %1919 = vmatpush1.msra.mxu0 0.0
  %1920 = vmatprep.subr.mxu0 0.0
  %1921 = vmatpush1.msra.mxu0 0.0
  %1922 = vmatprep.subr.mxu0 0.0
  %1923 = vmatpush1.msra.mxu0 0.0
  %1924 = vmatprep.subr.mxu0 0.0
  %1925 = vmatpush1.msra.mxu0 0.0
  %1926 = vmatprep.subr.mxu0 0.0
  %1927 = vmatpush1.msra.mxu0 0.0
  %1928 = vmatprep.subr.mxu0 0.0
  %1929 = vmatpush1.msra.mxu0 0.0
  %1930 = vmatprep.subr.mxu0 0.0
  %1931 = vmatpush1.msra.mxu0 0.0
  %1932 = vmatprep.subr.mxu0 0.0
  %1933 = vmatpush1.msra.mxu0 0.0
  %1934 = vmatprep.subr.mxu0 0.0
  %1935 = vmatpush1.msra.mxu0 0.0
  %1936 = vmatprep.subr.mxu0 0.0
  %1937 = vmatpush1.msra.mxu0 0.0
  %1938 = vmatprep.subr.mxu0 0.0
  %1939 = vmatpush1.msra.mxu0 0.0
  %1940 = vmatprep.subr.mxu0 0.0
  %1941 = vmatpush1.msra.mxu0 0.0
  %1942 = vmatprep.subr.mxu0 0.0
  %1943 = vmatpush1.msra.mxu0 0.0
  %1944 = vmatprep.subr.mxu0 0.0
  %1945 = vmatpush1.msra.mxu0 0.0
  %1946 = vmatprep.subr.mxu0 0.0
  %1947 = vmatpush1.msra.mxu0 0.0
  %1948 = vmatprep.subr.mxu0 %v1912
  %1949 = vmatpush1.msra.mxu0 %v1910
  %1950 = vmatprep.subr.mxu0 0.0
  %1951 = vmatpush2.msra.mxu0 0.0
  %1952 = vmatprep.subr.mxu0 0.0
  %1953 = vmatpush2.msra.mxu0 0.0
  %1954 = vmatprep.subr.mxu0 0.0
  %1955 = vmatpush2.msra.mxu0 0.0
  %1956 = vmatprep.subr.mxu0 0.0
  %1957 = vmatpush2.msra.mxu0 0.0
  %1958 = vmatprep.subr.mxu0 0.0
  %1959 = vmatpush2.msra.mxu0 0.0
  %1960 = vmatprep.subr.mxu0 0.0
  %1961 = vmatpush2.msra.mxu0 0.0
  %1962 = vmatprep.subr.mxu0 0.0
  %1963 = vmatpush2.msra.mxu0 0.0
  %1964 = vmatprep.subr.mxu0 0.0
  %1965 = vmatpush2.msra.mxu0 0.0
  %1966 = vmatprep.subr.mxu0 0.0
  %1967 = vmatpush2.msra.mxu0 0.0
  %1968 = vmatprep.subr.mxu0 0.0
  %1969 = vmatpush2.msra.mxu0 0.0
  %1970 = vmatprep.subr.mxu0 0.0
  %1971 = vmatpush2.msra.mxu0 0.0
  %1972 = vmatprep.subr.mxu0 0.0
  %1973 = vmatpush2.msra.mxu0 0.0
  %1974 = vmatprep.subr.mxu0 0.0
  %1975 = vmatpush2.msra.mxu0 0.0
  %1976 = vmatprep.subr.mxu0 0.0
  %1977 = vmatpush2.msra.mxu0 0.0
  %1978 = vmatprep.subr.mxu0 0.0
  %1979 = vmatpush2.msra.mxu0 0.0
  %1980 = vmatprep.subr.mxu0 0.0
  %1981 = vmatpush2.msra.mxu0 0.0
  %1982 = vmatprep.mubr.f32.mxu0 0.0
  %1983 = vmatmul.mubr.f32.gmra.mxu0 %v1908
  %v1984 = vpop.f32.mrf.mxu0
  %v1985 = vadd.f32 0.0, %v1984
  %v1986 = vpop.f32.mrf.mxu0
  %v1987 = vadd.f32 0.0, %v1986
  %1988 = vdwg.mxu0
  %1989 = vmatprep.subr.mxu0 0.0
  %1990 = vmatpush1.msra.mxu0 0.0
  %1991 = vmatprep.subr.mxu0 0.0
  %1992 = vmatpush1.msra.mxu0 0.0
  %1993 = vmatprep.subr.mxu0 0.0
  %1994 = vmatpush1.msra.mxu0 0.0
  %1995 = vmatprep.subr.mxu0 0.0
  %1996 = vmatpush1.msra.mxu0 0.0
  %1997 = vmatprep.subr.mxu0 0.0
  %1998 = vmatpush1.msra.mxu0 0.0
  %1999 = vmatprep.subr.mxu0 0.0
  %2000 = vmatpush1.msra.mxu0 0.0
  %2001 = vmatprep.subr.mxu0 0.0
  %2002 = vmatpush1.msra.mxu0 0.0
  %2003 = vmatprep.subr.mxu0 0.0
  %2004 = vmatpush1.msra.mxu0 0.0
  %2005 = vmatprep.subr.mxu0 0.0
  %2006 = vmatpush1.msra.mxu0 0.0
  %2007 = vmatprep.subr.mxu0 0.0
  %2008 = vmatpush1.msra.mxu0 0.0
  %2009 = vmatprep.subr.mxu0 0.0
  %2010 = vmatpush1.msra.mxu0 0.0
  %2011 = vmatprep.subr.mxu0 0.0
  %2012 = vmatpush1.msra.mxu0 0.0
  %2013 = vmatprep.subr.mxu0 0.0
  %2014 = vmatpush1.msra.mxu0 0.0
  %2015 = vmatprep.subr.mxu0 0.0
  %2016 = vmatpush1.msra.mxu0 0.0
  %2017 = vmatprep.subr.mxu0 0.0
  %2018 = vmatpush1.msra.mxu0 0.0
  %2019 = vmatprep.subr.mxu0 %v1916
  %2020 = vmatpush1.msra.mxu0 %v1914
  %2021 = vmatprep.subr.mxu0 0.0
  %2022 = vmatpush2.msra.mxu0 0.0
  %2023 = vmatprep.subr.mxu0 0.0
  %2024 = vmatpush2.msra.mxu0 0.0
  %2025 = vmatprep.subr.mxu0 0.0
  %2026 = vmatpush2.msra.mxu0 0.0
  %2027 = vmatprep.subr.mxu0 0.0
  %2028 = vmatpush2.msra.mxu0 0.0
  %2029 = vmatprep.subr.mxu0 0.0
  %2030 = vmatpush2.msra.mxu0 0.0
  %2031 = vmatprep.subr.mxu0 0.0
  %2032 = vmatpush2.msra.mxu0 0.0
  %2033 = vmatprep.subr.mxu0 0.0
  %2034 = vmatpush2.msra.mxu0 0.0
  %2035 = vmatprep.subr.mxu0 0.0
  %2036 = vmatpush2.msra.mxu0 0.0
  %2037 = vmatprep.subr.mxu0 0.0
  %2038 = vmatpush2.msra.mxu0 0.0
  %2039 = vmatprep.subr.mxu0 0.0
  %2040 = vmatpush2.msra.mxu0 0.0
  %2041 = vmatprep.subr.mxu0 0.0
  %2042 = vmatpush2.msra.mxu0 0.0
  %2043 = vmatprep.subr.mxu0 0.0
  %2044 = vmatpush2.msra.mxu0 0.0
  %2045 = vmatprep.subr.mxu0 0.0
  %2046 = vmatpush2.msra.mxu0 0.0
  %2047 = vmatprep.subr.mxu0 0.0
  %2048 = vmatpush2.msra.mxu0 0.0
  %2049 = vmatprep.subr.mxu0 0.0
  %2050 = vmatpush2.msra.mxu0 0.0
  %2051 = vmatprep.subr.mxu0 0.0
  %2052 = vmatpush2.msra.mxu0 0.0
  %2053 = vmatprep.mubr.f32.mxu0 0.0
  %2054 = vmatmul.mubr.f32.gmra.mxu0 %v1908
  %v2055 = vpop.f32.mrf.mxu0
  %v2056 = vadd.f32 0.0, %v2055
  %v2057 = vpop.f32.mrf.mxu0
  %v2058 = vadd.f32 0.0, %v2057
  %2059 = vdwg.mxu0
  %v2060 = vadd.f32 %v1815, %v1985
  %v2061 = vadd.f32 %v1816, %v1987
  %v2062 = vadd.f32 %v1817, %v2056
  %v2063 = vadd.f32 %v1818, %v2058
  %v2064 = vld [vmem:[#allocation2 + $0x2] sm:$0xff]
  %v2065 = vld [vmem:[#allocation2 + $0xa] sm:$0x3]
  %s2066 = scalar_lea.vmem %s7, 28
  %v2067 = vld [vmem:[%s2066] sm:$0xf]
  %v2069 = vlaneseq
  %v2070 = vshrl.u32 %v2069, 7
  %v2071 = vsub.s32 0, %v2070
  %v2072 = vrot.slane %v2067, %v2071
  %v2073 = vlaneseq
  %v2074 = vshrl.u32 %v2073, 7
  %v2075 = vsub.s32 1, %v2074
  %v2076 = vrot.slane %v2067, %v2075
  %v2077 = vlaneseq
  %v2078 = vshrl.u32 %v2077, 7
  %v2079 = vsub.s32 2, %v2078
  %v2080 = vrot.slane %v2067, %v2079
  %v2081 = vlaneseq
  %v2082 = vshrl.u32 %v2081, 7
  %v2083 = vsub.s32 3, %v2082
  %v2084 = vrot.slane %v2067, %v2083
  %v2085 = vcombine.low %v2072, %v2076
  %v2086 = vcombine.low %v2080, %v2084
  %v2088 = vunpack.c.l.s4 1983009808
  %v2089 = vunpack.c.0.s8 %v2088
  %v2090 = vlaneseq
  %v2091 = vshrl.u32 %v2090, 7
  %v2092 = vsub.s32 %v2089, %v2091
  %v2093 = vrot.slane %v2085, %v2092
  %v2095 = vunpack.c.l.s4 1983009808
  %v2096 = vunpack.c.0.s8 %v2095
  %v2097 = vlaneseq
  %v2098 = vshrl.u32 %v2097, 7
  %v2099 = vsub.s32 %v2096, %v2098
  %v2100 = vrot.slane %v2086, %v2099
  %v2101 = vcombine.low %v2093, %v2100
  %2102 = vrot.lane.b32.xlu0 %v2101, 16
  %v2103 = vpop.permute.xlu0 %2102
  %v2104 = vrot.slane %v2103, 6
  %v2105 = vsel %vm511, %v2104, %v2103
  %v2108 = vmul.f32 %v2064, %v2105
  %v2109 = vmul.f32 %v2065, %v2104
  %s2110 = scalar_lea.vmem %s6, 14
  %v2111 = vld [vmem:[%s2110] sm:$0x3]
  %v2114 = vcombine.high %v2108, %v2108
  %v2116 = vunpack.c.l.s4 1983009808
  %v2117 = vunpack.c.0.s8 %v2116
  %v2118 = vlaneseq
  %v2119 = vshrl.u32 %v2118, 7
  %v2120 = vsub.s32 %v2117, %v2119
  %v2121 = vrot.slane %v2108, %v2120
  %v2123 = vunpack.c.l.s4 1983009808
  %v2124 = vunpack.c.0.s8 %v2123
  %v2125 = vlaneseq
  %v2126 = vshrl.u32 %v2125, 7
  %v2127 = vsub.s32 %v2124, %v2126
  %v2128 = vrot.slane %v2114, %v2127
  %v2129 = vcombine.high %v2121, %v2121
  %v2130 = vcombine.high %v2128, %v2128
  %v2132 = vunpack.c.l.s4 1983009808
  %v2133 = vunpack.c.0.s8 %v2132
  %v2134 = vlaneseq
  %v2135 = vshrl.u32 %v2134, 7
  %v2136 = vsub.s32 %v2133, %v2135
  %v2137 = vrot.slane %v2109, %v2136
  %2138 = vrot.lane.b32.xlu0 %v2121, 112
  %v2139 = vpop.permute.xlu0 %2138
  %2140 = vrot.lane.b32.xlu0 %v2129, 112
  %v2141 = vpop.permute.xlu0 %2140
  %2142 = vrot.lane.b32.xlu0 %v2128, 112
  %v2143 = vpop.permute.xlu0 %2142
  %2144 = vrot.lane.b32.xlu0 %v2130, 112
  %v2145 = vpop.permute.xlu0 %2144
  %2146 = vrot.lane.b32.xlu0 %v2137, 112
  %v2147 = vpop.permute.xlu0 %2146
  %v2148 = vsel %vm467, %v2139, %v2141
  %v2149 = vsel %vm467, %v2141, %v2143
  %v2150 = vsel %vm467, %v2143, %v2145
  %v2151 = vsel %vm467, %v2145, %v2147
  %v2153 = vsel %vm516, %v2111, 0
  %v2155 = vsel %vm295, %v2148, 0
  %v2157 = vsel %vm295, %v2149, 0
  %v2159 = vsel %vm295, %v2150, 0
  %v2161 = vsel %vm295, %v2151, 0
  %2163 = vmatprep.subr.mxu0 0.0
  %2164 = vmatpush1.msra.mxu0 0.0
  %2165 = vmatprep.subr.mxu0 0.0
  %2166 = vmatpush1.msra.mxu0 0.0
  %2167 = vmatprep.subr.mxu0 0.0
  %2168 = vmatpush1.msra.mxu0 0.0
  %2169 = vmatprep.subr.mxu0 0.0
  %2170 = vmatpush1.msra.mxu0 0.0
  %2171 = vmatprep.subr.mxu0 0.0
  %2172 = vmatpush1.msra.mxu0 0.0
  %2173 = vmatprep.subr.mxu0 0.0
  %2174 = vmatpush1.msra.mxu0 0.0
  %2175 = vmatprep.subr.mxu0 0.0
  %2176 = vmatpush1.msra.mxu0 0.0
  %2177 = vmatprep.subr.mxu0 0.0
  %2178 = vmatpush1.msra.mxu0 0.0
  %2179 = vmatprep.subr.mxu0 0.0
  %2180 = vmatpush1.msra.mxu0 0.0
  %2181 = vmatprep.subr.mxu0 0.0
  %2182 = vmatpush1.msra.mxu0 0.0
  %2183 = vmatprep.subr.mxu0 0.0
  %2184 = vmatpush1.msra.mxu0 0.0
  %2185 = vmatprep.subr.mxu0 0.0
  %2186 = vmatpush1.msra.mxu0 0.0
  %2187 = vmatprep.subr.mxu0 0.0
  %2188 = vmatpush1.msra.mxu0 0.0
  %2189 = vmatprep.subr.mxu0 0.0
  %2190 = vmatpush1.msra.mxu0 0.0
  %2191 = vmatprep.subr.mxu0 0.0
  %2192 = vmatpush1.msra.mxu0 0.0
  %2193 = vmatprep.subr.mxu0 %v2157
  %2194 = vmatpush1.msra.mxu0 %v2155
  %2195 = vmatprep.subr.mxu0 0.0
  %2196 = vmatpush2.msra.mxu0 0.0
  %2197 = vmatprep.subr.mxu0 0.0
  %2198 = vmatpush2.msra.mxu0 0.0
  %2199 = vmatprep.subr.mxu0 0.0
  %2200 = vmatpush2.msra.mxu0 0.0
  %2201 = vmatprep.subr.mxu0 0.0
  %2202 = vmatpush2.msra.mxu0 0.0
  %2203 = vmatprep.subr.mxu0 0.0
  %2204 = vmatpush2.msra.mxu0 0.0
  %2205 = vmatprep.subr.mxu0 0.0
  %2206 = vmatpush2.msra.mxu0 0.0
  %2207 = vmatprep.subr.mxu0 0.0
  %2208 = vmatpush2.msra.mxu0 0.0
  %2209 = vmatprep.subr.mxu0 0.0
  %2210 = vmatpush2.msra.mxu0 0.0
  %2211 = vmatprep.subr.mxu0 0.0
  %2212 = vmatpush2.msra.mxu0 0.0
  %2213 = vmatprep.subr.mxu0 0.0
  %2214 = vmatpush2.msra.mxu0 0.0
  %2215 = vmatprep.subr.mxu0 0.0
  %2216 = vmatpush2.msra.mxu0 0.0
  %2217 = vmatprep.subr.mxu0 0.0
  %2218 = vmatpush2.msra.mxu0 0.0
  %2219 = vmatprep.subr.mxu0 0.0
  %2220 = vmatpush2.msra.mxu0 0.0
  %2221 = vmatprep.subr.mxu0 0.0
  %2222 = vmatpush2.msra.mxu0 0.0
  %2223 = vmatprep.subr.mxu0 0.0
  %2224 = vmatpush2.msra.mxu0 0.0
  %2225 = vmatprep.subr.mxu0 0.0
  %2226 = vmatpush2.msra.mxu0 0.0
  %2227 = vmatprep.mubr.f32.mxu0 0.0
  %2228 = vmatmul.mubr.f32.gmra.mxu0 %v2153
  %v2229 = vpop.f32.mrf.mxu0
  %v2230 = vadd.f32 0.0, %v2229
  %v2231 = vpop.f32.mrf.mxu0
  %v2232 = vadd.f32 0.0, %v2231
  %2233 = vdwg.mxu0
  %2234 = vmatprep.subr.mxu0 0.0
  %2235 = vmatpush1.msra.mxu0 0.0
  %2236 = vmatprep.subr.mxu0 0.0
  %2237 = vmatpush1.msra.mxu0 0.0
  %2238 = vmatprep.subr.mxu0 0.0
  %2239 = vmatpush1.msra.mxu0 0.0
  %2240 = vmatprep.subr.mxu0 0.0
  %2241 = vmatpush1.msra.mxu0 0.0
  %2242 = vmatprep.subr.mxu0 0.0
  %2243 = vmatpush1.msra.mxu0 0.0
  %2244 = vmatprep.subr.mxu0 0.0
  %2245 = vmatpush1.msra.mxu0 0.0
  %2246 = vmatprep.subr.mxu0 0.0
  %2247 = vmatpush1.msra.mxu0 0.0
  %2248 = vmatprep.subr.mxu0 0.0
  %2249 = vmatpush1.msra.mxu0 0.0
  %2250 = vmatprep.subr.mxu0 0.0
  %2251 = vmatpush1.msra.mxu0 0.0
  %2252 = vmatprep.subr.mxu0 0.0
  %2253 = vmatpush1.msra.mxu0 0.0
  %2254 = vmatprep.subr.mxu0 0.0
  %2255 = vmatpush1.msra.mxu0 0.0
  %2256 = vmatprep.subr.mxu0 0.0
  %2257 = vmatpush1.msra.mxu0 0.0
  %2258 = vmatprep.subr.mxu0 0.0
  %2259 = vmatpush1.msra.mxu0 0.0
  %2260 = vmatprep.subr.mxu0 0.0
  %2261 = vmatpush1.msra.mxu0 0.0
  %2262 = vmatprep.subr.mxu0 0.0
  %2263 = vmatpush1.msra.mxu0 0.0
  %2264 = vmatprep.subr.mxu0 %v2161
  %2265 = vmatpush1.msra.mxu0 %v2159
  %2266 = vmatprep.subr.mxu0 0.0
  %2267 = vmatpush2.msra.mxu0 0.0
  %2268 = vmatprep.subr.mxu0 0.0
  %2269 = vmatpush2.msra.mxu0 0.0
  %2270 = vmatprep.subr.mxu0 0.0
  %2271 = vmatpush2.msra.mxu0 0.0
  %2272 = vmatprep.subr.mxu0 0.0
  %2273 = vmatpush2.msra.mxu0 0.0
  %2274 = vmatprep.subr.mxu0 0.0
  %2275 = vmatpush2.msra.mxu0 0.0
  %2276 = vmatprep.subr.mxu0 0.0
  %2277 = vmatpush2.msra.mxu0 0.0
  %2278 = vmatprep.subr.mxu0 0.0
  %2279 = vmatpush2.msra.mxu0 0.0
  %2280 = vmatprep.subr.mxu0 0.0
  %2281 = vmatpush2.msra.mxu0 0.0
  %2282 = vmatprep.subr.mxu0 0.0
  %2283 = vmatpush2.msra.mxu0 0.0
  %2284 = vmatprep.subr.mxu0 0.0
  %2285 = vmatpush2.msra.mxu0 0.0
  %2286 = vmatprep.subr.mxu0 0.0
  %2287 = vmatpush2.msra.mxu0 0.0
  %2288 = vmatprep.subr.mxu0 0.0
  %2289 = vmatpush2.msra.mxu0 0.0
  %2290 = vmatprep.subr.mxu0 0.0
  %2291 = vmatpush2.msra.mxu0 0.0
  %2292 = vmatprep.subr.mxu0 0.0
  %2293 = vmatpush2.msra.mxu0 0.0
  %2294 = vmatprep.subr.mxu0 0.0
  %2295 = vmatpush2.msra.mxu0 0.0
  %2296 = vmatprep.subr.mxu0 0.0
  %2297 = vmatpush2.msra.mxu0 0.0
  %2298 = vmatprep.mubr.f32.mxu0 0.0
  %2299 = vmatmul.mubr.f32.gmra.mxu0 %v2153
  %v2300 = vpop.f32.mrf.mxu0
  %v2301 = vadd.f32 0.0, %v2300
  %v2302 = vpop.f32.mrf.mxu0
  %v2303 = vadd.f32 0.0, %v2302
  %2304 = vdwg.mxu0
  %v2305 = vadd.f32 %v2060, %v2230
  %v2306 = vadd.f32 %v2061, %v2232
  %v2307 = vadd.f32 %v2062, %v2301
  %v2308 = vadd.f32 %v2063, %v2303
  %v2309 = vld [vmem:[#allocation2 + $0x2] sm:$0xff]
  %v2310 = vld [vmem:[#allocation2 + $0xa] sm:$0x3]
  %s2311 = scalar_lea.vmem %s7, 32
  %v2312 = vld [vmem:[%s2311] sm:$0xf]
  %v2314 = vlaneseq
  %v2315 = vshrl.u32 %v2314, 7
  %v2316 = vsub.s32 0, %v2315
  %v2317 = vrot.slane %v2312, %v2316
  %v2318 = vlaneseq
  %v2319 = vshrl.u32 %v2318, 7
  %v2320 = vsub.s32 1, %v2319
  %v2321 = vrot.slane %v2312, %v2320
  %v2322 = vlaneseq
  %v2323 = vshrl.u32 %v2322, 7
  %v2324 = vsub.s32 2, %v2323
  %v2325 = vrot.slane %v2312, %v2324
  %v2326 = vlaneseq
  %v2327 = vshrl.u32 %v2326, 7
  %v2328 = vsub.s32 3, %v2327
  %v2329 = vrot.slane %v2312, %v2328
  %v2330 = vcombine.low %v2317, %v2321
  %v2331 = vcombine.low %v2325, %v2329
  %v2333 = vunpack.c.l.s4 1983009808
  %v2334 = vunpack.c.0.s8 %v2333
  %v2335 = vlaneseq
  %v2336 = vshrl.u32 %v2335, 7
  %v2337 = vsub.s32 %v2334, %v2336
  %v2338 = vrot.slane %v2330, %v2337
  %v2340 = vunpack.c.l.s4 1983009808
  %v2341 = vunpack.c.0.s8 %v2340
  %v2342 = vlaneseq
  %v2343 = vshrl.u32 %v2342, 7
  %v2344 = vsub.s32 %v2341, %v2343
  %v2345 = vrot.slane %v2331, %v2344
  %v2346 = vcombine.low %v2338, %v2345
  %2347 = vrot.lane.b32.xlu0 %v2346, 17
  %v2348 = vpop.permute.xlu0 %2347
  %v2349 = vrot.slane %v2348, 6
  %v2350 = vsel %vm706, %v2349, %v2348
  %v2353 = vmul.f32 %v2309, %v2350
  %v2354 = vmul.f32 %v2310, %v2349
  %s2355 = scalar_lea.vmem %s6, 16
  %v2356 = vld [vmem:[%s2355] sm:$0x3]
  %v2359 = vcombine.high %v2353, %v2353
  %v2361 = vunpack.c.l.s4 1983009808
  %v2362 = vunpack.c.0.s8 %v2361
  %v2363 = vlaneseq
  %v2364 = vshrl.u32 %v2363, 7
  %v2365 = vsub.s32 %v2362, %v2364
  %v2366 = vrot.slane %v2353, %v2365
  %v2368 = vunpack.c.l.s4 1983009808
  %v2369 = vunpack.c.0.s8 %v2368
  %v2370 = vlaneseq
  %v2371 = vshrl.u32 %v2370, 7
  %v2372 = vsub.s32 %v2369, %v2371
  %v2373 = vrot.slane %v2359, %v2372
  %v2374 = vcombine.high %v2366, %v2366
  %v2375 = vcombine.high %v2373, %v2373
  %v2377 = vunpack.c.l.s4 1983009808
  %v2378 = vunpack.c.0.s8 %v2377
  %v2379 = vlaneseq
  %v2380 = vshrl.u32 %v2379, 7
  %v2381 = vsub.s32 %v2378, %v2380
  %v2382 = vrot.slane %v2354, %v2381
  %2383 = vrot.lane.b32.xlu0 %v2366, 111
  %v2384 = vpop.permute.xlu0 %2383
  %2385 = vrot.lane.b32.xlu0 %v2374, 111
  %v2386 = vpop.permute.xlu0 %2385
  %2387 = vrot.lane.b32.xlu0 %v2373, 111
  %v2388 = vpop.permute.xlu0 %2387
  %2389 = vrot.lane.b32.xlu0 %v2375, 111
  %v2390 = vpop.permute.xlu0 %2389
  %2391 = vrot.lane.b32.xlu0 %v2382, 111
  %v2392 = vpop.permute.xlu0 %2391
  %v2393 = vsel %vm421, %v2384, %v2386
  %v2394 = vsel %vm421, %v2386, %v2388
  %v2395 = vsel %vm421, %v2388, %v2390
  %v2396 = vsel %vm421, %v2390, %v2392
  %v2398 = vsel %vm516, %v2356, 0
  %v2400 = vsel %vm295, %v2393, 0
  %v2402 = vsel %vm295, %v2394, 0
  %v2404 = vsel %vm295, %v2395, 0
  %v2406 = vsel %vm295, %v2396, 0
  %2408 = vmatprep.subr.mxu0 0.0
  %2409 = vmatpush1.msra.mxu0 0.0
  %2410 = vmatprep.subr.mxu0 0.0
  %2411 = vmatpush1.msra.mxu0 0.0
  %2412 = vmatprep.subr.mxu0 0.0
  %2413 = vmatpush1.msra.mxu0 0.0
  %2414 = vmatprep.subr.mxu0 0.0
  %2415 = vmatpush1.msra.mxu0 0.0
  %2416 = vmatprep.subr.mxu0 0.0
  %2417 = vmatpush1.msra.mxu0 0.0
  %2418 = vmatprep.subr.mxu0 0.0
  %2419 = vmatpush1.msra.mxu0 0.0
  %2420 = vmatprep.subr.mxu0 0.0
  %2421 = vmatpush1.msra.mxu0 0.0
  %2422 = vmatprep.subr.mxu0 0.0
  %2423 = vmatpush1.msra.mxu0 0.0
  %2424 = vmatprep.subr.mxu0 0.0
  %2425 = vmatpush1.msra.mxu0 0.0
  %2426 = vmatprep.subr.mxu0 0.0
  %2427 = vmatpush1.msra.mxu0 0.0
  %2428 = vmatprep.subr.mxu0 0.0
  %2429 = vmatpush1.msra.mxu0 0.0
  %2430 = vmatprep.subr.mxu0 0.0
  %2431 = vmatpush1.msra.mxu0 0.0
  %2432 = vmatprep.subr.mxu0 0.0
  %2433 = vmatpush1.msra.mxu0 0.0
  %2434 = vmatprep.subr.mxu0 0.0
  %2435 = vmatpush1.msra.mxu0 0.0
  %2436 = vmatprep.subr.mxu0 0.0
  %2437 = vmatpush1.msra.mxu0 0.0
  %2438 = vmatprep.subr.mxu0 %v2402
  %2439 = vmatpush1.msra.mxu0 %v2400
  %2440 = vmatprep.subr.mxu0 0.0
  %2441 = vmatpush2.msra.mxu0 0.0
  %2442 = vmatprep.subr.mxu0 0.0
  %2443 = vmatpush2.msra.mxu0 0.0
  %2444 = vmatprep.subr.mxu0 0.0
  %2445 = vmatpush2.msra.mxu0 0.0
  %2446 = vmatprep.subr.mxu0 0.0
  %2447 = vmatpush2.msra.mxu0 0.0
  %2448 = vmatprep.subr.mxu0 0.0
  %2449 = vmatpush2.msra.mxu0 0.0
  %2450 = vmatprep.subr.mxu0 0.0
  %2451 = vmatpush2.msra.mxu0 0.0
  %2452 = vmatprep.subr.mxu0 0.0
  %2453 = vmatpush2.msra.mxu0 0.0
  %2454 = vmatprep.subr.mxu0 0.0
  %2455 = vmatpush2.msra.mxu0 0.0
  %2456 = vmatprep.subr.mxu0 0.0
  %2457 = vmatpush2.msra.mxu0 0.0
  %2458 = vmatprep.subr.mxu0 0.0
  %2459 = vmatpush2.msra.mxu0 0.0
  %2460 = vmatprep.subr.mxu0 0.0
  %2461 = vmatpush2.msra.mxu0 0.0
  %2462 = vmatprep.subr.mxu0 0.0
  %2463 = vmatpush2.msra.mxu0 0.0
  %2464 = vmatprep.subr.mxu0 0.0
  %2465 = vmatpush2.msra.mxu0 0.0
  %2466 = vmatprep.subr.mxu0 0.0
  %2467 = vmatpush2.msra.mxu0 0.0
  %2468 = vmatprep.subr.mxu0 0.0
  %2469 = vmatpush2.msra.mxu0 0.0
  %2470 = vmatprep.subr.mxu0 0.0
  %2471 = vmatpush2.msra.mxu0 0.0
  %2472 = vmatprep.mubr.f32.mxu0 0.0
  %2473 = vmatmul.mubr.f32.gmra.mxu0 %v2398
  %v2474 = vpop.f32.mrf.mxu0
  %v2475 = vadd.f32 0.0, %v2474
  %v2476 = vpop.f32.mrf.mxu0
  %v2477 = vadd.f32 0.0, %v2476
  %2478 = vdwg.mxu0
  %2479 = vmatprep.subr.mxu0 0.0
  %2480 = vmatpush1.msra.mxu0 0.0
  %2481 = vmatprep.subr.mxu0 0.0
  %2482 = vmatpush1.msra.mxu0 0.0
  %2483 = vmatprep.subr.mxu0 0.0
  %2484 = vmatpush1.msra.mxu0 0.0
  %2485 = vmatprep.subr.mxu0 0.0
  %2486 = vmatpush1.msra.mxu0 0.0
  %2487 = vmatprep.subr.mxu0 0.0
  %2488 = vmatpush1.msra.mxu0 0.0
  %2489 = vmatprep.subr.mxu0 0.0
  %2490 = vmatpush1.msra.mxu0 0.0
  %2491 = vmatprep.subr.mxu0 0.0
  %2492 = vmatpush1.msra.mxu0 0.0
  %2493 = vmatprep.subr.mxu0 0.0
  %2494 = vmatpush1.msra.mxu0 0.0
  %2495 = vmatprep.subr.mxu0 0.0
  %2496 = vmatpush1.msra.mxu0 0.0
  %2497 = vmatprep.subr.mxu0 0.0
  %2498 = vmatpush1.msra.mxu0 0.0
  %2499 = vmatprep.subr.mxu0 0.0
  %2500 = vmatpush1.msra.mxu0 0.0
  %2501 = vmatprep.subr.mxu0 0.0
  %2502 = vmatpush1.msra.mxu0 0.0
  %2503 = vmatprep.subr.mxu0 0.0
  %2504 = vmatpush1.msra.mxu0 0.0
  %2505 = vmatprep.subr.mxu0 0.0
  %2506 = vmatpush1.msra.mxu0 0.0
  %2507 = vmatprep.subr.mxu0 0.0
  %2508 = vmatpush1.msra.mxu0 0.0
  %2509 = vmatprep.subr.mxu0 %v2406
  %2510 = vmatpush1.msra.mxu0 %v2404
  %2511 = vmatprep.subr.mxu0 0.0
  %2512 = vmatpush2.msra.mxu0 0.0
  %2513 = vmatprep.subr.mxu0 0.0
  %2514 = vmatpush2.msra.mxu0 0.0
  %2515 = vmatprep.subr.mxu0 0.0
  %2516 = vmatpush2.msra.mxu0 0.0
  %2517 = vmatprep.subr.mxu0 0.0
  %2518 = vmatpush2.msra.mxu0 0.0
  %2519 = vmatprep.subr.mxu0 0.0
  %2520 = vmatpush2.msra.mxu0 0.0
  %2521 = vmatprep.subr.mxu0 0.0
  %2522 = vmatpush2.msra.mxu0 0.0
  %2523 = vmatprep.subr.mxu0 0.0
  %2524 = vmatpush2.msra.mxu0 0.0
  %2525 = vmatprep.subr.mxu0 0.0
  %2526 = vmatpush2.msra.mxu0 0.0
  %2527 = vmatprep.subr.mxu0 0.0
  %2528 = vmatpush2.msra.mxu0 0.0
  %2529 = vmatprep.subr.mxu0 0.0
  %2530 = vmatpush2.msra.mxu0 0.0
  %2531 = vmatprep.subr.mxu0 0.0
  %2532 = vmatpush2.msra.mxu0 0.0
  %2533 = vmatprep.subr.mxu0 0.0
  %2534 = vmatpush2.msra.mxu0 0.0
  %2535 = vmatprep.subr.mxu0 0.0
  %2536 = vmatpush2.msra.mxu0 0.0
  %2537 = vmatprep.subr.mxu0 0.0
  %2538 = vmatpush2.msra.mxu0 0.0
  %2539 = vmatprep.subr.mxu0 0.0
  %2540 = vmatpush2.msra.mxu0 0.0
  %2541 = vmatprep.subr.mxu0 0.0
  %2542 = vmatpush2.msra.mxu0 0.0
  %2543 = vmatprep.mubr.f32.mxu0 0.0
  %2544 = vmatmul.mubr.f32.gmra.mxu0 %v2398
  %v2545 = vpop.f32.mrf.mxu0
  %v2546 = vadd.f32 0.0, %v2545
  %v2547 = vpop.f32.mrf.mxu0
  %v2548 = vadd.f32 0.0, %v2547
  %2549 = vdwg.mxu0
  %v2550 = vadd.f32 %v2305, %v2475
  %v2551 = vadd.f32 %v2306, %v2477
  %v2552 = vadd.f32 %v2307, %v2546
  %v2553 = vadd.f32 %v2308, %v2548
  %v2554 = vld [vmem:[%s10] sm:$0xff]
  %v2555 = vsel %vm295, %v2550, 0.0
  %v2556 = vsel %vm295, %v2551, 0.0
  %v2557 = vadd.f32 %v2555, %v2556
  %v2558 = vsel %vm295, %v2552, 0.0
  %v2559 = vadd.f32 %v2557, %v2558
  %v2560 = vsel %vm295, %v2553, 0.0
  %v2561 = vadd.f32 %v2559, %v2560
  %2562 = vadd.xlane.f32.xlu0 %v2561
  %v2563 = vpop.xlane.xlu0 %2562
  %v2564 = vmul.f32 %v2550, %v2550
  %v2565 = vmul.f32 %v2551, %v2551
  %v2566 = vmul.f32 %v2552, %v2552
  %v2567 = vmul.f32 %v2553, %v2553
  %v2568 = vsel %vm295, %v2564, 0.0
  %v2569 = vsel %vm295, %v2565, 0.0
  %v2570 = vadd.f32 %v2568, %v2569
  %v2571 = vsel %vm295, %v2566, 0.0
  %v2572 = vadd.f32 %v2570, %v2571
  %v2573 = vsel %vm295, %v2567, 0.0
  %v2574 = vadd.f32 %v2572, %v2573
  %2575 = vadd.xlane.f32.xlu0 %v2574
  %v2576 = vpop.xlane.xlu0 %2575
  %v2577 = vmul.f32 %v2563, 0.001953125
  %v2578 = vmul.f32 %v2576, 0.001953125
  %v2579 = vmul.f32 %v2577, %v2577
  %v2580 = vsub.f32 %v2578, %v2579
  %v2581 = vsub.f32 %v2550, %v2577
  %v2582 = vsub.f32 %v2551, %v2577
  %v2583 = vsub.f32 %v2552, %v2577
  %v2584 = vsub.f32 %v2553, %v2577
  %v2585 = vadd.f32 %v2580, 1e-05
  %v2586 = vrsqrt.pop %v2585
  %v2587 = vmul.f32 %v2581, %v2586
  %v2588 = vmul.f32 %v2582, %v2586
  %v2589 = vmul.f32 %v2583, %v2586
  %v2590 = vmul.f32 %v2584, %v2586
  %v2591 = vld [vmem:[%s8] sm:$0x3]
  %2593 = vset.pattern.permute.xlu0 0
  %2594 = vperm.xlu0 %2593, %v2591
  %v2595 = vpop.permute.xlu0 %2594
  %v2597 = vmul.f32 %v2587, %v2595
  %v2598 = vmul.f32 %v2588, %v2595
  %v2599 = vmul.f32 %v2589, %v2595
  %v2600 = vmul.f32 %v2590, %v2595
  %v2601 = vld [vmem:[%s9] sm:$0x3]
  %2603 = vset.pattern.permute.xlu0 0
  %2604 = vperm.xlu0 %2603, %v2601
  %v2605 = vpop.permute.xlu0 %2604
  %v2607 = vadd.f32 %v2597, %v2605
  %v2608 = vadd.f32 %v2598, %v2605
  %v2609 = vadd.f32 %v2599, %v2605
  %v2610 = vadd.f32 %v2600, %v2605
  %v2611 = vmax.f32 %v2607, 0.0
  %v2612 = vmax.f32 %v2608, 0.0
  %v2613 = vmax.f32 %v2609, 0.0
  %v2614 = vmax.f32 %v2610, 0.0
  %v2615 = vld [vmem:[%s11] sm:$0xff]
  %v2617 = vsel %vm141, %v2615, 0
  %v2619 = vsel %vm50, %v41, 0
  %v2621 = vsel %vm50, %v46, 0
  %v2623 = vsel %vm50, %v42, 0
  %v2625 = vsel %vm50, %v47, 0
  %2627 = vmatprep.subr.mxu0 0.0
  %2628 = vmatpush1.msra.mxu0 0.0
  %2629 = vmatprep.subr.mxu0 0.0
  %2630 = vmatpush1.msra.mxu0 0.0
  %2631 = vmatprep.subr.mxu0 0.0
  %2632 = vmatpush1.msra.mxu0 0.0
  %2633 = vmatprep.subr.mxu0 0.0
  %2634 = vmatpush1.msra.mxu0 0.0
  %2635 = vmatprep.subr.mxu0 0.0
  %2636 = vmatpush1.msra.mxu0 0.0
  %2637 = vmatprep.subr.mxu0 0.0
  %2638 = vmatpush1.msra.mxu0 0.0
  %2639 = vmatprep.subr.mxu0 0.0
  %2640 = vmatpush1.msra.mxu0 0.0
  %2641 = vmatprep.subr.mxu0 0.0
  %2642 = vmatpush1.msra.mxu0 0.0
  %2643 = vmatprep.subr.mxu0 0.0
  %2644 = vmatpush1.msra.mxu0 0.0
  %2645 = vmatprep.subr.mxu0 0.0
  %2646 = vmatpush1.msra.mxu0 0.0
  %2647 = vmatprep.subr.mxu0 0.0
  %2648 = vmatpush1.msra.mxu0 0.0
  %2649 = vmatprep.subr.mxu0 0.0
  %2650 = vmatpush1.msra.mxu0 0.0
  %2651 = vmatprep.subr.mxu0 0.0
  %2652 = vmatpush1.msra.mxu0 0.0
  %2653 = vmatprep.subr.mxu0 0.0
  %2654 = vmatpush1.msra.mxu0 0.0
  %2655 = vmatprep.subr.mxu0 0.0
  %2656 = vmatpush1.msra.mxu0 0.0
  %2657 = vmatprep.subr.mxu0 %v2621
  %2658 = vmatpush1.msra.mxu0 %v2619
  %2659 = vmatprep.subr.mxu0 0.0
  %2660 = vmatpush2.msra.mxu0 0.0
  %2661 = vmatprep.subr.mxu0 0.0
  %2662 = vmatpush2.msra.mxu0 0.0
  %2663 = vmatprep.subr.mxu0 0.0
  %2664 = vmatpush2.msra.mxu0 0.0
  %2665 = vmatprep.subr.mxu0 0.0
  %2666 = vmatpush2.msra.mxu0 0.0
  %2667 = vmatprep.subr.mxu0 0.0
  %2668 = vmatpush2.msra.mxu0 0.0
  %2669 = vmatprep.subr.mxu0 0.0
  %2670 = vmatpush2.msra.mxu0 0.0
  %2671 = vmatprep.subr.mxu0 0.0
  %2672 = vmatpush2.msra.mxu0 0.0
  %2673 = vmatprep.subr.mxu0 0.0
  %2674 = vmatpush2.msra.mxu0 0.0
  %2675 = vmatprep.subr.mxu0 0.0
  %2676 = vmatpush2.msra.mxu0 0.0
  %2677 = vmatprep.subr.mxu0 0.0
  %2678 = vmatpush2.msra.mxu0 0.0
  %2679 = vmatprep.subr.mxu0 0.0
  %2680 = vmatpush2.msra.mxu0 0.0
  %2681 = vmatprep.subr.mxu0 0.0
  %2682 = vmatpush2.msra.mxu0 0.0
  %2683 = vmatprep.subr.mxu0 0.0
  %2684 = vmatpush2.msra.mxu0 0.0
  %2685 = vmatprep.subr.mxu0 0.0
  %2686 = vmatpush2.msra.mxu0 0.0
  %2687 = vmatprep.subr.mxu0 0.0
  %2688 = vmatpush2.msra.mxu0 0.0
  %2689 = vmatprep.subr.mxu0 0.0
  %2690 = vmatpush2.msra.mxu0 0.0
  %2691 = vmatprep.mubr.f32.mxu0 0.0
  %2692 = vmatmul.mubr.f32.gmra.mxu0 %v2617
  %v2693 = vpop.f32.mrf.mxu0
  %v2694 = vadd.f32 0.0, %v2693
  %v2695 = vpop.f32.mrf.mxu0
  %v2696 = vadd.f32 0.0, %v2695
  %2697 = vdwg.mxu0
  %2698 = vmatprep.subr.mxu0 0.0
  %2699 = vmatpush1.msra.mxu0 0.0
  %2700 = vmatprep.subr.mxu0 0.0
  %2701 = vmatpush1.msra.mxu0 0.0
  %2702 = vmatprep.subr.mxu0 0.0
  %2703 = vmatpush1.msra.mxu0 0.0
  %2704 = vmatprep.subr.mxu0 0.0
  %2705 = vmatpush1.msra.mxu0 0.0
  %2706 = vmatprep.subr.mxu0 0.0
  %2707 = vmatpush1.msra.mxu0 0.0
  %2708 = vmatprep.subr.mxu0 0.0
  %2709 = vmatpush1.msra.mxu0 0.0
  %2710 = vmatprep.subr.mxu0 0.0
  %2711 = vmatpush1.msra.mxu0 0.0
  %2712 = vmatprep.subr.mxu0 0.0
  %2713 = vmatpush1.msra.mxu0 0.0
  %2714 = vmatprep.subr.mxu0 0.0
  %2715 = vmatpush1.msra.mxu0 0.0
  %2716 = vmatprep.subr.mxu0 0.0
  %2717 = vmatpush1.msra.mxu0 0.0
  %2718 = vmatprep.subr.mxu0 0.0
  %2719 = vmatpush1.msra.mxu0 0.0
  %2720 = vmatprep.subr.mxu0 0.0
  %2721 = vmatpush1.msra.mxu0 0.0
  %2722 = vmatprep.subr.mxu0 0.0
  %2723 = vmatpush1.msra.mxu0 0.0
  %2724 = vmatprep.subr.mxu0 0.0
  %2725 = vmatpush1.msra.mxu0 0.0
  %2726 = vmatprep.subr.mxu0 0.0
  %2727 = vmatpush1.msra.mxu0 0.0
  %2728 = vmatprep.subr.mxu0 %v2625
  %2729 = vmatpush1.msra.mxu0 %v2623
  %2730 = vmatprep.subr.mxu0 0.0
  %2731 = vmatpush2.msra.mxu0 0.0
  %2732 = vmatprep.subr.mxu0 0.0
  %2733 = vmatpush2.msra.mxu0 0.0
  %2734 = vmatprep.subr.mxu0 0.0
  %2735 = vmatpush2.msra.mxu0 0.0
  %2736 = vmatprep.subr.mxu0 0.0
  %2737 = vmatpush2.msra.mxu0 0.0
  %2738 = vmatprep.subr.mxu0 0.0
  %2739 = vmatpush2.msra.mxu0 0.0
  %2740 = vmatprep.subr.mxu0 0.0
  %2741 = vmatpush2.msra.mxu0 0.0
  %2742 = vmatprep.subr.mxu0 0.0
  %2743 = vmatpush2.msra.mxu0 0.0
  %2744 = vmatprep.subr.mxu0 0.0
  %2745 = vmatpush2.msra.mxu0 0.0
  %2746 = vmatprep.subr.mxu0 0.0
  %2747 = vmatpush2.msra.mxu0 0.0
  %2748 = vmatprep.subr.mxu0 0.0
  %2749 = vmatpush2.msra.mxu0 0.0
  %2750 = vmatprep.subr.mxu0 0.0
  %2751 = vmatpush2.msra.mxu0 0.0
  %2752 = vmatprep.subr.mxu0 0.0
  %2753 = vmatpush2.msra.mxu0 0.0
  %2754 = vmatprep.subr.mxu0 0.0
  %2755 = vmatpush2.msra.mxu0 0.0
  %2756 = vmatprep.subr.mxu0 0.0
  %2757 = vmatpush2.msra.mxu0 0.0
  %2758 = vmatprep.subr.mxu0 0.0
  %2759 = vmatpush2.msra.mxu0 0.0
  %2760 = vmatprep.subr.mxu0 0.0
  %2761 = vmatpush2.msra.mxu0 0.0
  %2762 = vmatprep.mubr.f32.mxu0 0.0
  %2763 = vmatmul.mubr.f32.gmra.mxu0 %v2617
  %v2764 = vpop.f32.mrf.mxu0
  %v2765 = vadd.f32 0.0, %v2764
  %v2766 = vpop.f32.mrf.mxu0
  %v2767 = vadd.f32 0.0, %v2766
  %2768 = vdwg.mxu0
  %v2770 = vsel %vm516, %v2554, 0
  %v2773 = vsel %vm295, %v2611, 0
  %v2776 = vsel %vm295, %v2612, 0
  %v2779 = vsel %vm295, %v2613, 0
  %v2782 = vsel %vm295, %v2614, 0
  %2784 = vmatprep.subr.mxu0 0.0
  %2785 = vmatpush1.msra.mxu0 0.0
  %2786 = vmatprep.subr.mxu0 0.0
  %2787 = vmatpush1.msra.mxu0 0.0
  %2788 = vmatprep.subr.mxu0 0.0
  %2789 = vmatpush1.msra.mxu0 0.0
  %2790 = vmatprep.subr.mxu0 0.0
  %2791 = vmatpush1.msra.mxu0 0.0
  %2792 = vmatprep.subr.mxu0 0.0
  %2793 = vmatpush1.msra.mxu0 0.0
  %2794 = vmatprep.subr.mxu0 0.0
  %2795 = vmatpush1.msra.mxu0 0.0
  %2796 = vmatprep.subr.mxu0 0.0
  %2797 = vmatpush1.msra.mxu0 0.0
  %2798 = vmatprep.subr.mxu0 0.0
  %2799 = vmatpush1.msra.mxu0 0.0
  %2800 = vmatprep.subr.mxu0 0.0
  %2801 = vmatpush1.msra.mxu0 0.0
  %2802 = vmatprep.subr.mxu0 0.0
  %2803 = vmatpush1.msra.mxu0 0.0
  %2804 = vmatprep.subr.mxu0 0.0
  %2805 = vmatpush1.msra.mxu0 0.0
  %2806 = vmatprep.subr.mxu0 0.0
  %2807 = vmatpush1.msra.mxu0 0.0
  %2808 = vmatprep.subr.mxu0 0.0
  %2809 = vmatpush1.msra.mxu0 0.0
  %2810 = vmatprep.subr.mxu0 0.0
  %2811 = vmatpush1.msra.mxu0 0.0
  %2812 = vmatprep.subr.mxu0 0.0
  %2813 = vmatpush1.msra.mxu0 0.0
  %2814 = vmatprep.subr.mxu0 %v2776
  %2815 = vmatpush1.msra.mxu0 %v2773
  %2816 = vmatprep.subr.mxu0 0.0
  %2817 = vmatpush2.msra.mxu0 0.0
  %2818 = vmatprep.subr.mxu0 0.0
  %2819 = vmatpush2.msra.mxu0 0.0
  %2820 = vmatprep.subr.mxu0 0.0
  %2821 = vmatpush2.msra.mxu0 0.0
  %2822 = vmatprep.subr.mxu0 0.0
  %2823 = vmatpush2.msra.mxu0 0.0
  %2824 = vmatprep.subr.mxu0 0.0
  %2825 = vmatpush2.msra.mxu0 0.0
  %2826 = vmatprep.subr.mxu0 0.0
  %2827 = vmatpush2.msra.mxu0 0.0
  %2828 = vmatprep.subr.mxu0 0.0
  %2829 = vmatpush2.msra.mxu0 0.0
  %2830 = vmatprep.subr.mxu0 0.0
  %2831 = vmatpush2.msra.mxu0 0.0
  %2832 = vmatprep.subr.mxu0 0.0
  %2833 = vmatpush2.msra.mxu0 0.0
  %2834 = vmatprep.subr.mxu0 0.0
  %2835 = vmatpush2.msra.mxu0 0.0
  %2836 = vmatprep.subr.mxu0 0.0
  %2837 = vmatpush2.msra.mxu0 0.0
  %2838 = vmatprep.subr.mxu0 0.0
  %2839 = vmatpush2.msra.mxu0 0.0
  %2840 = vmatprep.subr.mxu0 0.0
  %2841 = vmatpush2.msra.mxu0 0.0
  %2842 = vmatprep.subr.mxu0 0.0
  %2843 = vmatpush2.msra.mxu0 0.0
  %2844 = vmatprep.subr.mxu0 0.0
  %2845 = vmatpush2.msra.mxu0 0.0
  %2846 = vmatprep.subr.mxu0 0.0
  %2847 = vmatpush2.msra.mxu0 0.0
  %2848 = vmatprep.mubr.f32.mxu0 0.0
  %2849 = vmatmul.mubr.f32.gmra.mxu0 %v2770
  %v2850 = vpop.f32.mrf.mxu0
  %v2851 = vadd.f32 %v2694, %v2850
  %v2852 = vpop.f32.mrf.mxu0
  %v2853 = vadd.f32 %v2696, %v2852
  %2854 = vdwg.mxu0
  %2855 = vmatprep.subr.mxu0 0.0
  %2856 = vmatpush1.msra.mxu0 0.0
  %2857 = vmatprep.subr.mxu0 0.0
  %2858 = vmatpush1.msra.mxu0 0.0
  %2859 = vmatprep.subr.mxu0 0.0
  %2860 = vmatpush1.msra.mxu0 0.0
  %2861 = vmatprep.subr.mxu0 0.0
  %2862 = vmatpush1.msra.mxu0 0.0
  %2863 = vmatprep.subr.mxu0 0.0
  %2864 = vmatpush1.msra.mxu0 0.0
  %2865 = vmatprep.subr.mxu0 0.0
  %2866 = vmatpush1.msra.mxu0 0.0
  %2867 = vmatprep.subr.mxu0 0.0
  %2868 = vmatpush1.msra.mxu0 0.0
  %2869 = vmatprep.subr.mxu0 0.0
  %2870 = vmatpush1.msra.mxu0 0.0
  %2871 = vmatprep.subr.mxu0 0.0
  %2872 = vmatpush1.msra.mxu0 0.0
  %2873 = vmatprep.subr.mxu0 0.0
  %2874 = vmatpush1.msra.mxu0 0.0
  %2875 = vmatprep.subr.mxu0 0.0
  %2876 = vmatpush1.msra.mxu0 0.0
  %2877 = vmatprep.subr.mxu0 0.0
  %2878 = vmatpush1.msra.mxu0 0.0
  %2879 = vmatprep.subr.mxu0 0.0
  %2880 = vmatpush1.msra.mxu0 0.0
  %2881 = vmatprep.subr.mxu0 0.0
  %2882 = vmatpush1.msra.mxu0 0.0
  %2883 = vmatprep.subr.mxu0 0.0
  %2884 = vmatpush1.msra.mxu0 0.0
  %2885 = vmatprep.subr.mxu0 %v2782
  %2886 = vmatpush1.msra.mxu0 %v2779
  %2887 = vmatprep.subr.mxu0 0.0
  %2888 = vmatpush2.msra.mxu0 0.0
  %2889 = vmatprep.subr.mxu0 0.0
  %2890 = vmatpush2.msra.mxu0 0.0
  %2891 = vmatprep.subr.mxu0 0.0
  %2892 = vmatpush2.msra.mxu0 0.0
  %2893 = vmatprep.subr.mxu0 0.0
  %2894 = vmatpush2.msra.mxu0 0.0
  %2895 = vmatprep.subr.mxu0 0.0
  %2896 = vmatpush2.msra.mxu0 0.0
  %2897 = vmatprep.subr.mxu0 0.0
  %2898 = vmatpush2.msra.mxu0 0.0
  %2899 = vmatprep.subr.mxu0 0.0
  %2900 = vmatpush2.msra.mxu0 0.0
  %2901 = vmatprep.subr.mxu0 0.0
  %2902 = vmatpush2.msra.mxu0 0.0
  %2903 = vmatprep.subr.mxu0 0.0
  %2904 = vmatpush2.msra.mxu0 0.0
  %2905 = vmatprep.subr.mxu0 0.0
  %2906 = vmatpush2.msra.mxu0 0.0
  %2907 = vmatprep.subr.mxu0 0.0
  %2908 = vmatpush2.msra.mxu0 0.0
  %2909 = vmatprep.subr.mxu0 0.0
  %2910 = vmatpush2.msra.mxu0 0.0
  %2911 = vmatprep.subr.mxu0 0.0
  %2912 = vmatpush2.msra.mxu0 0.0
  %2913 = vmatprep.subr.mxu0 0.0
  %2914 = vmatpush2.msra.mxu0 0.0
  %2915 = vmatprep.subr.mxu0 0.0
  %2916 = vmatpush2.msra.mxu0 0.0
  %2917 = vmatprep.subr.mxu0 0.0
  %2918 = vmatpush2.msra.mxu0 0.0
  %2919 = vmatprep.mubr.f32.mxu0 0.0
  %2920 = vmatmul.mubr.f32.gmra.mxu0 %v2770
  %v2921 = vpop.f32.mrf.mxu0
  %v2922 = vadd.f32 %v2765, %v2921
  %v2923 = vpop.f32.mrf.mxu0
  %v2924 = vadd.f32 %v2767, %v2923
  %2925 = vdwg.mxu0
  %2926 = vst [vmem:[%s12] sm:$0xff] %v2851
  %2927 = vst [vmem:[%s12 + $0x8] sm:$0xff] %v2853
  %2928 = vst [vmem:[%s12 + $0x10] sm:$0xff] %v2922
  %2929 = vst [vmem:[%s12 + $0x18] sm:$0xff] %v2924
  // Predicated region
  $region50: #{residual_block_forward.1} parent=0 // pred_check
    _
  $region51: #{residual_block_forward.1} parent=0 // pred_check_branch
    %2931 = sbr.rel (0) target = $region53
  $region52: #{residual_block_forward.1} parent=0 // pred_region
    _
  $region53: #{residual_block_forward.1} parent=0 // pred_fallthru
    _
  // Predicated region
  $region54: #{residual_block_forward.1} parent=0 // pred_check
    _
  $region55: #{residual_block_forward.1} parent=0 // pred_check_branch
    %2933 = sbr.rel (0) target = $region57
  $region56: #{residual_block_forward.1} parent=0 // pred_region
    _
  $region57: #{residual_block_forward.1} parent=0 // pred_fallthru
    _

</llo_original>
